<compile_context>
chip_gen: v5e
topology: v5e:2x2
jax: 0.10.0
libtpu: 0.0.40
codegen_flags: <defaults>
</compile_context>

<pallas_src>
import jax
import jax.numpy as jnp
from jax import lax
from jax.experimental import pallas as pl
from jax.experimental.pallas import tpu as pltpu


# ----------------------------------------------------------------------------
# Pallas kernel: one batch element per grid step, phase-packed (space-to-depth)
# layout: every spatial buffer is (rows, cols, 4*C) where channel block p =
# 2*a + b holds output phase (row-parity a, col-parity b).
# ----------------------------------------------------------------------------
def _decoder_block_kernel(x_ref, skip_ref, wt_ref, w1_ref, w2_ref, wr_ref,
                          sc_ref, sh_ref, out_ref, up_pad, h1_pad):
    f32 = jnp.float32
    Hp, Wp, Cin = x_ref.shape
    H, W = Hp - 2, Wp - 2
    C4 = out_ref.shape[-1]
    C = C4 // 4
    P = H * W

    # ---- zero only the 1-pixel halo of the scratch buffers (interiors are
    #      fully overwritten below; keeps the batch axis parallel-safe).
    zrow = jnp.zeros((1, Wp, C4), up_pad.dtype)
    zcol = jnp.zeros((Hp, 1, C4), up_pad.dtype)
    for buf in (up_pad, h1_pad):
        buf[0:1, :, :] = zrow
        buf[H + 1:H + 2, :, :] = zrow
        buf[:, 0:1, :] = zcol
        buf[:, W + 1:W + 2, :] = zcol

    # ---- ConvTranspose2d(4, s2, p1) as a sub-pixel conv: a single matmul over
    #      the 3x3 union window of the halo-padded input produces all 4 output
    #      phases at once.  Then BatchNorm (eval: per-channel scale/shift).
    im0 = jnp.concatenate(
        [x_ref[dh:dh + H, dw:dw + W, :] for dh in range(3) for dw in range(3)],
        axis=-1).reshape(P, 9 * Cin)
    up = jnp.dot(im0, wt_ref[...], preferred_element_type=f32)
    up = up * sc_ref[0:1, :] + sh_ref[0:1, :]                       # BN0
    up_pad[1:H + 1, 1:W + 1, :] = up.reshape(H, W, C4).astype(up_pad.dtype)

    # ---- preload the nine shifted windows of the padded skip / up buffers
    skip_win, up_win = {}, {}
    for rs in range(3):
        for cs in range(3):
            skip_win[(rs, cs)] = skip_ref[rs:rs + H, cs:cs + W, :]
            up_win[(rs, cs)] = up_pad[rs:rs + H, cs:cs + W, :]

    # A full-resolution 3x3 conv, expressed on the phase grid, touches the 16
    # (row-tap s, col-tap t) positions below; each position reads phase
    # p = (s%2)*2 + (t%2) of the padded buffer at spatial offset
    # (1 + s//2, 1 + t//2).  The wrapper builds matching (zero-padded) weights.
    def union_pieces(win_dicts, width):
        pieces = []
        for s in (-1, 0, 1, 2):
            rs = 1 + (s // 2)
            for t in (-1, 0, 1, 2):
                cs = 1 + (t // 2)
                p = (s % 2) * 2 + (t % 2)
                for d in win_dicts:
                    pieces.append(d[(rs, cs)][:, :, p * C:(p + 1) * C])
        return jnp.concatenate(pieces, axis=-1).reshape(P, width)

    # ---- Conv3x3(2C -> C) on cat(skip, up): one (P, 32C) @ (32C, 4C) matmul
    im1 = union_pieces([skip_win, up_win], 32 * C)
    h1 = jnp.dot(im1, w1_ref[...], preferred_element_type=f32)
    h1 = h1 * sc_ref[1:2, :] + sh_ref[1:2, :]                       # BN1
    h1 = jnp.where(h1 >= 0, h1, 0.2 * h1)                           # LeakyReLU
    # Dropout(0.5): identity in eval mode
    h1_pad[1:H + 1, 1:W + 1, :] = h1.reshape(H, W, C4).astype(h1_pad.dtype)

    # ---- residual Conv1x1(2C -> C) on cat(skip, up): block-diag (8C, 4C) matmul
    cat0 = jnp.concatenate([skip_win[(1, 1)], up_win[(1, 1)]],
                           axis=-1).reshape(P, 8 * C)
    res = jnp.dot(cat0, wr_ref[...], preferred_element_type=f32)

    # ---- Conv3x3(C -> C): one (P, 16C) @ (16C, 4C) matmul
    h1_win = {}
    for rs in range(3):
        for cs in range(3):
            h1_win[(rs, cs)] = h1_pad[rs:rs + H, cs:cs + W, :]
    im2 = union_pieces([h1_win], 16 * C)
    h2 = jnp.dot(im2, w2_ref[...], preferred_element_type=f32)
    h2 = h2 * sc_ref[2:3, :] + sh_ref[2:3, :]                       # BN2
    decoded = jnp.where(h2 >= 0, h2, 0.2 * h2)                      # LeakyReLU

    out = jnp.maximum(res + decoded, 0.0)
    out_ref[...] = out.reshape(H, W, C4).astype(out_ref.dtype)


# ----------------------------------------------------------------------------
# Wrapper-side weight re-layout (glue): fold kernels into the phase-packed
# (space-to-depth) matrices consumed by the kernel.
# ----------------------------------------------------------------------------
def _prepare_weights(params, Cin, C):
    f32 = jnp.float32
    bf16 = jnp.bfloat16
    C4 = 4 * C

    # ConvTranspose weight -> (9*Cin, 4*C); output phase (a,b) uses the 2x2
    # sub-window of the 3x3 union starting at (a, b).
    wt = params["wt"].astype(f32)                       # (Cin, C, 4, 4)
    wt_s2d = jnp.zeros((9 * Cin, C4), f32)
    for a in range(2):
        for b in range(2):
            c0 = (a * 2 + b) * C
            for dr in range(2):
                for dc in range(2):
                    dh, dw = a + dr, b + dc
                    kh, kw = 3 - a - 2 * dr, 3 - b - 2 * dc
                    r0 = (dh * 3 + dw) * Cin
                    wt_s2d = wt_s2d.at[r0:r0 + Cin, c0:c0 + C].set(wt[:, :, kh, kw])

    # Conv3x3 on cat -> (16 * 2C, 4C); rows ordered (union tap u, [skip C, up C])
    w1 = jnp.transpose(params["w1"].astype(f32), (2, 3, 1, 0))   # (3,3,2C,C)
    w1u = jnp.zeros((16 * 2 * C, C4), f32)
    for a in range(2):
        for b in range(2):
            c0 = (a * 2 + b) * C
            for dy in (-1, 0, 1):
                for dx in (-1, 0, 1):
                    u = (a + dy + 1) * 4 + (b + dx + 1)
                    w1u = w1u.at[u * 2 * C:(u + 1) * 2 * C, c0:c0 + C].set(
                        w1[dy + 1, dx + 1])

    # Conv3x3 (C -> C) -> (16 * C, 4C)
    w2 = jnp.transpose(params["w2"].astype(f32), (2, 3, 1, 0))   # (3,3,C,C)
    w2u = jnp.zeros((16 * C, C4), f32)
    for a in range(2):
        for b in range(2):
            c0 = (a * 2 + b) * C
            for dy in (-1, 0, 1):
                for dx in (-1, 0, 1):
                    u = (a + dy + 1) * 4 + (b + dx + 1)
                    w2u = w2u.at[u * C:(u + 1) * C, c0:c0 + C].set(w2[dy + 1, dx + 1])

    # Residual 1x1 (2C -> C) -> block-diagonal (8C, 4C)
    wres = params["wres"].astype(f32)[:, :, 0, 0].T              # (2C, C)
    wrbd = jnp.zeros((8 * C, C4), f32)
    for p in range(4):
        c0 = p * C
        wrbd = wrbd.at[p * C:(p + 1) * C, c0:c0 + C].set(wres[:C, :])
        wrbd = wrbd.at[4 * C + p * C:4 * C + (p + 1) * C, c0:c0 + C].set(wres[C:, :])

    sc = jnp.tile(params["bn_scale"].astype(f32), (1, 4))        # (3, 4C)
    sh = jnp.tile(params["bn_shift"].astype(f32), (1, 4))
    return (wt_s2d.astype(bf16), w1u.astype(bf16), w2u.astype(bf16),
            wrbd.astype(bf16), sc, sh)


# ----------------------------------------------------------------------------
# Public wrapper: PyTorch-style NCHW in / NCHW out.
# ----------------------------------------------------------------------------
def unet_decoder_block_res_pallas(x_nchw, skip_nchw, params):
    N, Cin, H, W = x_nchw.shape
    C = skip_nchw.shape[1]
    OH, OW = 2 * H, 2 * W
    C4 = 4 * C
    bf16 = jnp.bfloat16

    # x: NHWC + 1-pixel halo, bf16
    x = jnp.transpose(x_nchw, (0, 2, 3, 1))
    x_pad = jnp.pad(x, ((0, 0), (1, 1), (1, 1), (0, 0))).astype(bf16)

    # skip: NHWC -> space-to-depth (phases into channels) -> halo pad, bf16
    skip = jnp.transpose(skip_nchw, (0, 2, 3, 1))                    # (N,OH,OW,C)
    skip_s2d = skip.reshape(N, H, 2, W, 2, C).transpose(0, 1, 3, 2, 4, 5)
    skip_s2d = skip_s2d.reshape(N, H, W, C4)
    skip_pad = jnp.pad(skip_s2d, ((0, 0), (1, 1), (1, 1), (0, 0))).astype(bf16)

    wt_s2d, w1u, w2u, wrbd, sc, sh = _prepare_weights(params, Cin, C)

    full2 = lambda n: (0, 0)
    out_s2d = pl.pallas_call(
        _decoder_block_kernel,
        out_shape=jax.ShapeDtypeStruct((N, H, W, C4), jnp.float32),
        grid=(N,),
        in_specs=[
            pl.BlockSpec((None, H + 2, W + 2, Cin), lambda n: (n, 0, 0, 0)),
            pl.BlockSpec((None, H + 2, W + 2, C4), lambda n: (n, 0, 0, 0)),
            pl.BlockSpec(wt_s2d.shape, full2),
            pl.BlockSpec(w1u.shape, full2),
            pl.BlockSpec(w2u.shape, full2),
            pl.BlockSpec(wrbd.shape, full2),
            pl.BlockSpec(sc.shape, full2),
            pl.BlockSpec(sh.shape, full2),
        ],
        out_specs=pl.BlockSpec((None, H, W, C4), lambda n: (n, 0, 0, 0)),
        scratch_shapes=[
            pltpu.VMEM((H + 2, W + 2, C4), bf16),    # padded up   (phase-packed)
            pltpu.VMEM((H + 2, W + 2, C4), bf16),    # padded h1   (phase-packed)
        ],
        compiler_params=pltpu.CompilerParams(
            dimension_semantics=("parallel",)),
    )(x_pad, skip_pad, wt_s2d, w1u, w2u, wrbd, sc, sh)

    # depth-to-space back to full resolution, then NCHW
    out = out_s2d.reshape(N, H, W, 2, 2, C).transpose(0, 5, 1, 3, 2, 4)
    return out.reshape(N, C, OH, OW)


# ----------------------------------------------------------------------------
# Pure-JAX reference (NCHW, mirrors the PyTorch forward in eval mode).
# ----------------------------------------------------------------------------
def reference(x, skip, params):
    dn = ("NCHW", "OIHW", "NCHW")

    def bn(v, i):
        s = params["bn_scale"][i][None, :, None, None]
        b = params["bn_shift"][i][None, :, None, None]
        return v * s + b

    wt = params["wt"]
    w_conv = jnp.transpose(wt, (1, 0, 2, 3))[:, :, ::-1, ::-1]
    up = lax.conv_general_dilated(x, w_conv, (1, 1), ((2, 2), (2, 2)),
                                  lhs_dilation=(2, 2), dimension_numbers=dn)
    up = bn(up, 0)
    cat = jnp.concatenate([skip, up], axis=1)
    h = lax.conv_general_dilated(cat, params["w1"], (1, 1), ((1, 1), (1, 1)),
                                 dimension_numbers=dn)
    h = bn(h, 1)
    h = jnp.where(h >= 0, h, 0.2 * h)
    h = lax.conv_general_dilated(h, params["w2"], (1, 1), ((1, 1), (1, 1)),
                                 dimension_numbers=dn)
    h = bn(h, 2)
    decoded = jnp.where(h >= 0, h, 0.2 * h)
    res = lax.conv_general_dilated(cat, params["wres"], (1, 1), ((0, 0), (0, 0)),
                                   dimension_numbers=dn)
    return jnp.maximum(res + decoded, 0.0)


def make_params(key, input_nc, output_nc):
    k = jax.random.split(key, 8)
    params = {
        "wt": 0.1 * jax.random.normal(k[0], (input_nc, output_nc, 4, 4), jnp.float32),
        "w1": 0.1 * jax.random.normal(k[1], (output_nc, 2 * output_nc, 3, 3), jnp.float32),
        "w2": 0.1 * jax.random.normal(k[2], (output_nc, output_nc, 3, 3), jnp.float32),
        "wres": 0.1 * jax.random.normal(k[3], (output_nc, 2 * output_nc, 1, 1), jnp.float32),
    }
    # eval-mode BatchNorm folded to per-channel scale/shift, 3 norm layers
    gamma = 1.0 + 0.1 * jax.random.normal(k[4], (3, output_nc), jnp.float32)
    beta = 0.1 * jax.random.normal(k[5], (3, output_nc), jnp.float32)
    rmean = 0.1 * jax.random.normal(k[6], (3, output_nc), jnp.float32)
    rvar = jax.random.uniform(k[7], (3, output_nc), jnp.float32, 0.5, 1.5)
    scale = gamma / jnp.sqrt(rvar + 1e-5)
    params["bn_scale"] = scale
    params["bn_shift"] = beta - rmean * scale
    return params


if __name__ == "__main__":
    N, input_nc, output_nc, H, W = 2, 8, 8, 8, 8

    key = jax.random.PRNGKey(0)
    kp, kx, ks = jax.random.split(key, 3)
    params = make_params(kp, input_nc, output_nc)

    x = jax.random.normal(kx, (N, input_nc, H, W), jnp.float32)            # NCHW
    skip = jax.random.normal(ks, (N, output_nc, 2 * H, 2 * W), jnp.float32)

    out = unet_decoder_block_res_pallas(x, skip, params)
    out = jax.block_until_ready(out)
    assert out.shape == (N, output_nc, 2 * H, 2 * W)

    ref = jax.block_until_ready(reference(x, skip, params))
    err = float(jnp.max(jnp.abs(out - ref)))
    # bf16 matmul operands (f32 accumulation): allow a few 1e-2 of absolute error.
    assert err < 7.5e-2, f"mismatch vs reference: max abs err = {err}"

    print("KERNEL_OK")
</pallas_src>

<mosaic_0001>
module attributes {stable_mosaic.version = 11 : i64} {
  func.func @_decoder_block_kernel(%arg0: i32, %arg1: memref<1x10x10x8xbf16, #tpu.memory_space<vmem>>, %arg2: memref<1x10x10x32xbf16, #tpu.memory_space<vmem>>, %arg3: memref<72x32xbf16, #tpu.memory_space<vmem>>, %arg4: memref<256x32xbf16, #tpu.memory_space<vmem>>, %arg5: memref<128x32xbf16, #tpu.memory_space<vmem>>, %arg6: memref<64x32xbf16, #tpu.memory_space<vmem>>, %arg7: memref<3x32xf32, #tpu.memory_space<vmem>>, %arg8: memref<3x32xf32, #tpu.memory_space<vmem>>, %arg9: memref<1x8x8x32xf32, #tpu.memory_space<vmem>>, %arg10: memref<10x10x32xbf16, #tpu.memory_space<vmem>>, %arg11: memref<10x10x32xbf16, #tpu.memory_space<vmem>>) attributes {dimension_semantics = [#tpu.dimension_semantics<parallel>], iteration_bounds = array<i64: 2>, scalar_prefetch = 0 : i64, scratch_operands = 2 : i64, tpu.core_type = #tpu.core_type<tc>, window_params = [{transform_indices = @transform_0, window_bounds = array<i64: 1, 10, 10, 8>}, {transform_indices = @transform_1, window_bounds = array<i64: 1, 10, 10, 32>}, {pipeline_mode = #tpu.pipeline_mode<synchronous>, transform_indices = @transform_2, window_bounds = array<i64: 72, 32>}, {pipeline_mode = #tpu.pipeline_mode<synchronous>, transform_indices = @transform_3, window_bounds = array<i64: 256, 32>}, {pipeline_mode = #tpu.pipeline_mode<synchronous>, transform_indices = @transform_4, window_bounds = array<i64: 128, 32>}, {pipeline_mode = #tpu.pipeline_mode<synchronous>, transform_indices = @transform_5, window_bounds = array<i64: 64, 32>}, {pipeline_mode = #tpu.pipeline_mode<synchronous>, transform_indices = @transform_6, window_bounds = array<i64: 3, 32>}, {pipeline_mode = #tpu.pipeline_mode<synchronous>, transform_indices = @transform_7, window_bounds = array<i64: 3, 32>}, {transform_indices = @transform_8, window_bounds = array<i64: 1, 8, 8, 32>}]} {
    %cst = arith.constant 0.000000e+00 : bf16
    %0 = vector.broadcast %cst : bf16 to vector<1x10x32xbf16>
    %cst_0 = arith.constant 0.000000e+00 : bf16
    %1 = vector.broadcast %cst_0 : bf16 to vector<10x1x32xbf16>
    %c0 = arith.constant 0 : index
    %c0_1 = arith.constant 0 : index
    %c0_2 = arith.constant 0 : index
    %2 = vector.load %arg10[%c0, %c0_1, %c0_2] : memref<10x10x32xbf16, #tpu.memory_space<vmem>>, vector<1x10x32xbf16>
    tpu.vector_store %arg10[%c0, %c0_1, %c0_2], %0 {strides = array<i32>} : memref<10x10x32xbf16, #tpu.memory_space<vmem>>, vector<1x10x32xbf16>,
    %c9 = arith.constant 9 : index
    %c0_3 = arith.constant 0 : index
    %c0_4 = arith.constant 0 : index
    %3 = vector.load %arg10[%c9, %c0_3, %c0_4] : memref<10x10x32xbf16, #tpu.memory_space<vmem>>, vector<1x10x32xbf16>
    tpu.vector_store %arg10[%c9, %c0_3, %c0_4], %0 {strides = array<i32>} : memref<10x10x32xbf16, #tpu.memory_space<vmem>>, vector<1x10x32xbf16>,
    %c0_5 = arith.constant 0 : index
    %c0_6 = arith.constant 0 : index
    %c0_7 = arith.constant 0 : index
    %4 = vector.load %arg10[%c0_5, %c0_6, %c0_7] : memref<10x10x32xbf16, #tpu.memory_space<vmem>>, vector<10x1x32xbf16>
    tpu.vector_store %arg10[%c0_5, %c0_6, %c0_7], %1 {strides = array<i32>} : memref<10x10x32xbf16, #tpu.memory_space<vmem>>, vector<10x1x32xbf16>,
    %c0_8 = arith.constant 0 : index
    %c9_9 = arith.constant 9 : index
    %c0_10 = arith.constant 0 : index
    %5 = vector.load %arg10[%c0_8, %c9_9, %c0_10] : memref<10x10x32xbf16, #tpu.memory_space<vmem>>, vector<10x1x32xbf16>
    tpu.vector_store %arg10[%c0_8, %c9_9, %c0_10], %1 {strides = array<i32>} : memref<10x10x32xbf16, #tpu.memory_space<vmem>>, vector<10x1x32xbf16>,
    %c0_11 = arith.constant 0 : index
    %c0_12 = arith.constant 0 : index
    %c0_13 = arith.constant 0 : index
    %6 = vector.load %arg11[%c0_11, %c0_12, %c0_13] : memref<10x10x32xbf16, #tpu.memory_space<vmem>>, vector<1x10x32xbf16>
    tpu.vector_store %arg11[%c0_11, %c0_12, %c0_13], %0 {strides = array<i32>} : memref<10x10x32xbf16, #tpu.memory_space<vmem>>, vector<1x10x32xbf16>,
    %c9_14 = arith.constant 9 : index
    %c0_15 = arith.constant 0 : index
    %c0_16 = arith.constant 0 : index
    %7 = vector.load %arg11[%c9_14, %c0_15, %c0_16] : memref<10x10x32xbf16, #tpu.memory_space<vmem>>, vector<1x10x32xbf16>
    tpu.vector_store %arg11[%c9_14, %c0_15, %c0_16], %0 {strides = array<i32>} : memref<10x10x32xbf16, #tpu.memory_space<vmem>>, vector<1x10x32xbf16>,
    %c0_17 = arith.constant 0 : index
    %c0_18 = arith.constant 0 : index
    %c0_19 = arith.constant 0 : index
    %8 = vector.load %arg11[%c0_17, %c0_18, %c0_19] : memref<10x10x32xbf16, #tpu.memory_space<vmem>>, vector<10x1x32xbf16>
    tpu.vector_store %arg11[%c0_17, %c0_18, %c0_19], %1 {strides = array<i32>} : memref<10x10x32xbf16, #tpu.memory_space<vmem>>, vector<10x1x32xbf16>,
    %c0_20 = arith.constant 0 : index
    %c9_21 = arith.constant 9 : index
    %c0_22 = arith.constant 0 : index
    %9 = vector.load %arg11[%c0_20, %c9_21, %c0_22] : memref<10x10x32xbf16, #tpu.memory_space<vmem>>, vector<10x1x32xbf16>
    tpu.vector_store %arg11[%c0_20, %c9_21, %c0_22], %1 {strides = array<i32>} : memref<10x10x32xbf16, #tpu.memory_space<vmem>>, vector<10x1x32xbf16>,
    %c0_23 = arith.constant 0 : index
    %c0_24 = arith.constant 0 : index
    %c0_25 = arith.constant 0 : index
    %c0_26 = arith.constant 0 : index
    %10 = vector.load %arg1[%c0_23, %c0_24, %c0_25, %c0_26] : memref<1x10x10x8xbf16, #tpu.memory_space<vmem>>, vector<1x8x8x8xbf16>
    %11 = vector.shape_cast %10 : vector<1x8x8x8xbf16> to vector<8x8x8xbf16>
    %c0_27 = arith.constant 0 : index
    %c0_28 = arith.constant 0 : index
    %c1 = arith.constant 1 : index
    %c0_29 = arith.constant 0 : index
    %12 = vector.load %arg1[%c0_27, %c0_28, %c1, %c0_29] : memref<1x10x10x8xbf16, #tpu.memory_space<vmem>>, vector<1x8x8x8xbf16>
    %13 = vector.shape_cast %12 : vector<1x8x8x8xbf16> to vector<8x8x8xbf16>
    %c0_30 = arith.constant 0 : index
    %c0_31 = arith.constant 0 : index
    %c2 = arith.constant 2 : index
    %c0_32 = arith.constant 0 : index
    %14 = vector.load %arg1[%c0_30, %c0_31, %c2, %c0_32] : memref<1x10x10x8xbf16, #tpu.memory_space<vmem>>, vector<1x8x8x8xbf16>
    %15 = vector.shape_cast %14 : vector<1x8x8x8xbf16> to vector<8x8x8xbf16>
    %c0_33 = arith.constant 0 : index
    %c1_34 = arith.constant 1 : index
    %c0_35 = arith.constant 0 : index
    %c0_36 = arith.constant 0 : index
    %16 = vector.load %arg1[%c0_33, %c1_34, %c0_35, %c0_36] : memref<1x10x10x8xbf16, #tpu.memory_space<vmem>>, vector<1x8x8x8xbf16>
    %17 = vector.shape_cast %16 : vector<1x8x8x8xbf16> to vector<8x8x8xbf16>
    %c0_37 = arith.constant 0 : index
    %c1_38 = arith.constant 1 : index
    %c1_39 = arith.constant 1 : index
    %c0_40 = arith.constant 0 : index
    %18 = vector.load %arg1[%c0_37, %c1_38, %c1_39, %c0_40] : memref<1x10x10x8xbf16, #tpu.memory_space<vmem>>, vector<1x8x8x8xbf16>
    %19 = vector.shape_cast %18 : vector<1x8x8x8xbf16> to vector<8x8x8xbf16>
    %c0_41 = arith.constant 0 : index
    %c1_42 = arith.constant 1 : index
    %c2_43 = arith.constant 2 : index
    %c0_44 = arith.constant 0 : index
    %20 = vector.load %arg1[%c0_41, %c1_42, %c2_43, %c0_44] : memref<1x10x10x8xbf16, #tpu.memory_space<vmem>>, vector<1x8x8x8xbf16>
    %21 = vector.shape_cast %20 : vector<1x8x8x8xbf16> to vector<8x8x8xbf16>
    %c0_45 = arith.constant 0 : index
    %c2_46 = arith.constant 2 : index
    %c0_47 = arith.constant 0 : index
    %c0_48 = arith.constant 0 : index
    %22 = vector.load %arg1[%c0_45, %c2_46, %c0_47, %c0_48] : memref<1x10x10x8xbf16, #tpu.memory_space<vmem>>, vector<1x8x8x8xbf16>
    %23 = vector.shape_cast %22 : vector<1x8x8x8xbf16> to vector<8x8x8xbf16>
    %c0_49 = arith.constant 0 : index
    %c2_50 = arith.constant 2 : index
    %c1_51 = arith.constant 1 : index
    %c0_52 = arith.constant 0 : index
    %24 = vector.load %arg1[%c0_49, %c2_50, %c1_51, %c0_52] : memref<1x10x10x8xbf16, #tpu.memory_space<vmem>>, vector<1x8x8x8xbf16>
    %25 = vector.shape_cast %24 : vector<1x8x8x8xbf16> to vector<8x8x8xbf16>
    %c0_53 = arith.constant 0 : index
    %c2_54 = arith.constant 2 : index
    %c2_55 = arith.constant 2 : index
    %c0_56 = arith.constant 0 : index
    %26 = vector.load %arg1[%c0_53, %c2_54, %c2_55, %c0_56] : memref<1x10x10x8xbf16, #tpu.memory_space<vmem>>, vector<1x8x8x8xbf16>
    %27 = vector.shape_cast %26 : vector<1x8x8x8xbf16> to vector<8x8x8xbf16>
    %28 = tpu.concatenate %11, %13, %15, %17, %19, %21, %23, %25, %27 in 2 : vector<8x8x8xbf16>, vector<8x8x8xbf16>, vector<8x8x8xbf16>, vector<8x8x8xbf16>, vector<8x8x8xbf16>, vector<8x8x8xbf16>, vector<8x8x8xbf16>, vector<8x8x8xbf16>, vector<8x8x8xbf16> -> vector<8x8x72xbf16>
    %29 = vector.shape_cast %28 : vector<8x8x72xbf16> to vector<64x72xbf16>
    %c0_57 = arith.constant 0 : index
    %c0_58 = arith.constant 0 : index
    %30 = vector.load %arg3[%c0_57, %c0_58] : memref<72x32xbf16, #tpu.memory_space<vmem>>, vector<72x32xbf16>
    %cst_59 = arith.constant dense<0.000000e+00> : vector<64x32xf32>
    %31 = tpu.matmul %29, %30, %cst_59 {dimension_numbers = #tpu.dot_dimension_numbers<[1], [0], [0], [1], [0, 0, 1, 1], [], []>} : vector<64x72xbf16>, vector<72x32xbf16>, vector<64x32xf32> -> vector<64x32xf32>
    %c0_60 = arith.constant 0 : index
    %c0_61 = arith.constant 0 : index
    %32 = vector.load %arg7[%c0_60, %c0_61] : memref<3x32xf32, #tpu.memory_space<vmem>>, vector<1x32xf32>
    %33 = vector.broadcast %32 : vector<1x32xf32> to vector<64x32xf32>
    %34 = arith.mulf %31, %33 : vector<64x32xf32>
    %c0_62 = arith.constant 0 : index
    %c0_63 = arith.constant 0 : index
    %35 = vector.load %arg8[%c0_62, %c0_63] : memref<3x32xf32, #tpu.memory_space<vmem>>, vector<1x32xf32>
    %36 = vector.broadcast %35 : vector<1x32xf32> to vector<64x32xf32>
    %37 = arith.addf %34, %36 : vector<64x32xf32>
    %38 = vector.shape_cast %37 : vector<64x32xf32> to vector<8x8x32xf32>
    %39 = arith.truncf %38 : vector<8x8x32xf32> to vector<8x8x32xbf16>
    %c1_64 = arith.constant 1 : index
    %c1_65 = arith.constant 1 : index
    %c0_66 = arith.constant 0 : index
    %40 = vector.load %arg10[%c1_64, %c1_65, %c0_66] : memref<10x10x32xbf16, #tpu.memory_space<vmem>>, vector<8x8x32xbf16>
    tpu.vector_store %arg10[%c1_64, %c1_65, %c0_66], %39 {strides = array<i32>} : memref<10x10x32xbf16, #tpu.memory_space<vmem>>, vector<8x8x32xbf16>,
    %c0_67 = arith.constant 0 : index
    %c0_68 = arith.constant 0 : index
    %c0_69 = arith.constant 0 : index
    %c0_70 = arith.constant 0 : index
    %41 = vector.load %arg2[%c0_67, %c0_68, %c0_69, %c0_70] : memref<1x10x10x32xbf16, #tpu.memory_space<vmem>>, vector<1x8x8x32xbf16>
    %42 = vector.shape_cast %41 : vector<1x8x8x32xbf16> to vector<8x8x32xbf16>
    %c0_71 = arith.constant 0 : index
    %c0_72 = arith.constant 0 : index
    %c0_73 = arith.constant 0 : index
    %43 = vector.load %arg10[%c0_71, %c0_72, %c0_73] : memref<10x10x32xbf16, #tpu.memory_space<vmem>>, vector<8x8x32xbf16>
    %c0_74 = arith.constant 0 : index
    %c0_75 = arith.constant 0 : index
    %c1_76 = arith.constant 1 : index
    %c0_77 = arith.constant 0 : index
    %44 = vector.load %arg2[%c0_74, %c0_75, %c1_76, %c0_77] : memref<1x10x10x32xbf16, #tpu.memory_space<vmem>>, vector<1x8x8x32xbf16>
    %45 = vector.shape_cast %44 : vector<1x8x8x32xbf16> to vector<8x8x32xbf16>
    %c0_78 = arith.constant 0 : index
    %c1_79 = arith.constant 1 : index
    %c0_80 = arith.constant 0 : index
    %46 = vector.load %arg10[%c0_78, %c1_79, %c0_80] : memref<10x10x32xbf16, #tpu.memory_space<vmem>>, vector<8x8x32xbf16>
    %c0_81 = arith.constant 0 : index
    %c0_82 = arith.constant 0 : index
    %c2_83 = arith.constant 2 : index
    %c0_84 = arith.constant 0 : index
    %47 = vector.load %arg2[%c0_81, %c0_82, %c2_83, %c0_84] : memref<1x10x10x32xbf16, #tpu.memory_space<vmem>>, vector<1x8x8x32xbf16>
    %48 = vector.shape_cast %47 : vector<1x8x8x32xbf16> to vector<8x8x32xbf16>
    %c0_85 = arith.constant 0 : index
    %c2_86 = arith.constant 2 : index
    %c0_87 = arith.constant 0 : index
    %49 = vector.load %arg10[%c0_85, %c2_86, %c0_87] : memref<10x10x32xbf16, #tpu.memory_space<vmem>>, vector<8x8x32xbf16>
    %c0_88 = arith.constant 0 : index
    %c1_89 = arith.constant 1 : index
    %c0_90 = arith.constant 0 : index
    %c0_91 = arith.constant 0 : index
    %50 = vector.load %arg2[%c0_88, %c1_89, %c0_90, %c0_91] : memref<1x10x10x32xbf16, #tpu.memory_space<vmem>>, vector<1x8x8x32xbf16>
    %51 = vector.shape_cast %50 : vector<1x8x8x32xbf16> to vector<8x8x32xbf16>
    %c1_92 = arith.constant 1 : index
    %c0_93 = arith.constant 0 : index
    %c0_94 = arith.constant 0 : index
    %52 = vector.load %arg10[%c1_92, %c0_93, %c0_94] : memref<10x10x32xbf16, #tpu.memory_space<vmem>>, vector<8x8x32xbf16>
    %c0_95 = arith.constant 0 : index
    %c1_96 = arith.constant 1 : index
    %c1_97 = arith.constant 1 : index
    %c0_98 = arith.constant 0 : index
    %53 = vector.load %arg2[%c0_95, %c1_96, %c1_97, %c0_98] : memref<1x10x10x32xbf16, #tpu.memory_space<vmem>>, vector<1x8x8x32xbf16>
    %54 = vector.shape_cast %53 : vector<1x8x8x32xbf16> to vector<8x8x32xbf16>
    %c1_99 = arith.constant 1 : index
    %c1_100 = arith.constant 1 : index
    %c0_101 = arith.constant 0 : index
    %55 = vector.load %arg10[%c1_99, %c1_100, %c0_101] : memref<10x10x32xbf16, #tpu.memory_space<vmem>>, vector<8x8x32xbf16>
    %c0_102 = arith.constant 0 : index
    %c1_103 = arith.constant 1 : index
    %c2_104 = arith.constant 2 : index
    %c0_105 = arith.constant 0 : index
    %56 = vector.load %arg2[%c0_102, %c1_103, %c2_104, %c0_105] : memref<1x10x10x32xbf16, #tpu.memory_space<vmem>>, vector<1x8x8x32xbf16>
    %57 = vector.shape_cast %56 : vector<1x8x8x32xbf16> to vector<8x8x32xbf16>
    %c1_106 = arith.constant 1 : index
    %c2_107 = arith.constant 2 : index
    %c0_108 = arith.constant 0 : index
    %58 = vector.load %arg10[%c1_106, %c2_107, %c0_108] : memref<10x10x32xbf16, #tpu.memory_space<vmem>>, vector<8x8x32xbf16>
    %c0_109 = arith.constant 0 : index
    %c2_110 = arith.constant 2 : index
    %c0_111 = arith.constant 0 : index
    %c0_112 = arith.constant 0 : index
    %59 = vector.load %arg2[%c0_109, %c2_110, %c0_111, %c0_112] : memref<1x10x10x32xbf16, #tpu.memory_space<vmem>>, vector<1x8x8x32xbf16>
    %60 = vector.shape_cast %59 : vector<1x8x8x32xbf16> to vector<8x8x32xbf16>
    %c2_113 = arith.constant 2 : index
    %c0_114 = arith.constant 0 : index
    %c0_115 = arith.constant 0 : index
    %61 = vector.load %arg10[%c2_113, %c0_114, %c0_115] : memref<10x10x32xbf16, #tpu.memory_space<vmem>>, vector<8x8x32xbf16>
    %c0_116 = arith.constant 0 : index
    %c2_117 = arith.constant 2 : index
    %c1_118 = arith.constant 1 : index
    %c0_119 = arith.constant 0 : index
    %62 = vector.load %arg2[%c0_116, %c2_117, %c1_118, %c0_119] : memref<1x10x10x32xbf16, #tpu.memory_space<vmem>>, vector<1x8x8x32xbf16>
    %63 = vector.shape_cast %62 : vector<1x8x8x32xbf16> to vector<8x8x32xbf16>
    %c2_120 = arith.constant 2 : index
    %c1_121 = arith.constant 1 : index
    %c0_122 = arith.constant 0 : index
    %64 = vector.load %arg10[%c2_120, %c1_121, %c0_122] : memref<10x10x32xbf16, #tpu.memory_space<vmem>>, vector<8x8x32xbf16>
    %c0_123 = arith.constant 0 : index
    %c2_124 = arith.constant 2 : index
    %c2_125 = arith.constant 2 : index
    %c0_126 = arith.constant 0 : index
    %65 = vector.load %arg2[%c0_123, %c2_124, %c2_125, %c0_126] : memref<1x10x10x32xbf16, #tpu.memory_space<vmem>>, vector<1x8x8x32xbf16>
    %66 = vector.shape_cast %65 : vector<1x8x8x32xbf16> to vector<8x8x32xbf16>
    %c2_127 = arith.constant 2 : index
    %c2_128 = arith.constant 2 : index
    %c0_129 = arith.constant 0 : index
    %67 = vector.load %arg10[%c2_127, %c2_128, %c0_129] : memref<10x10x32xbf16, #tpu.memory_space<vmem>>, vector<8x8x32xbf16>
    %68 = vector.extract_strided_slice %42 {offsets = [0, 0, 24], sizes = [8, 8, 8], strides = [1, 1, 1]} : vector<8x8x32xbf16> to vector<8x8x8xbf16>
    %69 = vector.extract_strided_slice %43 {offsets = [0, 0, 24], sizes = [8, 8, 8], strides = [1, 1, 1]} : vector<8x8x32xbf16> to vector<8x8x8xbf16>
    %70 = vector.extract_strided_slice %45 {offsets = [0, 0, 16], sizes = [8, 8, 8], strides = [1, 1, 1]} : vector<8x8x32xbf16> to vector<8x8x8xbf16>
    %71 = vector.extract_strided_slice %46 {offsets = [0, 0, 16], sizes = [8, 8, 8], strides = [1, 1, 1]} : vector<8x8x32xbf16> to vector<8x8x8xbf16>
    %72 = vector.extract_strided_slice %45 {offsets = [0, 0, 24], sizes = [8, 8, 8], strides = [1, 1, 1]} : vector<8x8x32xbf16> to vector<8x8x8xbf16>
    %73 = vector.extract_strided_slice %46 {offsets = [0, 0, 24], sizes = [8, 8, 8], strides = [1, 1, 1]} : vector<8x8x32xbf16> to vector<8x8x8xbf16>
    %74 = vector.extract_strided_slice %48 {offsets = [0, 0, 16], sizes = [8, 8, 8], strides = [1, 1, 1]} : vector<8x8x32xbf16> to vector<8x8x8xbf16>
    %75 = vector.extract_strided_slice %49 {offsets = [0, 0, 16], sizes = [8, 8, 8], strides = [1, 1, 1]} : vector<8x8x32xbf16> to vector<8x8x8xbf16>
    %76 = vector.extract_strided_slice %51 {offsets = [0, 0, 8], sizes = [8, 8, 8], strides = [1, 1, 1]} : vector<8x8x32xbf16> to vector<8x8x8xbf16>
    %77 = vector.extract_strided_slice %52 {offsets = [0, 0, 8], sizes = [8, 8, 8], strides = [1, 1, 1]} : vector<8x8x32xbf16> to vector<8x8x8xbf16>
    %78 = vector.extract_strided_slice %54 {offsets = [0, 0, 0], sizes = [8, 8, 8], strides = [1, 1, 1]} : vector<8x8x32xbf16> to vector<8x8x8xbf16>
    %79 = vector.extract_strided_slice %55 {offsets = [0, 0, 0], sizes = [8, 8, 8], strides = [1, 1, 1]} : vector<8x8x32xbf16> to vector<8x8x8xbf16>
    %80 = vector.extract_strided_slice %54 {offsets = [0, 0, 8], sizes = [8, 8, 8], strides = [1, 1, 1]} : vector<8x8x32xbf16> to vector<8x8x8xbf16>
    %81 = vector.extract_strided_slice %55 {offsets = [0, 0, 8], sizes = [8, 8, 8], strides = [1, 1, 1]} : vector<8x8x32xbf16> to vector<8x8x8xbf16>
    %82 = vector.extract_strided_slice %57 {offsets = [0, 0, 0], sizes = [8, 8, 8], strides = [1, 1, 1]} : vector<8x8x32xbf16> to vector<8x8x8xbf16>
    %83 = vector.extract_strided_slice %58 {offsets = [0, 0, 0], sizes = [8, 8, 8], strides = [1, 1, 1]} : vector<8x8x32xbf16> to vector<8x8x8xbf16>
    %84 = vector.extract_strided_slice %51 {offsets = [0, 0, 24], sizes = [8, 8, 8], strides = [1, 1, 1]} : vector<8x8x32xbf16> to vector<8x8x8xbf16>
    %85 = vector.extract_strided_slice %52 {offsets = [0, 0, 24], sizes = [8, 8, 8], strides = [1, 1, 1]} : vector<8x8x32xbf16> to vector<8x8x8xbf16>
    %86 = vector.extract_strided_slice %54 {offsets = [0, 0, 16], sizes = [8, 8, 8], strides = [1, 1, 1]} : vector<8x8x32xbf16> to vector<8x8x8xbf16>
    %87 = vector.extract_strided_slice %55 {offsets = [0, 0, 16], sizes = [8, 8, 8], strides = [1, 1, 1]} : vector<8x8x32xbf16> to vector<8x8x8xbf16>
    %88 = vector.extract_strided_slice %54 {offsets = [0, 0, 24], sizes = [8, 8, 8], strides = [1, 1, 1]} : vector<8x8x32xbf16> to vector<8x8x8xbf16>
    %89 = vector.extract_strided_slice %55 {offsets = [0, 0, 24], sizes = [8, 8, 8], strides = [1, 1, 1]} : vector<8x8x32xbf16> to vector<8x8x8xbf16>
    %90 = vector.extract_strided_slice %57 {offsets = [0, 0, 16], sizes = [8, 8, 8], strides = [1, 1, 1]} : vector<8x8x32xbf16> to vector<8x8x8xbf16>
    %91 = vector.extract_strided_slice %58 {offsets = [0, 0, 16], sizes = [8, 8, 8], strides = [1, 1, 1]} : vector<8x8x32xbf16> to vector<8x8x8xbf16>
    %92 = vector.extract_strided_slice %60 {offsets = [0, 0, 8], sizes = [8, 8, 8], strides = [1, 1, 1]} : vector<8x8x32xbf16> to vector<8x8x8xbf16>
    %93 = vector.extract_strided_slice %61 {offsets = [0, 0, 8], sizes = [8, 8, 8], strides = [1, 1, 1]} : vector<8x8x32xbf16> to vector<8x8x8xbf16>
    %94 = vector.extract_strided_slice %63 {offsets = [0, 0, 0], sizes = [8, 8, 8], strides = [1, 1, 1]} : vector<8x8x32xbf16> to vector<8x8x8xbf16>
    %95 = vector.extract_strided_slice %64 {offsets = [0, 0, 0], sizes = [8, 8, 8], strides = [1, 1, 1]} : vector<8x8x32xbf16> to vector<8x8x8xbf16>
    %96 = vector.extract_strided_slice %63 {offsets = [0, 0, 8], sizes = [8, 8, 8], strides = [1, 1, 1]} : vector<8x8x32xbf16> to vector<8x8x8xbf16>
    %97 = vector.extract_strided_slice %64 {offsets = [0, 0, 8], sizes = [8, 8, 8], strides = [1, 1, 1]} : vector<8x8x32xbf16> to vector<8x8x8xbf16>
    %98 = vector.extract_strided_slice %66 {offsets = [0, 0, 0], sizes = [8, 8, 8], strides = [1, 1, 1]} : vector<8x8x32xbf16> to vector<8x8x8xbf16>
    %99 = vector.extract_strided_slice %67 {offsets = [0, 0, 0], sizes = [8, 8, 8], strides = [1, 1, 1]} : vector<8x8x32xbf16> to vector<8x8x8xbf16>
    %100 = tpu.concatenate %68, %69, %70, %71, %72, %73, %74, %75, %76, %77, %78, %79, %80, %81, %82, %83 in 2 : vector<8x8x8xbf16>, vector<8x8x8xbf16>, vector<8x8x8xbf16>, vector<8x8x8xbf16>, vector<8x8x8xbf16>, vector<8x8x8xbf16>, vector<8x8x8xbf16>, vector<8x8x8xbf16>, vector<8x8x8xbf16>, vector<8x8x8xbf16>, vector<8x8x8xbf16>, vector<8x8x8xbf16>, vector<8x8x8xbf16>, vector<8x8x8xbf16>, vector<8x8x8xbf16>, vector<8x8x8xbf16> -> vector<8x8x128xbf16>
    %101 = tpu.concatenate %84, %85, %86, %87, %88, %89, %90, %91, %92, %93, %94, %95, %96, %97, %98, %99 in 2 : vector<8x8x8xbf16>, vector<8x8x8xbf16>, vector<8x8x8xbf16>, vector<8x8x8xbf16>, vector<8x8x8xbf16>, vector<8x8x8xbf16>, vector<8x8x8xbf16>, vector<8x8x8xbf16>, vector<8x8x8xbf16>, vector<8x8x8xbf16>, vector<8x8x8xbf16>, vector<8x8x8xbf16>, vector<8x8x8xbf16>, vector<8x8x8xbf16>, vector<8x8x8xbf16>, vector<8x8x8xbf16> -> vector<8x8x128xbf16>
    %102 = tpu.concatenate %100, %101 in 2 : vector<8x8x128xbf16>, vector<8x8x128xbf16> -> vector<8x8x256xbf16>
    %103 = vector.shape_cast %102 : vector<8x8x256xbf16> to vector<64x256xbf16>
    %c0_130 = arith.constant 0 : index
    %c0_131 = arith.constant 0 : index
    %104 = vector.load %arg4[%c0_130, %c0_131] : memref<256x32xbf16, #tpu.memory_space<vmem>>, vector<256x32xbf16>
    %cst_132 = arith.constant dense<0.000000e+00> : vector<64x32xf32>
    %105 = tpu.matmul %103, %104, %cst_132 {dimension_numbers = #tpu.dot_dimension_numbers<[1], [0], [0], [1], [0, 0, 1, 1], [], []>} : vector<64x256xbf16>, vector<256x32xbf16>, vector<64x32xf32> -> vector<64x32xf32>
    %c1_133 = arith.constant 1 : index
    %c0_134 = arith.constant 0 : index
    %106 = vector.load %arg7[%c1_133, %c0_134] : memref<3x32xf32, #tpu.memory_space<vmem>>, vector<1x32xf32>
    %107 = vector.broadcast %106 : vector<1x32xf32> to vector<64x32xf32>
    %108 = arith.mulf %105, %107 : vector<64x32xf32>
    %c1_135 = arith.constant 1 : index
    %c0_136 = arith.constant 0 : index
    %109 = vector.load %arg8[%c1_135, %c0_136] : memref<3x32xf32, #tpu.memory_space<vmem>>, vector<1x32xf32>
    %110 = vector.broadcast %109 : vector<1x32xf32> to vector<64x32xf32>
    %111 = arith.addf %108, %110 : vector<64x32xf32>
    %cst_137 = arith.constant 0.000000e+00 : f32
    %112 = vector.broadcast %cst_137 : f32 to vector<64x32xf32>
    %113 = arith.cmpf oge, %111, %112 : vector<64x32xf32>
    %cst_138 = arith.constant 2.000000e-01 : f32
    %114 = vector.broadcast %cst_138 : f32 to vector<64x32xf32>
    %115 = arith.mulf %114, %111 : vector<64x32xf32>
    %116 = arith.select %113, %111, %115 : vector<64x32xi1>, vector<64x32xf32>
    %117 = vector.shape_cast %116 : vector<64x32xf32> to vector<8x8x32xf32>
    %118 = arith.truncf %117 : vector<8x8x32xf32> to vector<8x8x32xbf16>
    %c1_139 = arith.constant 1 : index
    %c1_140 = arith.constant 1 : index
    %c0_141 = arith.constant 0 : index
    %119 = vector.load %arg11[%c1_139, %c1_140, %c0_141] : memref<10x10x32xbf16, #tpu.memory_space<vmem>>, vector<8x8x32xbf16>
    tpu.vector_store %arg11[%c1_139, %c1_140, %c0_141], %118 {strides = array<i32>} : memref<10x10x32xbf16, #tpu.memory_space<vmem>>, vector<8x8x32xbf16>,
    %120 = tpu.concatenate %54, %55 in 2 : vector<8x8x32xbf16>, vector<8x8x32xbf16> -> vector<8x8x64xbf16>
    %121 = vector.shape_cast %120 : vector<8x8x64xbf16> to vector<64x64xbf16>
    %c0_142 = arith.constant 0 : index
    %c0_143 = arith.constant 0 : index
    %122 = vector.load %arg6[%c0_142, %c0_143] : memref<64x32xbf16, #tpu.memory_space<vmem>>, vector<64x32xbf16>
    %cst_144 = arith.constant dense<0.000000e+00> : vector<64x32xf32>
    %123 = tpu.matmul %121, %122, %cst_144 {dimension_numbers = #tpu.dot_dimension_numbers<[1], [0], [0], [1], [0, 0, 1, 1], [], []>} : vector<64x64xbf16>, vector<64x32xbf16>, vector<64x32xf32> -> vector<64x32xf32>
    %c0_145 = arith.constant 0 : index
    %c0_146 = arith.constant 0 : index
    %c0_147 = arith.constant 0 : index
    %124 = vector.load %arg11[%c0_145, %c0_146, %c0_147] : memref<10x10x32xbf16, #tpu.memory_space<vmem>>, vector<8x8x32xbf16>
    %c0_148 = arith.constant 0 : index
    %c1_149 = arith.constant 1 : index
    %c0_150 = arith.constant 0 : index
    %125 = vector.load %arg11[%c0_148, %c1_149, %c0_150] : memref<10x10x32xbf16, #tpu.memory_space<vmem>>, vector<8x8x32xbf16>
    %c0_151 = arith.constant 0 : index
    %c2_152 = arith.constant 2 : index
    %c0_153 = arith.constant 0 : index
    %126 = vector.load %arg11[%c0_151, %c2_152, %c0_153] : memref<10x10x32xbf16, #tpu.memory_space<vmem>>, vector<8x8x32xbf16>
    %c1_154 = arith.constant 1 : index
    %c0_155 = arith.constant 0 : index
    %c0_156 = arith.constant 0 : index
    %127 = vector.load %arg11[%c1_154, %c0_155, %c0_156] : memref<10x10x32xbf16, #tpu.memory_space<vmem>>, vector<8x8x32xbf16>
    %c1_157 = arith.constant 1 : index
    %c1_158 = arith.constant 1 : index
    %c0_159 = arith.constant 0 : index
    %128 = vector.load %arg11[%c1_157, %c1_158, %c0_159] : memref<10x10x32xbf16, #tpu.memory_space<vmem>>, vector<8x8x32xbf16>
    %c1_160 = arith.constant 1 : index
    %c2_161 = arith.constant 2 : index
    %c0_162 = arith.constant 0 : index
    %129 = vector.load %arg11[%c1_160, %c2_161, %c0_162] : memref<10x10x32xbf16, #tpu.memory_space<vmem>>, vector<8x8x32xbf16>
    %c2_163 = arith.constant 2 : index
    %c0_164 = arith.constant 0 : index
    %c0_165 = arith.constant 0 : index
    %130 = vector.load %arg11[%c2_163, %c0_164, %c0_165] : memref<10x10x32xbf16, #tpu.memory_space<vmem>>, vector<8x8x32xbf16>
    %c2_166 = arith.constant 2 : index
    %c1_167 = arith.constant 1 : index
    %c0_168 = arith.constant 0 : index
    %131 = vector.load %arg11[%c2_166, %c1_167, %c0_168] : memref<10x10x32xbf16, #tpu.memory_space<vmem>>, vector<8x8x32xbf16>
    %c2_169 = arith.constant 2 : index
    %c2_170 = arith.constant 2 : index
    %c0_171 = arith.constant 0 : index
    %132 = vector.load %arg11[%c2_169, %c2_170, %c0_171] : memref<10x10x32xbf16, #tpu.memory_space<vmem>>, vector<8x8x32xbf16>
    %133 = vector.extract_strided_slice %124 {offsets = [0, 0, 24], sizes = [8, 8, 8], strides = [1, 1, 1]} : vector<8x8x32xbf16> to vector<8x8x8xbf16>
    %134 = vector.extract_strided_slice %125 {offsets = [0, 0, 16], sizes = [8, 8, 8], strides = [1, 1, 1]} : vector<8x8x32xbf16> to vector<8x8x8xbf16>
    %135 = vector.extract_strided_slice %125 {offsets = [0, 0, 24], sizes = [8, 8, 8], strides = [1, 1, 1]} : vector<8x8x32xbf16> to vector<8x8x8xbf16>
    %136 = vector.extract_strided_slice %126 {offsets = [0, 0, 16], sizes = [8, 8, 8], strides = [1, 1, 1]} : vector<8x8x32xbf16> to vector<8x8x8xbf16>
    %137 = vector.extract_strided_slice %127 {offsets = [0, 0, 8], sizes = [8, 8, 8], strides = [1, 1, 1]} : vector<8x8x32xbf16> to vector<8x8x8xbf16>
    %138 = vector.extract_strided_slice %128 {offsets = [0, 0, 0], sizes = [8, 8, 8], strides = [1, 1, 1]} : vector<8x8x32xbf16> to vector<8x8x8xbf16>
    %139 = vector.extract_strided_slice %128 {offsets = [0, 0, 8], sizes = [8, 8, 8], strides = [1, 1, 1]} : vector<8x8x32xbf16> to vector<8x8x8xbf16>
    %140 = vector.extract_strided_slice %129 {offsets = [0, 0, 0], sizes = [8, 8, 8], strides = [1, 1, 1]} : vector<8x8x32xbf16> to vector<8x8x8xbf16>
    %141 = vector.extract_strided_slice %127 {offsets = [0, 0, 24], sizes = [8, 8, 8], strides = [1, 1, 1]} : vector<8x8x32xbf16> to vector<8x8x8xbf16>
    %142 = vector.extract_strided_slice %128 {offsets = [0, 0, 16], sizes = [8, 8, 8], strides = [1, 1, 1]} : vector<8x8x32xbf16> to vector<8x8x8xbf16>
    %143 = vector.extract_strided_slice %128 {offsets = [0, 0, 24], sizes = [8, 8, 8], strides = [1, 1, 1]} : vector<8x8x32xbf16> to vector<8x8x8xbf16>
    %144 = vector.extract_strided_slice %129 {offsets = [0, 0, 16], sizes = [8, 8, 8], strides = [1, 1, 1]} : vector<8x8x32xbf16> to vector<8x8x8xbf16>
    %145 = vector.extract_strided_slice %130 {offsets = [0, 0, 8], sizes = [8, 8, 8], strides = [1, 1, 1]} : vector<8x8x32xbf16> to vector<8x8x8xbf16>
    %146 = vector.extract_strided_slice %131 {offsets = [0, 0, 0], sizes = [8, 8, 8], strides = [1, 1, 1]} : vector<8x8x32xbf16> to vector<8x8x8xbf16>
    %147 = vector.extract_strided_slice %131 {offsets = [0, 0, 8], sizes = [8, 8, 8], strides = [1, 1, 1]} : vector<8x8x32xbf16> to vector<8x8x8xbf16>
    %148 = vector.extract_strided_slice %132 {offsets = [0, 0, 0], sizes = [8, 8, 8], strides = [1, 1, 1]} : vector<8x8x32xbf16> to vector<8x8x8xbf16>
    %149 = tpu.concatenate %133, %134, %135, %136, %137, %138, %139, %140, %141, %142, %143, %144, %145, %146, %147, %148 in 2 : vector<8x8x8xbf16>, vector<8x8x8xbf16>, vector<8x8x8xbf16>, vector<8x8x8xbf16>, vector<8x8x8xbf16>, vector<8x8x8xbf16>, vector<8x8x8xbf16>, vector<8x8x8xbf16>, vector<8x8x8xbf16>, vector<8x8x8xbf16>, vector<8x8x8xbf16>, vector<8x8x8xbf16>, vector<8x8x8xbf16>, vector<8x8x8xbf16>, vector<8x8x8xbf16>, vector<8x8x8xbf16> -> vector<8x8x128xbf16>
    %150 = vector.shape_cast %149 : vector<8x8x128xbf16> to vector<64x128xbf16>
    %c0_172 = arith.constant 0 : index
    %c0_173 = arith.constant 0 : index
    %151 = vector.load %arg5[%c0_172, %c0_173] : memref<128x32xbf16, #tpu.memory_space<vmem>>, vector<128x32xbf16>
    %cst_174 = arith.constant dense<0.000000e+00> : vector<64x32xf32>
    %152 = tpu.matmul %150, %151, %cst_174 {dimension_numbers = #tpu.dot_dimension_numbers<[1], [0], [0], [1], [0, 0, 1, 1], [], []>} : vector<64x128xbf16>, vector<128x32xbf16>, vector<64x32xf32> -> vector<64x32xf32>
    %c2_175 = arith.constant 2 : index
    %c0_176 = arith.constant 0 : index
    %153 = vector.load %arg7[%c2_175, %c0_176] : memref<3x32xf32, #tpu.memory_space<vmem>>, vector<1x32xf32>
    %154 = vector.broadcast %153 : vector<1x32xf32> to vector<64x32xf32>
    %155 = arith.mulf %152, %154 : vector<64x32xf32>
    %c2_177 = arith.constant 2 : index
    %c0_178 = arith.constant 0 : index
    %156 = vector.load %arg8[%c2_177, %c0_178] : memref<3x32xf32, #tpu.memory_space<vmem>>, vector<1x32xf32>
    %157 = vector.broadcast %156 : vector<1x32xf32> to vector<64x32xf32>
    %158 = arith.addf %155, %157 : vector<64x32xf32>
    %cst_179 = arith.constant 0.000000e+00 : f32
    %159 = vector.broadcast %cst_179 : f32 to vector<64x32xf32>
    %160 = arith.cmpf oge, %158, %159 : vector<64x32xf32>
    %cst_180 = arith.constant 2.000000e-01 : f32
    %161 = vector.broadcast %cst_180 : f32 to vector<64x32xf32>
    %162 = arith.mulf %161, %158 : vector<64x32xf32>
    %163 = arith.select %160, %158, %162 : vector<64x32xi1>, vector<64x32xf32>
    %164 = arith.addf %123, %163 : vector<64x32xf32>
    %cst_181 = arith.constant 0.000000e+00 : f32
    %165 = vector.broadcast %cst_181 : f32 to vector<64x32xf32>
    %166 = arith.maximumf %164, %165 : vector<64x32xf32>
    %167 = vector.shape_cast %166 : vector<64x32xf32> to vector<8x8x32xf32>
    %c0_182 = arith.constant 0 : index
    %c0_183 = arith.constant 0 : index
    %c0_184 = arith.constant 0 : index
    %c0_185 = arith.constant 0 : index
    %168 = vector.load %arg9[%c0_182, %c0_183, %c0_184, %c0_185] : memref<1x8x8x32xf32, #tpu.memory_space<vmem>>, vector<1x8x8x32xf32>
    %169 = vector.shape_cast %168 : vector<1x8x8x32xf32> to vector<8x8x32xf32>
    %170 = vector.shape_cast %167 : vector<8x8x32xf32> to vector<1x8x8x32xf32>
    tpu.vector_store %arg9[%c0_182, %c0_183, %c0_184, %c0_185], %170 {strides = array<i32>} : memref<1x8x8x32xf32, #tpu.memory_space<vmem>>, vector<1x8x8x32xf32>,
    return
  }
  func.func @transform_0(%arg0: i32) -> (i32, i32, i32, i32) {
    %c0_i32 = arith.constant 0 : i32
    %c0_i32_0 = arith.constant 0 : i32
    %c0_i32_1 = arith.constant 0 : i32
    %c0_i32_2 = arith.constant 0 : i32
    return %arg0, %c0_i32, %c0_i32_0, %c0_i32_1 : i32, i32, i32, i32
  }
  func.func @transform_1(%arg0: i32) -> (i32, i32, i32, i32) {
    %c0_i32 = arith.constant 0 : i32
    %c0_i32_0 = arith.constant 0 : i32
    %c0_i32_1 = arith.constant 0 : i32
    %c0_i32_2 = arith.constant 0 : i32
    return %arg0, %c0_i32, %c0_i32_0, %c0_i32_1 : i32, i32, i32, i32
  }
  func.func @transform_2(%arg0: i32) -> (i32, i32) {
    %c0_i32 = arith.constant 0 : i32
    %c0_i32_0 = arith.constant 0 : i32
    %c0_i32_1 = arith.constant 0 : i32
    return %c0_i32, %c0_i32_0 : i32, i32
  }
  func.func @transform_3(%arg0: i32) -> (i32, i32) {
    %c0_i32 = arith.constant 0 : i32
    %c0_i32_0 = arith.constant 0 : i32
    %c0_i32_1 = arith.constant 0 : i32
    return %c0_i32, %c0_i32_0 : i32, i32
  }
  func.func @transform_4(%arg0: i32) -> (i32, i32) {
    %c0_i32 = arith.constant 0 : i32
    %c0_i32_0 = arith.constant 0 : i32
    %c0_i32_1 = arith.constant 0 : i32
    return %c0_i32, %c0_i32_0 : i32, i32
  }
  func.func @transform_5(%arg0: i32) -> (i32, i32) {
    %c0_i32 = arith.constant 0 : i32
    %c0_i32_0 = arith.constant 0 : i32
    %c0_i32_1 = arith.constant 0 : i32
    return %c0_i32, %c0_i32_0 : i32, i32
  }
  func.func @transform_6(%arg0: i32) -> (i32, i32) {
    %c0_i32 = arith.constant 0 : i32
    %c0_i32_0 = arith.constant 0 : i32
    %c0_i32_1 = arith.constant 0 : i32
    return %c0_i32, %c0_i32_0 : i32, i32
  }
  func.func @transform_7(%arg0: i32) -> (i32, i32) {
    %c0_i32 = arith.constant 0 : i32
    %c0_i32_0 = arith.constant 0 : i32
    %c0_i32_1 = arith.constant 0 : i32
    return %c0_i32, %c0_i32_0 : i32, i32
  }
  func.func @transform_8(%arg0: i32) -> (i32, i32, i32, i32) {
    %c0_i32 = arith.constant 0 : i32
    %c0_i32_0 = arith.constant 0 : i32
    %c0_i32_1 = arith.constant 0 : i32
    %c0_i32_2 = arith.constant 0 : i32
    return %arg0, %c0_i32, %c0_i32_0, %c0_i32_1 : i32, i32, i32, i32
  }
}

</mosaic_0001>

<llo_original>
// kernel: tpu_custom_call.1
$region0: #{tpu_custom_call.1}
  #allocation0 [shape = 'u32[]', space=smem, size = 0x4, offset = 0x4, fixed_abs, tag = 'smem constant byte address 0x4 - core index']
  #allocation1 [shape = 'u32[72,128]{1,0:T(1,128)}', space=vmem, size = 0x9000, scoped, tag = 'internal scratch']
  #allocation2 [shape = 'bf16[10,10,32]{2,1,0:T(8,128)(2,1)}', space=vmem, size = 0xa000, scoped, tag = 'scratch operand']
  #allocation3 [shape = 'bf16[10,10,32]{2,1,0:T(8,128)(2,1)}', space=vmem, size = 0xa000, scoped, tag = 'scratch operand']
  %s0 = inlined_call_operand.vmem [shape: bf16[2,10,10,8], index: 0, kind: input, shape index: {}]
  %s1 = inlined_call_operand.vmem [shape: bf16[2,10,10,32], index: 1, kind: input, shape index: {}]
  %s2 = inlined_call_operand.vmem [shape: bf16[72,32], index: 2, kind: input, shape index: {}]
  %s3 = inlined_call_operand.vmem [shape: bf16[256,32], index: 3, kind: input, shape index: {}]
  %s4 = inlined_call_operand.vmem [shape: bf16[128,32], index: 4, kind: input, shape index: {}]
  %s5 = inlined_call_operand.vmem [shape: bf16[64,32], index: 5, kind: input, shape index: {}]
  %s6 = inlined_call_operand.vmem [shape: f32[3,32], index: 6, kind: input, shape index: {}]
  %s7 = inlined_call_operand.vmem [shape: f32[3,32], index: 7, kind: input, shape index: {}]
  %s8 = inlined_call_operand.hbm [shape: f32[2,8,8,32], index: 8, kind: output, shape index: {}]
  %s9 = sld [smem:[#allocation0]]
  $region65: #{tpu_custom_call.1} parent=0
    _
  %s11 = ssub.s32 1, %s9
  %s12 = scalar_select 0, %s11, %s9
  $region1: #{tpu_custom_call.1} parent=0
    #allocation4 [shape = 'u8[65536]{0}', space=vmem, size = 0x10000, scoped, tag = 'output window, operand 0']
    #allocation5 [shape = 's32[2]{0}', space=sflag, size = 0x8, scoped, tag = 'scoped memory for tpu_custom_call.1']
    %13 = vsyncpa [#allocation5], 0
    %s14 = scalar_lea.sflag [#allocation5], 1
    %15 = vsyncpa %s14, 0
    loop: start=0, step=1, limit=4
    $region2: #{tpu_custom_call.1} parent=1 // loop_pre_header
      _
    $region3: #{tpu_custom_call.1} parent=1 // loop_header
      %s17 = sphi 0, %s21
      %p18 = scmp.ge.s32.totalorder %s17, 4
      %s27 = sphi 0, %s29
      %s30 = sphi 0, %s27
      %s31 = sphi 0, %s30
      %s47 = sphi 0, %s31
      %s53 = sphi 0, %s55
      %s56 = sphi 0, %s53
      %s57 = sphi 0, %s56
      %s73 = sphi 0, %s57
      %s77 = sphi 0, %s77
      %s79 = sphi 0, %s77
      %s80 = sphi 0, %s79
      %s94 = sphi 0, %s80
      %s98 = sphi 0, %s98
      %s100 = sphi 0, %s98
      %s101 = sphi 0, %s100
      %s115 = sphi 0, %s101
      %s119 = sphi 0, %s119
      %s121 = sphi 0, %s119
      %s122 = sphi 0, %s121
      %s136 = sphi 0, %s122
      %s140 = sphi 0, %s140
      %s142 = sphi 0, %s140
      %s143 = sphi 0, %s142
      %s157 = sphi 0, %s143
      %s161 = sphi 0, %s161
      %s163 = sphi 0, %s161
      %s164 = sphi 0, %s163
      %s178 = sphi 0, %s164
      %s182 = sphi 0, %s182
      %s184 = sphi 0, %s182
      %s185 = sphi 0, %s184
      %s199 = sphi 0, %s185
      %s205 = sphi 0, %s207
      %s208 = sphi 0, %s205
      %s209 = sphi 0, %s208
      %s225 = sphi 0, %s209
    $region4: #{tpu_custom_call.1} parent=1 // loop_header_branch
      %20 = sbr.rel (%p18) target = $region8
    $region5: #{tpu_custom_call.1} parent=1 // loop_body
      %s22 = ssub.s32 %s17, 1
      %s23 = ssub.s32 %s17, 2
      %s24 = sadd.s32 %s17, 1
      %s25 = ssub.s32 %s17, %s24
      %p26 = scmp.eq.s32.totalorder %s25, 0
      %s28 = sadd.s32 %s27, 1
      %s29 = scalar_select %p26, %s27, %s28
      %p32 = pneg %p26
      %p33 = scmp.eq.s32.totalorder %s17, 1
      %p34 = por %p32, %p33
      %p35 = scmp.ne.s32.totalorder %s27, %s30
      %p36 = scmp.eq.s32.totalorder %s17, 0
      %p37 = por %p35, %p36
      %p38 = scmp.ne.s32.totalorder %s27, %s30
      %p39 = scmp.eq.s32.totalorder %s22, 1
      %p40 = por %p38, %p39
      %p41 = scmp.ne.s32.totalorder %s30, %s31
      %p42 = scmp.eq.s32.totalorder %s22, 0
      %p43 = por %p41, %p42
      %p44 = scmp.ne.s32.totalorder %s30, %s31
      %p45 = scmp.eq.s32.totalorder %s23, 1
      %p46 = por %p44, %p45
      %p48 = scmp.ne.s32.totalorder %s31, %s47
      %p49 = scmp.eq.s32.totalorder %s23, 0
      %p50 = por %p48, %p49
      %s51 = ssub.s32 %s17, %s24
      %p52 = scmp.eq.s32.totalorder %s51, 0
      %s54 = sadd.s32 %s53, 1
      %s55 = scalar_select %p52, %s53, %s54
      %p58 = pneg %p52
      %p59 = scmp.eq.s32.totalorder %s17, 1
      %p60 = por %p58, %p59
      %p61 = scmp.ne.s32.totalorder %s53, %s56
      %p62 = scmp.eq.s32.totalorder %s17, 0
      %p63 = por %p61, %p62
      %p64 = scmp.ne.s32.totalorder %s53, %s56
      %p65 = scmp.eq.s32.totalorder %s22, 1
      %p66 = por %p64, %p65
      %p67 = scmp.ne.s32.totalorder %s56, %s57
      %p68 = scmp.eq.s32.totalorder %s22, 0
      %p69 = por %p67, %p68
      %p70 = scmp.ne.s32.totalorder %s56, %s57
      %p71 = scmp.eq.s32.totalorder %s23, 1
      %p72 = por %p70, %p71
      %p74 = scmp.ne.s32.totalorder %s57, %s73
      %p75 = scmp.eq.s32.totalorder %s23, 0
      %p76 = por %p74, %p75
      %s78 = sadd.s32 %s77, 1
      %p81 = scmp.eq.s32.totalorder %s17, 1
      %p82 = scmp.ne.s32.totalorder %s77, %s79
      %p83 = scmp.eq.s32.totalorder %s17, 0
      %p84 = por %p82, %p83
      %p85 = scmp.ne.s32.totalorder %s77, %s79
      %p86 = scmp.eq.s32.totalorder %s22, 1
      %p87 = por %p85, %p86
      %p88 = scmp.ne.s32.totalorder %s79, %s80
      %p89 = scmp.eq.s32.totalorder %s22, 0
      %p90 = por %p88, %p89
      %p91 = scmp.ne.s32.totalorder %s79, %s80
      %p92 = scmp.eq.s32.totalorder %s23, 1
      %p93 = por %p91, %p92
      %p95 = scmp.ne.s32.totalorder %s80, %s94
      %p96 = scmp.eq.s32.totalorder %s23, 0
      %p97 = por %p95, %p96
      %s99 = sadd.s32 %s98, 1
      %p102 = scmp.eq.s32.totalorder %s17, 1
      %p103 = scmp.ne.s32.totalorder %s98, %s100
      %p104 = scmp.eq.s32.totalorder %s17, 0
      %p105 = por %p103, %p104
      %p106 = scmp.ne.s32.totalorder %s98, %s100
      %p107 = scmp.eq.s32.totalorder %s22, 1
      %p108 = por %p106, %p107
      %p109 = scmp.ne.s32.totalorder %s100, %s101
      %p110 = scmp.eq.s32.totalorder %s22, 0
      %p111 = por %p109, %p110
      %p112 = scmp.ne.s32.totalorder %s100, %s101
      %p113 = scmp.eq.s32.totalorder %s23, 1
      %p114 = por %p112, %p113
      %p116 = scmp.ne.s32.totalorder %s101, %s115
      %p117 = scmp.eq.s32.totalorder %s23, 0
      %p118 = por %p116, %p117
      %s120 = sadd.s32 %s119, 1
      %p123 = scmp.eq.s32.totalorder %s17, 1
      %p124 = scmp.ne.s32.totalorder %s119, %s121
      %p125 = scmp.eq.s32.totalorder %s17, 0
      %p126 = por %p124, %p125
      %p127 = scmp.ne.s32.totalorder %s119, %s121
      %p128 = scmp.eq.s32.totalorder %s22, 1
      %p129 = por %p127, %p128
      %p130 = scmp.ne.s32.totalorder %s121, %s122
      %p131 = scmp.eq.s32.totalorder %s22, 0
      %p132 = por %p130, %p131
      %p133 = scmp.ne.s32.totalorder %s121, %s122
      %p134 = scmp.eq.s32.totalorder %s23, 1
      %p135 = por %p133, %p134
      %p137 = scmp.ne.s32.totalorder %s122, %s136
      %p138 = scmp.eq.s32.totalorder %s23, 0
      %p139 = por %p137, %p138
      %s141 = sadd.s32 %s140, 1
      %p144 = scmp.eq.s32.totalorder %s17, 1
      %p145 = scmp.ne.s32.totalorder %s140, %s142
      %p146 = scmp.eq.s32.totalorder %s17, 0
      %p147 = por %p145, %p146
      %p148 = scmp.ne.s32.totalorder %s140, %s142
      %p149 = scmp.eq.s32.totalorder %s22, 1
      %p150 = por %p148, %p149
      %p151 = scmp.ne.s32.totalorder %s142, %s143
      %p152 = scmp.eq.s32.totalorder %s22, 0
      %p153 = por %p151, %p152
      %p154 = scmp.ne.s32.totalorder %s142, %s143
      %p155 = scmp.eq.s32.totalorder %s23, 1
      %p156 = por %p154, %p155
      %p158 = scmp.ne.s32.totalorder %s143, %s157
      %p159 = scmp.eq.s32.totalorder %s23, 0
      %p160 = por %p158, %p159
      %s162 = sadd.s32 %s161, 1
      %p165 = scmp.eq.s32.totalorder %s17, 1
      %p166 = scmp.ne.s32.totalorder %s161, %s163
      %p167 = scmp.eq.s32.totalorder %s17, 0
      %p168 = por %p166, %p167
      %p169 = scmp.ne.s32.totalorder %s161, %s163
      %p170 = scmp.eq.s32.totalorder %s22, 1
      %p171 = por %p169, %p170
      %p172 = scmp.ne.s32.totalorder %s163, %s164
      %p173 = scmp.eq.s32.totalorder %s22, 0
      %p174 = por %p172, %p173
      %p175 = scmp.ne.s32.totalorder %s163, %s164
      %p176 = scmp.eq.s32.totalorder %s23, 1
      %p177 = por %p175, %p176
      %p179 = scmp.ne.s32.totalorder %s164, %s178
      %p180 = scmp.eq.s32.totalorder %s23, 0
      %p181 = por %p179, %p180
      %s183 = sadd.s32 %s182, 1
      %p186 = scmp.eq.s32.totalorder %s17, 1
      %p187 = scmp.ne.s32.totalorder %s182, %s184
      %p188 = scmp.eq.s32.totalorder %s17, 0
      %p189 = por %p187, %p188
      %p190 = scmp.ne.s32.totalorder %s182, %s184
      %p191 = scmp.eq.s32.totalorder %s22, 1
      %p192 = por %p190, %p191
      %p193 = scmp.ne.s32.totalorder %s184, %s185
      %p194 = scmp.eq.s32.totalorder %s22, 0
      %p195 = por %p193, %p194
      %p196 = scmp.ne.s32.totalorder %s184, %s185
      %p197 = scmp.eq.s32.totalorder %s23, 1
      %p198 = por %p196, %p197
      %p200 = scmp.ne.s32.totalorder %s185, %s199
      %p201 = scmp.eq.s32.totalorder %s23, 0
      %p202 = por %p200, %p201
      %s203 = ssub.s32 %s17, %s24
      %p204 = scmp.eq.s32.totalorder %s203, 0
      %s206 = sadd.s32 %s205, 1
      %s207 = scalar_select %p204, %s205, %s206
      %p210 = pneg %p204
      %p211 = scmp.eq.s32.totalorder %s17, 1
      %p212 = por %p210, %p211
      %p213 = scmp.ne.s32.totalorder %s205, %s208
      %p214 = scmp.eq.s32.totalorder %s17, 0
      %p215 = por %p213, %p214
      %p216 = scmp.ne.s32.totalorder %s205, %s208
      %p217 = scmp.eq.s32.totalorder %s22, 1
      %p218 = por %p216, %p217
      %p219 = scmp.ne.s32.totalorder %s208, %s209
      %p220 = scmp.eq.s32.totalorder %s22, 0
      %p221 = por %p219, %p220
      %p222 = scmp.ne.s32.totalorder %s208, %s209
      %p223 = scmp.eq.s32.totalorder %s23, 1
      %p224 = por %p222, %p223
      %p226 = scmp.ne.s32.totalorder %s209, %s225
      %p227 = scmp.eq.s32.totalorder %s23, 0
      %p228 = por %p226, %p227
      %p229 = scmp.le.s32.totalorder 1, %s17
      %p230 = scmp.lt.s32.totalorder %s17, 3
      %p231 = pnand %p229, %p230
      %p232 = pneg %p231
      // Predicated region
      $region9: #{tpu_custom_call.1} parent=5 // pred_check
        _
      $region10: #{tpu_custom_call.1} parent=5 // pred_check_branch
        %234 = sbr.rel (%p231) target = $region12
      $region11: #{tpu_custom_call.1} parent=5 // pred_region
        %s235 = ssub.s32 %s17, 1
        // Predicated region
        $region13: #{tpu_custom_call.1} parent=11 // pred_check
          %p236 = pneg %p90
        $region14: #{tpu_custom_call.1} parent=11 // pred_check_branch
          %238 = sbr.rel (%p236) target = $region16
        $region15: #{tpu_custom_call.1} parent=11 // pred_region
          _
        $region16: #{tpu_custom_call.1} parent=11 // pred_fallthru
          _
        // Predicated region
        $region17: #{tpu_custom_call.1} parent=11 // pred_check
          %p239 = pneg %p111
        $region18: #{tpu_custom_call.1} parent=11 // pred_check_branch
          %241 = sbr.rel (%p239) target = $region20
        $region19: #{tpu_custom_call.1} parent=11 // pred_region
          _
        $region20: #{tpu_custom_call.1} parent=11 // pred_fallthru
          _
        // Predicated region
        $region21: #{tpu_custom_call.1} parent=11 // pred_check
          %p242 = pneg %p132
        $region22: #{tpu_custom_call.1} parent=11 // pred_check_branch
          %244 = sbr.rel (%p242) target = $region24
        $region23: #{tpu_custom_call.1} parent=11 // pred_region
          _
        $region24: #{tpu_custom_call.1} parent=11 // pred_fallthru
          _
        // Predicated region
        $region25: #{tpu_custom_call.1} parent=11 // pred_check
          %p245 = pneg %p153
        $region26: #{tpu_custom_call.1} parent=11 // pred_check_branch
          %247 = sbr.rel (%p245) target = $region28
        $region27: #{tpu_custom_call.1} parent=11 // pred_region
          _
        $region28: #{tpu_custom_call.1} parent=11 // pred_fallthru
          _
        // Predicated region
        $region29: #{tpu_custom_call.1} parent=11 // pred_check
          %p248 = pneg %p174
        $region30: #{tpu_custom_call.1} parent=11 // pred_check_branch
          %250 = sbr.rel (%p248) target = $region32
        $region31: #{tpu_custom_call.1} parent=11 // pred_region
          _
        $region32: #{tpu_custom_call.1} parent=11 // pred_fallthru
          _
        // Predicated region
        $region33: #{tpu_custom_call.1} parent=11 // pred_check
          %p251 = pneg %p195
        $region34: #{tpu_custom_call.1} parent=11 // pred_check_branch
          %253 = sbr.rel (%p251) target = $region36
        $region35: #{tpu_custom_call.1} parent=11 // pred_region
          _
        $region36: #{tpu_custom_call.1} parent=11 // pred_fallthru
          _
      $region12: #{tpu_custom_call.1} parent=5 // pred_fallthru
        _
      %p254 = scmp.lt.s32.totalorder %s17, 2
      // Predicated region
      $region37: #{tpu_custom_call.1} parent=5 // pred_check
        %p255 = pneg %p254
      $region38: #{tpu_custom_call.1} parent=5 // pred_check_branch
        %257 = sbr.rel (%p255) target = $region40
      $region39: #{tpu_custom_call.1} parent=5 // pred_region
        // Predicated region
        $region41: #{tpu_custom_call.1} parent=39 // pred_check
          %p258 = pneg %p37
        $region42: #{tpu_custom_call.1} parent=39 // pred_check_branch
          %260 = sbr.rel (%p258) target = $region44
        $region43: #{tpu_custom_call.1} parent=39 // pred_region
          %p261 = scmp.lt.s32.totalorder %s17, 1
          %s262 = scalar_select %p261, %s17, 1
          %s263 = smul.addr %s262, 20
          %s264 = smul.addr %s263, 4
          %s265 = scalar_lea.vmem %s0, %s264
        $region44: #{tpu_custom_call.1} parent=39 // pred_fallthru
          _
        // Predicated region
        $region45: #{tpu_custom_call.1} parent=39 // pred_check
          %p266 = pneg %p63
        $region46: #{tpu_custom_call.1} parent=39 // pred_check_branch
          %268 = sbr.rel (%p266) target = $region48
        $region47: #{tpu_custom_call.1} parent=39 // pred_region
          %p269 = scmp.lt.s32.totalorder %s17, 1
          %s270 = scalar_select %p269, %s17, 1
          %s271 = smul.addr %s270, 20
          %s272 = smul.addr %s271, 4
          %s273 = scalar_lea.vmem %s1, %s272
        $region48: #{tpu_custom_call.1} parent=39 // pred_fallthru
          _
      $region40: #{tpu_custom_call.1} parent=5 // pred_fallthru
        _
      %p274 = scmp.le.s32.totalorder 1, %s17
      %p275 = scmp.lt.s32.totalorder %s17, 3
      %p276 = pnand %p274, %p275
      %p277 = pneg %p276
      // Predicated region
      $region49: #{tpu_custom_call.1} parent=5 // pred_check
        _
      $region50: #{tpu_custom_call.1} parent=5 // pred_check_branch
        %279 = sbr.rel (%p276) target = $region52
      $region51: #{tpu_custom_call.1} parent=5 // pred_region
        %s280 = ssub.s32 %s17, 1
        %p281 = scmp.lt.s32.totalorder %s22, 1
        %s282 = scalar_select %p281, %s22, 1
        %s283 = smul.addr %s282, 20
        %s284 = smul.addr %s283, 4
        %s285 = scalar_lea.vmem %s0, %s284
        %p286 = pneg %p43
        %p287 = pneg %p40
        %p288 = scmp.lt.s32.totalorder %s22, 1
        %s289 = scalar_select %p288, %s22, 1
        %s290 = smul.addr %s289, 20
        %s291 = smul.addr %s290, 4
        %s292 = scalar_lea.vmem %s1, %s291
        %p293 = pneg %p69
        %p294 = pneg %p66
        %p295 = pneg %p90
        %p296 = pneg %p87
        %p297 = pneg %p111
        %p298 = pneg %p108
        %p299 = pneg %p132
        %p300 = pneg %p129
        %p301 = pneg %p153
        %p302 = pneg %p150
        %p303 = pneg %p174
        %p304 = pneg %p171
        %p305 = pneg %p195
        %p306 = pneg %p192
        %p307 = pneg %p221
        %p308 = pneg %p218
        %s309 = sand.u32 %s208, 1
        %s310 = scalar_lea.sflag [#allocation5], %s309
        %s311 = sand.u32 %s208, 1
        %s312 = smul.addr %s311, 64
        %s313 = scalar_lea.vmem [#allocation4], %s312
        %p314 = scmp.lt.s32.totalorder %s22, 1
        %s315 = scalar_select %p314, %s22, 1
        %s316 = smul.addr %s315, 20
        %s317 = smul.addr %s316, 4
        %s318 = scalar_lea.vmem %s0, %s317
        %p319 = scmp.lt.s32.totalorder %s22, 1
        %s320 = scalar_select %p319, %s22, 1
        %s321 = smul.addr %s320, 20
        %s322 = smul.addr %s321, 4
        %s323 = scalar_lea.vmem %s1, %s322
        %vm325 = vcmask 257024
        %326 = vst.msk [vmem:[#allocation2] sm:$0xf] %vm325, 0
        %vm327 = vcmask 253952
        %328 = vst.msk [vmem:[#allocation2 + $0x4] sm:$0x1] %vm327, 0
        %s329 = scalar_lea.vmem [#allocation2], 72
        %330 = vst.msk [vmem:[%s329] sm:$0xf] %vm325, 0
        %331 = vst.msk [vmem:[%s329 + $0x4] sm:$0x1] %vm327, 0
        %vm332 = vcmask 253952
        %vm333 = vsmask.f32 256
        %vm334 = vmand %vm332, %vm333
        %v335 = vld [vmem:[#allocation2] sm:$0x1]
        %v336 = vsel %vm334, 0, %v335
        %337 = vst [vmem:[#allocation2] sm:$0x1] %v336
        %v338 = vld [vmem:[#allocation2 + $0x8] sm:$0x1]
        %v339 = vsel %vm334, 0, %v338
        %340 = vst [vmem:[#allocation2 + $0x8] sm:$0x1] %v339
        %v341 = vld [vmem:[#allocation2 + $0x10] sm:$0x1]
        %v342 = vsel %vm334, 0, %v341
        %343 = vst [vmem:[#allocation2 + $0x10] sm:$0x1] %v342
        %v344 = vld [vmem:[#allocation2 + $0x18] sm:$0x1]
        %v345 = vsel %vm334, 0, %v344
        %346 = vst [vmem:[#allocation2 + $0x18] sm:$0x1] %v345
        %v347 = vld [vmem:[#allocation2 + $0x20] sm:$0x1]
        %v348 = vsel %vm334, 0, %v347
        %349 = vst [vmem:[#allocation2 + $0x20] sm:$0x1] %v348
        %v350 = vld [vmem:[#allocation2 + $0x28] sm:$0x1]
        %v351 = vsel %vm334, 0, %v350
        %352 = vst [vmem:[#allocation2 + $0x28] sm:$0x1] %v351
        %v353 = vld [vmem:[#allocation2 + $0x30] sm:$0x1]
        %v354 = vsel %vm334, 0, %v353
        %355 = vst [vmem:[#allocation2 + $0x30] sm:$0x1] %v354
        %v356 = vld [vmem:[#allocation2 + $0x38] sm:$0x1]
        %v357 = vsel %vm334, 0, %v356
        %358 = vst [vmem:[#allocation2 + $0x38] sm:$0x1] %v357
        %v359 = vld [vmem:[#allocation2 + $0x40] sm:$0x1]
        %v360 = vsel %vm334, 0, %v359
        %361 = vst [vmem:[#allocation2 + $0x40] sm:$0x1] %v360
        %v362 = vld [vmem:[#allocation2 + $0x48] sm:$0x1]
        %v363 = vsel %vm334, 0, %v362
        %364 = vst [vmem:[#allocation2 + $0x48] sm:$0x1] %v363
        %vm365 = vsmask.f32 7938
        %vm366 = vmand %vm332, %vm365
        %v367 = vld [vmem:[#allocation2 + $0x4] sm:$0x1]
        %v368 = vsel %vm366, 0, %v367
        %369 = vst [vmem:[#allocation2 + $0x4] sm:$0x1] %v368
        %v370 = vld [vmem:[#allocation2 + $0xc] sm:$0x1]
        %v371 = vsel %vm366, 0, %v370
        %372 = vst [vmem:[#allocation2 + $0xc] sm:$0x1] %v371
        %v373 = vld [vmem:[#allocation2 + $0x14] sm:$0x1]
        %v374 = vsel %vm366, 0, %v373
        %375 = vst [vmem:[#allocation2 + $0x14] sm:$0x1] %v374
        %v376 = vld [vmem:[#allocation2 + $0x1c] sm:$0x1]
        %v377 = vsel %vm366, 0, %v376
        %378 = vst [vmem:[#allocation2 + $0x1c] sm:$0x1] %v377
        %v379 = vld [vmem:[#allocation2 + $0x24] sm:$0x1]
        %v380 = vsel %vm366, 0, %v379
        %381 = vst [vmem:[#allocation2 + $0x24] sm:$0x1] %v380
        %v382 = vld [vmem:[#allocation2 + $0x2c] sm:$0x1]
        %v383 = vsel %vm366, 0, %v382
        %384 = vst [vmem:[#allocation2 + $0x2c] sm:$0x1] %v383
        %v385 = vld [vmem:[#allocation2 + $0x34] sm:$0x1]
        %v386 = vsel %vm366, 0, %v385
        %387 = vst [vmem:[#allocation2 + $0x34] sm:$0x1] %v386
        %v388 = vld [vmem:[#allocation2 + $0x3c] sm:$0x1]
        %v389 = vsel %vm366, 0, %v388
        %390 = vst [vmem:[#allocation2 + $0x3c] sm:$0x1] %v389
        %v391 = vld [vmem:[#allocation2 + $0x44] sm:$0x1]
        %v392 = vsel %vm366, 0, %v391
        %393 = vst [vmem:[#allocation2 + $0x44] sm:$0x1] %v392
        %v394 = vld [vmem:[#allocation2 + $0x4c] sm:$0x1]
        %v395 = vsel %vm366, 0, %v394
        %396 = vst [vmem:[#allocation2 + $0x4c] sm:$0x1] %v395
        %397 = vst.msk [vmem:[#allocation3] sm:$0xf] %vm325, 0
        %398 = vst.msk [vmem:[#allocation3 + $0x4] sm:$0x1] %vm327, 0
        %s399 = scalar_lea.vmem [#allocation3], 72
        %400 = vst.msk [vmem:[%s399] sm:$0xf] %vm325, 0
        %401 = vst.msk [vmem:[%s399 + $0x4] sm:$0x1] %vm327, 0
        %v402 = vld [vmem:[#allocation3] sm:$0x1]
        %v403 = vsel %vm334, 0, %v402
        %404 = vst [vmem:[#allocation3] sm:$0x1] %v403
        %v405 = vld [vmem:[#allocation3 + $0x8] sm:$0x1]
        %v406 = vsel %vm334, 0, %v405
        %407 = vst [vmem:[#allocation3 + $0x8] sm:$0x1] %v406
        %v408 = vld [vmem:[#allocation3 + $0x10] sm:$0x1]
        %v409 = vsel %vm334, 0, %v408
        %410 = vst [vmem:[#allocation3 + $0x10] sm:$0x1] %v409
        %v411 = vld [vmem:[#allocation3 + $0x18] sm:$0x1]
        %v412 = vsel %vm334, 0, %v411
        %413 = vst [vmem:[#allocation3 + $0x18] sm:$0x1] %v412
        %v414 = vld [vmem:[#allocation3 + $0x20] sm:$0x1]
        %v415 = vsel %vm334, 0, %v414
        %416 = vst [vmem:[#allocation3 + $0x20] sm:$0x1] %v415
        %v417 = vld [vmem:[#allocation3 + $0x28] sm:$0x1]
        %v418 = vsel %vm334, 0, %v417
        %419 = vst [vmem:[#allocation3 + $0x28] sm:$0x1] %v418
        %v420 = vld [vmem:[#allocation3 + $0x30] sm:$0x1]
        %v421 = vsel %vm334, 0, %v420
        %422 = vst [vmem:[#allocation3 + $0x30] sm:$0x1] %v421
        %v423 = vld [vmem:[#allocation3 + $0x38] sm:$0x1]
        %v424 = vsel %vm334, 0, %v423
        %425 = vst [vmem:[#allocation3 + $0x38] sm:$0x1] %v424
        %v426 = vld [vmem:[#allocation3 + $0x40] sm:$0x1]
        %v427 = vsel %vm334, 0, %v426
        %428 = vst [vmem:[#allocation3 + $0x40] sm:$0x1] %v427
        %v429 = vld [vmem:[#allocation3 + $0x48] sm:$0x1]
        %v430 = vsel %vm334, 0, %v429
        %431 = vst [vmem:[#allocation3 + $0x48] sm:$0x1] %v430
        %v432 = vld [vmem:[#allocation3 + $0x4] sm:$0x1]
        %v433 = vsel %vm366, 0, %v432
        %434 = vst [vmem:[#allocation3 + $0x4] sm:$0x1] %v433
        %v435 = vld [vmem:[#allocation3 + $0xc] sm:$0x1]
        %v436 = vsel %vm366, 0, %v435
        %437 = vst [vmem:[#allocation3 + $0xc] sm:$0x1] %v436
        %v438 = vld [vmem:[#allocation3 + $0x14] sm:$0x1]
        %v439 = vsel %vm366, 0, %v438
        %440 = vst [vmem:[#allocation3 + $0x14] sm:$0x1] %v439
        %v441 = vld [vmem:[#allocation3 + $0x1c] sm:$0x1]
        %v442 = vsel %vm366, 0, %v441
        %443 = vst [vmem:[#allocation3 + $0x1c] sm:$0x1] %v442
        %v444 = vld [vmem:[#allocation3 + $0x24] sm:$0x1]
        %v445 = vsel %vm366, 0, %v444
        %446 = vst [vmem:[#allocation3 + $0x24] sm:$0x1] %v445
        %v447 = vld [vmem:[#allocation3 + $0x2c] sm:$0x1]
        %v448 = vsel %vm366, 0, %v447
        %449 = vst [vmem:[#allocation3 + $0x2c] sm:$0x1] %v448
        %v450 = vld [vmem:[#allocation3 + $0x34] sm:$0x1]
        %v451 = vsel %vm366, 0, %v450
        %452 = vst [vmem:[#allocation3 + $0x34] sm:$0x1] %v451
        %v453 = vld [vmem:[#allocation3 + $0x3c] sm:$0x1]
        %v454 = vsel %vm366, 0, %v453
        %455 = vst [vmem:[#allocation3 + $0x3c] sm:$0x1] %v454
        %v456 = vld [vmem:[#allocation3 + $0x44] sm:$0x1]
        %v457 = vsel %vm366, 0, %v456
        %458 = vst [vmem:[#allocation3 + $0x44] sm:$0x1] %v457
        %v459 = vld [vmem:[#allocation3 + $0x4c] sm:$0x1]
        %v460 = vsel %vm366, 0, %v459
        %461 = vst [vmem:[#allocation3 + $0x4c] sm:$0x1] %v460
        %v462 = vld [vmem:[%s318] sm:$0xf]
        %v463 = vld [vmem:[%s318 + $0x8] sm:$0xf]
        %v464 = vld [vmem:[%s318 + $0x10] sm:$0xf]
        %v465 = vld [vmem:[%s318 + $0x18] sm:$0xf]
        %v466 = vld [vmem:[%s318 + $0x20] sm:$0xf]
        %v467 = vld [vmem:[%s318 + $0x28] sm:$0xf]
        %v468 = vld [vmem:[%s318 + $0x30] sm:$0xf]
        %v469 = vld [vmem:[%s318 + $0x38] sm:$0xf]
        %v470 = vld [vmem:[%s318 + $0x4] sm:$0x1]
        %v471 = vld [vmem:[%s318 + $0xc] sm:$0x1]
        %v472 = vld [vmem:[%s318 + $0x14] sm:$0x1]
        %v473 = vld [vmem:[%s318 + $0x1c] sm:$0x1]
        %v474 = vld [vmem:[%s318 + $0x24] sm:$0x1]
        %v475 = vld [vmem:[%s318 + $0x2c] sm:$0x1]
        %v476 = vld [vmem:[%s318 + $0x34] sm:$0x1]
        %v477 = vld [vmem:[%s318 + $0x3c] sm:$0x1]
        %v478 = vld [vmem:[%s318] sm:$0xe]
        %v479 = vld [vmem:[%s318 + $0x8] sm:$0xe]
        %v480 = vld [vmem:[%s318 + $0x10] sm:$0xe]
        %v481 = vld [vmem:[%s318 + $0x18] sm:$0xe]
        %v482 = vld [vmem:[%s318 + $0x20] sm:$0xe]
        %v483 = vld [vmem:[%s318 + $0x28] sm:$0xe]
        %v484 = vld [vmem:[%s318 + $0x30] sm:$0xe]
        %v485 = vld [vmem:[%s318 + $0x38] sm:$0xe]
        %s486 = scalar_lea.vmem %s318, 8
        %v487 = vld [vmem:[%s486] sm:$0xf]
        %v488 = vld [vmem:[%s486 + $0x8] sm:$0xf]
        %v489 = vld [vmem:[%s486 + $0x10] sm:$0xf]
        %v490 = vld [vmem:[%s486 + $0x18] sm:$0xf]
        %v491 = vld [vmem:[%s486 + $0x20] sm:$0xf]
        %v492 = vld [vmem:[%s486 + $0x28] sm:$0xf]
        %v493 = vld [vmem:[%s486 + $0x30] sm:$0xf]
        %v494 = vld [vmem:[%s486 + $0x38] sm:$0xf]
        %v495 = vld [vmem:[%s486 + $0x4] sm:$0x1]
        %v496 = vld [vmem:[%s486 + $0xc] sm:$0x1]
        %v497 = vld [vmem:[%s486 + $0x14] sm:$0x1]
        %v498 = vld [vmem:[%s486 + $0x1c] sm:$0x1]
        %v499 = vld [vmem:[%s486 + $0x24] sm:$0x1]
        %v500 = vld [vmem:[%s486 + $0x2c] sm:$0x1]
        %v501 = vld [vmem:[%s486 + $0x34] sm:$0x1]
        %v502 = vld [vmem:[%s486 + $0x3c] sm:$0x1]
        %v503 = vld [vmem:[%s486] sm:$0xe]
        %v504 = vld [vmem:[%s486 + $0x8] sm:$0xe]
        %v505 = vld [vmem:[%s486 + $0x10] sm:$0xe]
        %v506 = vld [vmem:[%s486 + $0x18] sm:$0xe]
        %v507 = vld [vmem:[%s486 + $0x20] sm:$0xe]
        %v508 = vld [vmem:[%s486 + $0x28] sm:$0xe]
        %v509 = vld [vmem:[%s486 + $0x30] sm:$0xe]
        %v510 = vld [vmem:[%s486 + $0x38] sm:$0xe]
        %s511 = scalar_lea.vmem %s318, 16
        %v512 = vld [vmem:[%s511] sm:$0xf]
        %v513 = vld [vmem:[%s511 + $0x8] sm:$0xf]
        %v514 = vld [vmem:[%s511 + $0x10] sm:$0xf]
        %v515 = vld [vmem:[%s511 + $0x18] sm:$0xf]
        %v516 = vld [vmem:[%s511 + $0x20] sm:$0xf]
        %v517 = vld [vmem:[%s511 + $0x28] sm:$0xf]
        %v518 = vld [vmem:[%s511 + $0x30] sm:$0xf]
        %v519 = vld [vmem:[%s511 + $0x38] sm:$0xf]
        %v520 = vld [vmem:[%s511 + $0x4] sm:$0x1]
        %v521 = vld [vmem:[%s511 + $0xc] sm:$0x1]
        %v522 = vld [vmem:[%s511 + $0x14] sm:$0x1]
        %v523 = vld [vmem:[%s511 + $0x1c] sm:$0x1]
        %v524 = vld [vmem:[%s511 + $0x24] sm:$0x1]
        %v525 = vld [vmem:[%s511 + $0x2c] sm:$0x1]
        %v526 = vld [vmem:[%s511 + $0x34] sm:$0x1]
        %v527 = vld [vmem:[%s511 + $0x3c] sm:$0x1]
        %v528 = vld [vmem:[%s511] sm:$0xe]
        %v529 = vld [vmem:[%s511 + $0x8] sm:$0xe]
        %v530 = vld [vmem:[%s511 + $0x10] sm:$0xe]
        %v531 = vld [vmem:[%s511 + $0x18] sm:$0xe]
        %v532 = vld [vmem:[%s511 + $0x20] sm:$0xe]
        %v533 = vld [vmem:[%s511 + $0x28] sm:$0xe]
        %v534 = vld [vmem:[%s511 + $0x30] sm:$0xe]
        %v535 = vld [vmem:[%s511 + $0x38] sm:$0xe]
        %v552 = vunpack.c.l.b16 %v462
        %v553 = vunpack.c.l.b16 %v470
        %v554 = vunpack.c.l.b16 %v463
        %v555 = vunpack.c.l.b16 %v471
        %v556 = vunpack.c.l.b16 %v464
        %v557 = vunpack.c.l.b16 %v472
        %v558 = vunpack.c.l.b16 %v465
        %v559 = vunpack.c.l.b16 %v473
        %v560 = vunpack.c.l.b16 %v466
        %v561 = vunpack.c.l.b16 %v474
        %v562 = vunpack.c.l.b16 %v467
        %v563 = vunpack.c.l.b16 %v475
        %v564 = vunpack.c.l.b16 %v468
        %v565 = vunpack.c.l.b16 %v476
        %v566 = vunpack.c.l.b16 %v469
        %v567 = vunpack.c.l.b16 %v477
        %v568 = vpack.c.b16 %v553, %v552
        %v569 = vpack.c.b16 %v555, %v554
        %v570 = vpack.c.b16 %v557, %v556
        %v571 = vpack.c.b16 %v559, %v558
        %v572 = vpack.c.b16 %v561, %v560
        %v573 = vpack.c.b16 %v563, %v562
        %v574 = vpack.c.b16 %v565, %v564
        %v575 = vpack.c.b16 %v567, %v566
        %v577 = vshrl.u32 %v568, 16
        %v579 = vshll.u32 %v568, 16
        %v581 = vrot.slane %v579, 1
        %v582 = vor.u32 %v577, %v581
        %v584 = vshrl.u32 %v569, 16
        %v586 = vshll.u32 %v569, 16
        %v588 = vrot.slane %v586, 1
        %v589 = vor.u32 %v584, %v588
        %v591 = vshrl.u32 %v570, 16
        %v593 = vshll.u32 %v570, 16
        %v595 = vrot.slane %v593, 1
        %v596 = vor.u32 %v591, %v595
        %v598 = vshrl.u32 %v571, 16
        %v600 = vshll.u32 %v571, 16
        %v602 = vrot.slane %v600, 1
        %v603 = vor.u32 %v598, %v602
        %v605 = vshrl.u32 %v572, 16
        %v607 = vshll.u32 %v572, 16
        %v609 = vrot.slane %v607, 1
        %v610 = vor.u32 %v605, %v609
        %v612 = vshrl.u32 %v573, 16
        %v614 = vshll.u32 %v573, 16
        %v616 = vrot.slane %v614, 1
        %v617 = vor.u32 %v612, %v616
        %v619 = vshrl.u32 %v574, 16
        %v621 = vshll.u32 %v574, 16
        %v623 = vrot.slane %v621, 1
        %v624 = vor.u32 %v619, %v623
        %v626 = vshrl.u32 %v575, 16
        %v628 = vshll.u32 %v575, 16
        %v630 = vrot.slane %v628, 1
        %v631 = vor.u32 %v626, %v630
        %632 = vrot.lane.b32.xlu0 %v582, 8
        %v633 = vpop.permute.xlu0 %632
        %634 = vrot.lane.b32.xlu0 %v589, 8
        %v635 = vpop.permute.xlu0 %634
        %636 = vrot.lane.b32.xlu0 %v596, 8
        %v637 = vpop.permute.xlu0 %636
        %638 = vrot.lane.b32.xlu0 %v603, 8
        %v639 = vpop.permute.xlu0 %638
        %640 = vrot.lane.b32.xlu0 %v610, 8
        %v641 = vpop.permute.xlu0 %640
        %642 = vrot.lane.b32.xlu0 %v617, 8
        %v643 = vpop.permute.xlu0 %642
        %644 = vrot.lane.b32.xlu0 %v624, 8
        %v645 = vpop.permute.xlu0 %644
        %646 = vrot.lane.b32.xlu0 %v631, 8
        %v647 = vpop.permute.xlu0 %646
        %v656 = vunpack.c.l.b16 %v478
        %v657 = vunpack.c.l.b16 %v479
        %v658 = vunpack.c.l.b16 %v480
        %v659 = vunpack.c.l.b16 %v481
        %v660 = vunpack.c.l.b16 %v482
        %v661 = vunpack.c.l.b16 %v483
        %v662 = vunpack.c.l.b16 %v484
        %v663 = vunpack.c.l.b16 %v485
        %v664 = vpack.c.b16 %v553, %v656
        %v665 = vpack.c.b16 %v555, %v657
        %v666 = vpack.c.b16 %v557, %v658
        %v667 = vpack.c.b16 %v559, %v659
        %v668 = vpack.c.b16 %v561, %v660
        %v669 = vpack.c.b16 %v563, %v661
        %v670 = vpack.c.b16 %v565, %v662
        %v671 = vpack.c.b16 %v567, %v663
        %v672 = vrot.slane %v664, 1
        %v673 = vrot.slane %v665, 1
        %v674 = vrot.slane %v666, 1
        %v675 = vrot.slane %v667, 1
        %v676 = vrot.slane %v668, 1
        %v677 = vrot.slane %v669, 1
        %v678 = vrot.slane %v670, 1
        %v679 = vrot.slane %v671, 1
        %680 = vrot.lane.b32.xlu0 %v672, 16
        %v681 = vpop.permute.xlu0 %680
        %682 = vrot.lane.b32.xlu0 %v673, 16
        %v683 = vpop.permute.xlu0 %682
        %684 = vrot.lane.b32.xlu0 %v674, 16
        %v685 = vpop.permute.xlu0 %684
        %686 = vrot.lane.b32.xlu0 %v675, 16
        %v687 = vpop.permute.xlu0 %686
        %688 = vrot.lane.b32.xlu0 %v676, 16
        %v689 = vpop.permute.xlu0 %688
        %690 = vrot.lane.b32.xlu0 %v677, 16
        %v691 = vpop.permute.xlu0 %690
        %692 = vrot.lane.b32.xlu0 %v678, 16
        %v693 = vpop.permute.xlu0 %692
        %694 = vrot.lane.b32.xlu0 %v679, 16
        %v695 = vpop.permute.xlu0 %694
        %v704 = vunpack.c.l.b16 %v487
        %v705 = vunpack.c.l.b16 %v488
        %v706 = vunpack.c.l.b16 %v489
        %v707 = vunpack.c.l.b16 %v490
        %v708 = vunpack.c.l.b16 %v491
        %v709 = vunpack.c.l.b16 %v492
        %v710 = vunpack.c.l.b16 %v493
        %v711 = vunpack.c.l.b16 %v494
        %v712 = vpack.c.b16 %v704, %v704
        %v713 = vpack.c.b16 %v705, %v705
        %v714 = vpack.c.b16 %v706, %v706
        %v715 = vpack.c.b16 %v707, %v707
        %v716 = vpack.c.b16 %v708, %v708
        %v717 = vpack.c.b16 %v709, %v709
        %v718 = vpack.c.b16 %v710, %v710
        %v719 = vpack.c.b16 %v711, %v711
        %720 = vrot.lane.b32.xlu0 %v712, 24
        %v721 = vpop.permute.xlu0 %720
        %722 = vrot.lane.b32.xlu0 %v713, 24
        %v723 = vpop.permute.xlu0 %722
        %724 = vrot.lane.b32.xlu0 %v714, 24
        %v725 = vpop.permute.xlu0 %724
        %726 = vrot.lane.b32.xlu0 %v715, 24
        %v727 = vpop.permute.xlu0 %726
        %728 = vrot.lane.b32.xlu0 %v716, 24
        %v729 = vpop.permute.xlu0 %728
        %730 = vrot.lane.b32.xlu0 %v717, 24
        %v731 = vpop.permute.xlu0 %730
        %732 = vrot.lane.b32.xlu0 %v718, 24
        %v733 = vpop.permute.xlu0 %732
        %734 = vrot.lane.b32.xlu0 %v719, 24
        %v735 = vpop.permute.xlu0 %734
        %v744 = vunpack.c.l.b16 %v495
        %v745 = vunpack.c.l.b16 %v496
        %v746 = vunpack.c.l.b16 %v497
        %v747 = vunpack.c.l.b16 %v498
        %v748 = vunpack.c.l.b16 %v499
        %v749 = vunpack.c.l.b16 %v500
        %v750 = vunpack.c.l.b16 %v501
        %v751 = vunpack.c.l.b16 %v502
        %v752 = vpack.c.b16 %v744, %v704
        %v753 = vpack.c.b16 %v745, %v705
        %v754 = vpack.c.b16 %v746, %v706
        %v755 = vpack.c.b16 %v747, %v707
        %v756 = vpack.c.b16 %v748, %v708
        %v757 = vpack.c.b16 %v749, %v709
        %v758 = vpack.c.b16 %v750, %v710
        %v759 = vpack.c.b16 %v751, %v711
        %v761 = vshrl.u32 %v752, 16
        %v763 = vshll.u32 %v752, 16
        %v765 = vrot.slane %v763, 1
        %v766 = vor.u32 %v761, %v765
        %v768 = vshrl.u32 %v753, 16
        %v770 = vshll.u32 %v753, 16
        %v772 = vrot.slane %v770, 1
        %v773 = vor.u32 %v768, %v772
        %v775 = vshrl.u32 %v754, 16
        %v777 = vshll.u32 %v754, 16
        %v779 = vrot.slane %v777, 1
        %v780 = vor.u32 %v775, %v779
        %v782 = vshrl.u32 %v755, 16
        %v784 = vshll.u32 %v755, 16
        %v786 = vrot.slane %v784, 1
        %v787 = vor.u32 %v782, %v786
        %v789 = vshrl.u32 %v756, 16
        %v791 = vshll.u32 %v756, 16
        %v793 = vrot.slane %v791, 1
        %v794 = vor.u32 %v789, %v793
        %v796 = vshrl.u32 %v757, 16
        %v798 = vshll.u32 %v757, 16
        %v800 = vrot.slane %v798, 1
        %v801 = vor.u32 %v796, %v800
        %v803 = vshrl.u32 %v758, 16
        %v805 = vshll.u32 %v758, 16
        %v807 = vrot.slane %v805, 1
        %v808 = vor.u32 %v803, %v807
        %v810 = vshrl.u32 %v759, 16
        %v812 = vshll.u32 %v759, 16
        %v814 = vrot.slane %v812, 1
        %v815 = vor.u32 %v810, %v814
        %816 = vrot.lane.b32.xlu0 %v766, 32
        %v817 = vpop.permute.xlu0 %816
        %818 = vrot.lane.b32.xlu0 %v773, 32
        %v819 = vpop.permute.xlu0 %818
        %820 = vrot.lane.b32.xlu0 %v780, 32
        %v821 = vpop.permute.xlu0 %820
        %822 = vrot.lane.b32.xlu0 %v787, 32
        %v823 = vpop.permute.xlu0 %822
        %824 = vrot.lane.b32.xlu0 %v794, 32
        %v825 = vpop.permute.xlu0 %824
        %826 = vrot.lane.b32.xlu0 %v801, 32
        %v827 = vpop.permute.xlu0 %826
        %828 = vrot.lane.b32.xlu0 %v808, 32
        %v829 = vpop.permute.xlu0 %828
        %830 = vrot.lane.b32.xlu0 %v815, 32
        %v831 = vpop.permute.xlu0 %830
        %v840 = vunpack.c.l.b16 %v503
        %v841 = vunpack.c.l.b16 %v504
        %v842 = vunpack.c.l.b16 %v505
        %v843 = vunpack.c.l.b16 %v506
        %v844 = vunpack.c.l.b16 %v507
        %v845 = vunpack.c.l.b16 %v508
        %v846 = vunpack.c.l.b16 %v509
        %v847 = vunpack.c.l.b16 %v510
        %v848 = vpack.c.b16 %v744, %v840
        %v849 = vpack.c.b16 %v745, %v841
        %v850 = vpack.c.b16 %v746, %v842
        %v851 = vpack.c.b16 %v747, %v843
        %v852 = vpack.c.b16 %v748, %v844
        %v853 = vpack.c.b16 %v749, %v845
        %v854 = vpack.c.b16 %v750, %v846
        %v855 = vpack.c.b16 %v751, %v847
        %v856 = vrot.slane %v848, 1
        %v857 = vrot.slane %v849, 1
        %v858 = vrot.slane %v850, 1
        %v859 = vrot.slane %v851, 1
        %v860 = vrot.slane %v852, 1
        %v861 = vrot.slane %v853, 1
        %v862 = vrot.slane %v854, 1
        %v863 = vrot.slane %v855, 1
        %864 = vrot.lane.b32.xlu0 %v856, 40
        %v865 = vpop.permute.xlu0 %864
        %866 = vrot.lane.b32.xlu0 %v857, 40
        %v867 = vpop.permute.xlu0 %866
        %868 = vrot.lane.b32.xlu0 %v858, 40
        %v869 = vpop.permute.xlu0 %868
        %870 = vrot.lane.b32.xlu0 %v859, 40
        %v871 = vpop.permute.xlu0 %870
        %872 = vrot.lane.b32.xlu0 %v860, 40
        %v873 = vpop.permute.xlu0 %872
        %874 = vrot.lane.b32.xlu0 %v861, 40
        %v875 = vpop.permute.xlu0 %874
        %876 = vrot.lane.b32.xlu0 %v862, 40
        %v877 = vpop.permute.xlu0 %876
        %878 = vrot.lane.b32.xlu0 %v863, 40
        %v879 = vpop.permute.xlu0 %878
        %v888 = vunpack.c.l.b16 %v512
        %v889 = vunpack.c.l.b16 %v513
        %v890 = vunpack.c.l.b16 %v514
        %v891 = vunpack.c.l.b16 %v515
        %v892 = vunpack.c.l.b16 %v516
        %v893 = vunpack.c.l.b16 %v517
        %v894 = vunpack.c.l.b16 %v518
        %v895 = vunpack.c.l.b16 %v519
        %v896 = vpack.c.b16 %v888, %v888
        %v897 = vpack.c.b16 %v889, %v889
        %v898 = vpack.c.b16 %v890, %v890
        %v899 = vpack.c.b16 %v891, %v891
        %v900 = vpack.c.b16 %v892, %v892
        %v901 = vpack.c.b16 %v893, %v893
        %v902 = vpack.c.b16 %v894, %v894
        %v903 = vpack.c.b16 %v895, %v895
        %904 = vrot.lane.b32.xlu0 %v896, 48
        %v905 = vpop.permute.xlu0 %904
        %906 = vrot.lane.b32.xlu0 %v897, 48
        %v907 = vpop.permute.xlu0 %906
        %908 = vrot.lane.b32.xlu0 %v898, 48
        %v909 = vpop.permute.xlu0 %908
        %910 = vrot.lane.b32.xlu0 %v899, 48
        %v911 = vpop.permute.xlu0 %910
        %912 = vrot.lane.b32.xlu0 %v900, 48
        %v913 = vpop.permute.xlu0 %912
        %914 = vrot.lane.b32.xlu0 %v901, 48
        %v915 = vpop.permute.xlu0 %914
        %916 = vrot.lane.b32.xlu0 %v902, 48
        %v917 = vpop.permute.xlu0 %916
        %918 = vrot.lane.b32.xlu0 %v903, 48
        %v919 = vpop.permute.xlu0 %918
        %v928 = vunpack.c.l.b16 %v520
        %v929 = vunpack.c.l.b16 %v521
        %v930 = vunpack.c.l.b16 %v522
        %v931 = vunpack.c.l.b16 %v523
        %v932 = vunpack.c.l.b16 %v524
        %v933 = vunpack.c.l.b16 %v525
        %v934 = vunpack.c.l.b16 %v526
        %v935 = vunpack.c.l.b16 %v527
        %v936 = vpack.c.b16 %v928, %v888
        %v937 = vpack.c.b16 %v929, %v889
        %v938 = vpack.c.b16 %v930, %v890
        %v939 = vpack.c.b16 %v931, %v891
        %v940 = vpack.c.b16 %v932, %v892
        %v941 = vpack.c.b16 %v933, %v893
        %v942 = vpack.c.b16 %v934, %v894
        %v943 = vpack.c.b16 %v935, %v895
        %v945 = vshrl.u32 %v936, 16
        %v947 = vshll.u32 %v936, 16
        %v949 = vrot.slane %v947, 1
        %v950 = vor.u32 %v945, %v949
        %v952 = vshrl.u32 %v937, 16
        %v954 = vshll.u32 %v937, 16
        %v956 = vrot.slane %v954, 1
        %v957 = vor.u32 %v952, %v956
        %v959 = vshrl.u32 %v938, 16
        %v961 = vshll.u32 %v938, 16
        %v963 = vrot.slane %v961, 1
        %v964 = vor.u32 %v959, %v963
        %v966 = vshrl.u32 %v939, 16
        %v968 = vshll.u32 %v939, 16
        %v970 = vrot.slane %v968, 1
        %v971 = vor.u32 %v966, %v970
        %v973 = vshrl.u32 %v940, 16
        %v975 = vshll.u32 %v940, 16
        %v977 = vrot.slane %v975, 1
        %v978 = vor.u32 %v973, %v977
        %v980 = vshrl.u32 %v941, 16
        %v982 = vshll.u32 %v941, 16
        %v984 = vrot.slane %v982, 1
        %v985 = vor.u32 %v980, %v984
        %v987 = vshrl.u32 %v942, 16
        %v989 = vshll.u32 %v942, 16
        %v991 = vrot.slane %v989, 1
        %v992 = vor.u32 %v987, %v991
        %v994 = vshrl.u32 %v943, 16
        %v996 = vshll.u32 %v943, 16
        %v998 = vrot.slane %v996, 1
        %v999 = vor.u32 %v994, %v998
        %1000 = vrot.lane.b32.xlu0 %v950, 56
        %v1001 = vpop.permute.xlu0 %1000
        %1002 = vrot.lane.b32.xlu0 %v957, 56
        %v1003 = vpop.permute.xlu0 %1002
        %1004 = vrot.lane.b32.xlu0 %v964, 56
        %v1005 = vpop.permute.xlu0 %1004
        %1006 = vrot.lane.b32.xlu0 %v971, 56
        %v1007 = vpop.permute.xlu0 %1006
        %1008 = vrot.lane.b32.xlu0 %v978, 56
        %v1009 = vpop.permute.xlu0 %1008
        %1010 = vrot.lane.b32.xlu0 %v985, 56
        %v1011 = vpop.permute.xlu0 %1010
        %1012 = vrot.lane.b32.xlu0 %v992, 56
        %v1013 = vpop.permute.xlu0 %1012
        %1014 = vrot.lane.b32.xlu0 %v999, 56
        %v1015 = vpop.permute.xlu0 %1014
        %v1024 = vunpack.c.l.b16 %v528
        %v1025 = vunpack.c.l.b16 %v529
        %v1026 = vunpack.c.l.b16 %v530
        %v1027 = vunpack.c.l.b16 %v531
        %v1028 = vunpack.c.l.b16 %v532
        %v1029 = vunpack.c.l.b16 %v533
        %v1030 = vunpack.c.l.b16 %v534
        %v1031 = vunpack.c.l.b16 %v535
        %v1032 = vpack.c.b16 %v928, %v1024
        %v1033 = vpack.c.b16 %v929, %v1025
        %v1034 = vpack.c.b16 %v930, %v1026
        %v1035 = vpack.c.b16 %v931, %v1027
        %v1036 = vpack.c.b16 %v932, %v1028
        %v1037 = vpack.c.b16 %v933, %v1029
        %v1038 = vpack.c.b16 %v934, %v1030
        %v1039 = vpack.c.b16 %v935, %v1031
        %v1040 = vrot.slane %v1032, 1
        %v1041 = vrot.slane %v1033, 1
        %v1042 = vrot.slane %v1034, 1
        %v1043 = vrot.slane %v1035, 1
        %v1044 = vrot.slane %v1036, 1
        %v1045 = vrot.slane %v1037, 1
        %v1046 = vrot.slane %v1038, 1
        %v1047 = vrot.slane %v1039, 1
        %1048 = vrot.lane.b32.xlu0 %v1040, 64
        %v1049 = vpop.permute.xlu0 %1048
        %1050 = vrot.lane.b32.xlu0 %v1041, 64
        %v1051 = vpop.permute.xlu0 %1050
        %1052 = vrot.lane.b32.xlu0 %v1042, 64
        %v1053 = vpop.permute.xlu0 %1052
        %1054 = vrot.lane.b32.xlu0 %v1043, 64
        %v1055 = vpop.permute.xlu0 %1054
        %1056 = vrot.lane.b32.xlu0 %v1044, 64
        %v1057 = vpop.permute.xlu0 %1056
        %1058 = vrot.lane.b32.xlu0 %v1045, 64
        %v1059 = vpop.permute.xlu0 %1058
        %1060 = vrot.lane.b32.xlu0 %v1046, 64
        %v1061 = vpop.permute.xlu0 %1060
        %1062 = vrot.lane.b32.xlu0 %v1047, 64
        %v1063 = vpop.permute.xlu0 %1062
        %vm1064 = vcmask 64512
        %v1067 = vsel %vm1064, %v462, %v633
        %v1070 = vsel %vm1064, %v463, %v635
        %v1073 = vsel %vm1064, %v464, %v637
        %v1076 = vsel %vm1064, %v465, %v639
        %v1079 = vsel %vm1064, %v466, %v641
        %v1082 = vsel %vm1064, %v467, %v643
        %v1085 = vsel %vm1064, %v468, %v645
        %v1088 = vsel %vm1064, %v469, %v647
        %vm1089 = vcmask 130048
        %v1091 = vsel %vm1089, %v1067, %v681
        %v1093 = vsel %vm1089, %v1070, %v683
        %v1095 = vsel %vm1089, %v1073, %v685
        %v1097 = vsel %vm1089, %v1076, %v687
        %v1099 = vsel %vm1089, %v1079, %v689
        %v1101 = vsel %vm1089, %v1082, %v691
        %v1103 = vsel %vm1089, %v1085, %v693
        %v1105 = vsel %vm1089, %v1088, %v695
        %vm1106 = vcmask 195584
        %v1108 = vsel %vm1106, %v1091, %v721
        %v1110 = vsel %vm1106, %v1093, %v723
        %v1112 = vsel %vm1106, %v1095, %v725
        %v1114 = vsel %vm1106, %v1097, %v727
        %v1116 = vsel %vm1106, %v1099, %v729
        %v1118 = vsel %vm1106, %v1101, %v731
        %v1120 = vsel %vm1106, %v1103, %v733
        %v1122 = vsel %vm1106, %v1105, %v735
        %vm1123 = vcmask 261120
        %v1125 = vsel %vm1123, %v1108, %v817
        %v1127 = vsel %vm1123, %v1110, %v819
        %v1129 = vsel %vm1123, %v1112, %v821
        %v1131 = vsel %vm1123, %v1114, %v823
        %v1133 = vsel %vm1123, %v1116, %v825
        %v1135 = vsel %vm1123, %v1118, %v827
        %v1137 = vsel %vm1123, %v1120, %v829
        %v1139 = vsel %vm1123, %v1122, %v831
        %vm1140 = vcmask 326656
        %v1142 = vsel %vm1140, %v1125, %v865
        %v1144 = vsel %vm1140, %v1127, %v867
        %v1146 = vsel %vm1140, %v1129, %v869
        %v1148 = vsel %vm1140, %v1131, %v871
        %v1150 = vsel %vm1140, %v1133, %v873
        %v1152 = vsel %vm1140, %v1135, %v875
        %v1154 = vsel %vm1140, %v1137, %v877
        %v1156 = vsel %vm1140, %v1139, %v879
        %vm1157 = vcmask 392192
        %v1159 = vsel %vm1157, %v1142, %v905
        %v1161 = vsel %vm1157, %v1144, %v907
        %v1163 = vsel %vm1157, %v1146, %v909
        %v1165 = vsel %vm1157, %v1148, %v911
        %v1167 = vsel %vm1157, %v1150, %v913
        %v1169 = vsel %vm1157, %v1152, %v915
        %v1171 = vsel %vm1157, %v1154, %v917
        %v1173 = vsel %vm1157, %v1156, %v919
        %vm1174 = vcmask 457728
        %v1176 = vsel %vm1174, %v1159, %v1001
        %v1178 = vsel %vm1174, %v1161, %v1003
        %v1180 = vsel %vm1174, %v1163, %v1005
        %v1182 = vsel %vm1174, %v1165, %v1007
        %v1184 = vsel %vm1174, %v1167, %v1009
        %v1186 = vsel %vm1174, %v1169, %v1011
        %v1188 = vsel %vm1174, %v1171, %v1013
        %v1190 = vsel %vm1174, %v1173, %v1015
        %vm1191 = vcmask 523264
        %v1193 = vsel %vm1191, %v1176, %v1049
        %v1195 = vsel %vm1191, %v1178, %v1051
        %v1197 = vsel %vm1191, %v1180, %v1053
        %v1199 = vsel %vm1191, %v1182, %v1055
        %v1201 = vsel %vm1191, %v1184, %v1057
        %v1203 = vsel %vm1191, %v1186, %v1059
        %v1205 = vsel %vm1191, %v1188, %v1061
        %v1207 = vsel %vm1191, %v1190, %v1063
        %v1208 = vld [vmem:[%s2] sm:$0xf]
        %v1209 = vld [vmem:[%s2 + $0x4] sm:$0xf]
        %v1210 = vld [vmem:[%s2 + $0x8] sm:$0xf]
        %v1211 = vld [vmem:[%s2 + $0xc] sm:$0xf]
        %v1212 = vld [vmem:[%s2 + $0x10] sm:$0xf]
        %v1213 = vld [vmem:[%s2 + $0x14] sm:$0xf]
        %v1214 = vld [vmem:[%s2 + $0x18] sm:$0xf]
        %v1215 = vld [vmem:[%s2 + $0x1c] sm:$0xf]
        %v1216 = vld [vmem:[%s2 + $0x20] sm:$0xf]
        %v1225 = vunpack.c.l.b16 %v1193
        %v1226 = vunpack.c.l.b16 %v1195
        %v1227 = vunpack.c.l.b16 %v1197
        %v1228 = vunpack.c.l.b16 %v1199
        %v1229 = vunpack.c.l.b16 %v1201
        %v1230 = vunpack.c.l.b16 %v1203
        %v1231 = vunpack.c.l.b16 %v1205
        %v1232 = vunpack.c.l.b16 %v1207
        %v1233 = vpack.c.b16 %v1226, %v1225
        %v1234 = vpack.c.b16 %v1228, %v1227
        %v1235 = vpack.c.b16 %v1230, %v1229
        %v1236 = vpack.c.b16 %v1232, %v1231
        %v1246 = vunpack.c.l.b16 %v1208
        %v1247 = vunpack.c.l.b16 %v1209
        %v1248 = vunpack.c.l.b16 %v1210
        %v1249 = vunpack.c.l.b16 %v1211
        %v1250 = vunpack.c.l.b16 %v1212
        %v1251 = vunpack.c.l.b16 %v1213
        %v1252 = vunpack.c.l.b16 %v1214
        %v1253 = vunpack.c.l.b16 %v1215
        %v1254 = vunpack.c.l.b16 %v1216
        %v1255 = vpack.c.b16 %v1247, %v1246
        %v1256 = vpack.c.b16 %v1249, %v1248
        %v1257 = vpack.c.b16 %v1251, %v1250
        %v1258 = vpack.c.b16 %v1253, %v1252
        %v1259 = vpack.c.b16 %v1254, %v1254
        %vm1264 = vcmask 588800
        %v1266 = vsel %vm1264, %v1233, 0
        %v1269 = vsel %vm1264, %v1234, 0
        %v1272 = vsel %vm1264, %v1235, 0
        %v1275 = vsel %vm1264, %v1236, 0
        %vm1277 = vcmask 1043456
        %v1279 = vsel %vm1277, %v1259, 0
        %1281 = vmatpush.bf16.msra.mxu0 0
        %1282 = vmatpush.bf16.msra.mxu0 0
        %1283 = vmatpush.bf16.msra.mxu0 0
        %1284 = vmatpush.bf16.msra.mxu0 %v1279
        %1285 = vmatpush.bf16.msra.mxu0 %v1258
        %1286 = vmatpush.bf16.msra.mxu0 %v1257
        %1287 = vmatpush.bf16.msra.mxu0 %v1256
        %1288 = vmatpush.bf16.msra.mxu0 %v1255
        %1289 = vmatmul.bf16.gmra.mxu0 %v1266
        %v1290 = vpop.f32.mrf.mxu0
        %v1291 = vadd.f32 0.0, %v1290
        %v1292 = vpop.f32.mrf.mxu0
        %v1293 = vadd.f32 0.0, %v1292
        %1294 = vmatmul.bf16.gmra.mxu0 %v1269
        %v1295 = vpop.f32.mrf.mxu0
        %v1296 = vadd.f32 0.0, %v1295
        %v1297 = vpop.f32.mrf.mxu0
        %v1298 = vadd.f32 0.0, %v1297
        %1299 = vmatmul.bf16.gmra.mxu0 %v1272
        %v1300 = vpop.f32.mrf.mxu0
        %v1301 = vadd.f32 0.0, %v1300
        %v1302 = vpop.f32.mrf.mxu0
        %v1303 = vadd.f32 0.0, %v1302
        %1304 = vmatmul.bf16.gmra.mxu0 %v1275
        %v1305 = vpop.f32.mrf.mxu0
        %v1306 = vadd.f32 0.0, %v1305
        %v1307 = vpop.f32.mrf.mxu0
        %v1308 = vadd.f32 0.0, %v1307
        %1309 = vdwg.mxu0
        %v1310 = vld [vmem:[%s6] sm:$0x1]
        %v1311 = vperm.slane %v1310, 0
        %v1312 = vmul.f32 %v1291, %v1311
        %v1313 = vmul.f32 %v1293, %v1311
        %v1314 = vmul.f32 %v1296, %v1311
        %v1315 = vmul.f32 %v1298, %v1311
        %v1316 = vmul.f32 %v1301, %v1311
        %v1317 = vmul.f32 %v1303, %v1311
        %v1318 = vmul.f32 %v1306, %v1311
        %v1319 = vmul.f32 %v1308, %v1311
        %v1320 = vld [vmem:[%s7] sm:$0x1]
        %v1321 = vperm.slane %v1320, 0
        %v1322 = vadd.f32 %v1312, %v1321
        %v1323 = vadd.f32 %v1313, %v1321
        %v1324 = vadd.f32 %v1314, %v1321
        %v1325 = vadd.f32 %v1315, %v1321
        %v1326 = vadd.f32 %v1316, %v1321
        %v1327 = vadd.f32 %v1317, %v1321
        %v1328 = vadd.f32 %v1318, %v1321
        %v1329 = vadd.f32 %v1319, %v1321
        %v1330 = vpack.c.bf16 %v1322, %v1322
        %v1331 = vpack.c.bf16 %v1323, %v1323
        %v1332 = vpack.c.bf16 %v1324, %v1324
        %v1333 = vpack.c.bf16 %v1325, %v1325
        %v1334 = vpack.c.bf16 %v1326, %v1326
        %v1335 = vpack.c.bf16 %v1327, %v1327
        %v1336 = vpack.c.bf16 %v1328, %v1328
        %v1337 = vpack.c.bf16 %v1329, %v1329
        %v1339 = vshrl.u32 %v1330, 16
        %v1341 = vrot.slane %v1339, 7
        %v1342 = vshll.u32 %v1330, 16
        %v1344 = vor.u32 %v1341, %v1342
        %v1345 = vrot.slane %v1341, 4
        %v1347 = vshrl.u32 %v1331, 16
        %v1349 = vrot.slane %v1347, 7
        %v1350 = vshll.u32 %v1331, 16
        %v1352 = vor.u32 %v1349, %v1350
        %v1353 = vrot.slane %v1349, 4
        %v1355 = vshrl.u32 %v1332, 16
        %v1357 = vrot.slane %v1355, 7
        %v1358 = vshll.u32 %v1332, 16
        %v1360 = vor.u32 %v1357, %v1358
        %v1361 = vrot.slane %v1357, 4
        %v1363 = vshrl.u32 %v1333, 16
        %v1365 = vrot.slane %v1363, 7
        %v1366 = vshll.u32 %v1333, 16
        %v1368 = vor.u32 %v1365, %v1366
        %v1369 = vrot.slane %v1365, 4
        %v1371 = vshrl.u32 %v1334, 16
        %v1373 = vrot.slane %v1371, 7
        %v1374 = vshll.u32 %v1334, 16
        %v1376 = vor.u32 %v1373, %v1374
        %v1377 = vrot.slane %v1373, 4
        %v1379 = vshrl.u32 %v1335, 16
        %v1381 = vrot.slane %v1379, 7
        %v1382 = vshll.u32 %v1335, 16
        %v1384 = vor.u32 %v1381, %v1382
        %v1385 = vrot.slane %v1381, 4
        %v1387 = vshrl.u32 %v1336, 16
        %v1389 = vrot.slane %v1387, 7
        %v1390 = vshll.u32 %v1336, 16
        %v1392 = vor.u32 %v1389, %v1390
        %v1393 = vrot.slane %v1389, 4
        %v1395 = vshrl.u32 %v1337, 16
        %v1397 = vrot.slane %v1395, 7
        %v1398 = vshll.u32 %v1337, 16
        %v1400 = vor.u32 %v1397, %v1398
        %v1401 = vrot.slane %v1397, 4
        %s1418 = scalar_lea.vmem [#allocation2], 8
        %vm1419 = vcmask 257024
        %vm1420 = vmand %vm1419, %vm365
        %v1421 = vld [vmem:[%s1418] sm:$0xf]
        %v1422 = vsel %vm1420, %v1344, %v1421
        %1423 = vst [vmem:[%s1418] sm:$0xf] %v1422
        %v1424 = vld [vmem:[%s1418 + $0x4] sm:$0x1]
        %v1425 = vsel %vm334, %v1345, %v1424
        %1426 = vst [vmem:[%s1418 + $0x4] sm:$0x1] %v1425
        %v1427 = vld [vmem:[%s1418 + $0x8] sm:$0xf]
        %v1428 = vsel %vm1420, %v1352, %v1427
        %1429 = vst [vmem:[%s1418 + $0x8] sm:$0xf] %v1428
        %v1430 = vld [vmem:[%s1418 + $0xc] sm:$0x1]
        %v1431 = vsel %vm334, %v1353, %v1430
        %1432 = vst [vmem:[%s1418 + $0xc] sm:$0x1] %v1431
        %v1433 = vld [vmem:[%s1418 + $0x10] sm:$0xf]
        %v1434 = vsel %vm1420, %v1360, %v1433
        %1435 = vst [vmem:[%s1418 + $0x10] sm:$0xf] %v1434
        %v1436 = vld [vmem:[%s1418 + $0x14] sm:$0x1]
        %v1437 = vsel %vm334, %v1361, %v1436
        %1438 = vst [vmem:[%s1418 + $0x14] sm:$0x1] %v1437
        %v1439 = vld [vmem:[%s1418 + $0x18] sm:$0xf]
        %v1440 = vsel %vm1420, %v1368, %v1439
        %1441 = vst [vmem:[%s1418 + $0x18] sm:$0xf] %v1440
        %v1442 = vld [vmem:[%s1418 + $0x1c] sm:$0x1]
        %v1443 = vsel %vm334, %v1369, %v1442
        %1444 = vst [vmem:[%s1418 + $0x1c] sm:$0x1] %v1443
        %v1445 = vld [vmem:[%s1418 + $0x20] sm:$0xf]
        %v1446 = vsel %vm1420, %v1376, %v1445
        %1447 = vst [vmem:[%s1418 + $0x20] sm:$0xf] %v1446
        %v1448 = vld [vmem:[%s1418 + $0x24] sm:$0x1]
        %v1449 = vsel %vm334, %v1377, %v1448
        %1450 = vst [vmem:[%s1418 + $0x24] sm:$0x1] %v1449
        %v1451 = vld [vmem:[%s1418 + $0x28] sm:$0xf]
        %v1452 = vsel %vm1420, %v1384, %v1451
        %1453 = vst [vmem:[%s1418 + $0x28] sm:$0xf] %v1452
        %v1454 = vld [vmem:[%s1418 + $0x2c] sm:$0x1]
        %v1455 = vsel %vm334, %v1385, %v1454
        %1456 = vst [vmem:[%s1418 + $0x2c] sm:$0x1] %v1455
        %v1457 = vld [vmem:[%s1418 + $0x30] sm:$0xf]
        %v1458 = vsel %vm1420, %v1392, %v1457
        %1459 = vst [vmem:[%s1418 + $0x30] sm:$0xf] %v1458
        %v1460 = vld [vmem:[%s1418 + $0x34] sm:$0x1]
        %v1461 = vsel %vm334, %v1393, %v1460
        %1462 = vst [vmem:[%s1418 + $0x34] sm:$0x1] %v1461
        %v1463 = vld [vmem:[%s1418 + $0x38] sm:$0xf]
        %v1464 = vsel %vm1420, %v1400, %v1463
        %1465 = vst [vmem:[%s1418 + $0x38] sm:$0xf] %v1464
        %v1466 = vld [vmem:[%s1418 + $0x3c] sm:$0x1]
        %v1467 = vsel %vm334, %v1401, %v1466
        %1468 = vst [vmem:[%s1418 + $0x3c] sm:$0x1] %v1467
        %v1469 = vld [vmem:[%s323] sm:$0xf]
        %v1470 = vld [vmem:[%s323 + $0x8] sm:$0xf]
        %v1471 = vld [vmem:[%s323 + $0x10] sm:$0xf]
        %v1472 = vld [vmem:[%s323 + $0x18] sm:$0xf]
        %v1473 = vld [vmem:[%s323 + $0x20] sm:$0xf]
        %v1474 = vld [vmem:[%s323 + $0x28] sm:$0xf]
        %v1475 = vld [vmem:[%s323 + $0x30] sm:$0xf]
        %v1476 = vld [vmem:[%s323 + $0x38] sm:$0xf]
        %v1477 = vld [vmem:[#allocation2] sm:$0xf]
        %v1478 = vld [vmem:[#allocation2 + $0x8] sm:$0xf]
        %v1479 = vld [vmem:[#allocation2 + $0x10] sm:$0xf]
        %v1480 = vld [vmem:[#allocation2 + $0x18] sm:$0xf]
        %v1481 = vld [vmem:[#allocation2 + $0x20] sm:$0xf]
        %v1482 = vld [vmem:[#allocation2 + $0x28] sm:$0xf]
        %v1483 = vld [vmem:[#allocation2 + $0x30] sm:$0xf]
        %v1484 = vld [vmem:[#allocation2 + $0x38] sm:$0xf]
        %v1485 = vld [vmem:[%s323 + $0x4] sm:$0x1]
        %v1486 = vld [vmem:[%s323 + $0xc] sm:$0x1]
        %v1487 = vld [vmem:[%s323 + $0x14] sm:$0x1]
        %v1488 = vld [vmem:[%s323 + $0x1c] sm:$0x1]
        %v1489 = vld [vmem:[%s323 + $0x24] sm:$0x1]
        %v1490 = vld [vmem:[%s323 + $0x2c] sm:$0x1]
        %v1491 = vld [vmem:[%s323 + $0x34] sm:$0x1]
        %v1492 = vld [vmem:[%s323 + $0x3c] sm:$0x1]
        %v1493 = vld [vmem:[#allocation2 + $0x4] sm:$0x1]
        %v1494 = vld [vmem:[#allocation2 + $0xc] sm:$0x1]
        %v1495 = vld [vmem:[#allocation2 + $0x14] sm:$0x1]
        %v1496 = vld [vmem:[#allocation2 + $0x1c] sm:$0x1]
        %v1497 = vld [vmem:[#allocation2 + $0x24] sm:$0x1]
        %v1498 = vld [vmem:[#allocation2 + $0x2c] sm:$0x1]
        %v1499 = vld [vmem:[#allocation2 + $0x34] sm:$0x1]
        %v1500 = vld [vmem:[#allocation2 + $0x3c] sm:$0x1]
        %v1501 = vld [vmem:[%s323] sm:$0xe]
        %v1502 = vld [vmem:[%s323 + $0x8] sm:$0xe]
        %v1503 = vld [vmem:[%s323 + $0x10] sm:$0xe]
        %v1504 = vld [vmem:[%s323 + $0x18] sm:$0xe]
        %v1505 = vld [vmem:[%s323 + $0x20] sm:$0xe]
        %v1506 = vld [vmem:[%s323 + $0x28] sm:$0xe]
        %v1507 = vld [vmem:[%s323 + $0x30] sm:$0xe]
        %v1508 = vld [vmem:[%s323 + $0x38] sm:$0xe]
        %v1509 = vld [vmem:[#allocation2] sm:$0xe]
        %v1510 = vld [vmem:[#allocation2 + $0x8] sm:$0xe]
        %v1511 = vld [vmem:[#allocation2 + $0x10] sm:$0xe]
        %v1512 = vld [vmem:[#allocation2 + $0x18] sm:$0xe]
        %v1513 = vld [vmem:[#allocation2 + $0x20] sm:$0xe]
        %v1514 = vld [vmem:[#allocation2 + $0x28] sm:$0xe]
        %v1515 = vld [vmem:[#allocation2 + $0x30] sm:$0xe]
        %v1516 = vld [vmem:[#allocation2 + $0x38] sm:$0xe]
        %s1517 = scalar_lea.vmem %s323, 8
        %v1518 = vld [vmem:[%s1517] sm:$0xf]
        %v1519 = vld [vmem:[%s1517 + $0x8] sm:$0xf]
        %v1520 = vld [vmem:[%s1517 + $0x10] sm:$0xf]
        %v1521 = vld [vmem:[%s1517 + $0x18] sm:$0xf]
        %v1522 = vld [vmem:[%s1517 + $0x20] sm:$0xf]
        %v1523 = vld [vmem:[%s1517 + $0x28] sm:$0xf]
        %v1524 = vld [vmem:[%s1517 + $0x30] sm:$0xf]
        %v1525 = vld [vmem:[%s1517 + $0x38] sm:$0xf]
        %v1526 = vld [vmem:[%s1418] sm:$0xf]
        %v1527 = vld [vmem:[%s1418 + $0x8] sm:$0xf]
        %v1528 = vld [vmem:[%s1418 + $0x10] sm:$0xf]
        %v1529 = vld [vmem:[%s1418 + $0x18] sm:$0xf]
        %v1530 = vld [vmem:[%s1418 + $0x20] sm:$0xf]
        %v1531 = vld [vmem:[%s1418 + $0x28] sm:$0xf]
        %v1532 = vld [vmem:[%s1418 + $0x30] sm:$0xf]
        %v1533 = vld [vmem:[%s1418 + $0x38] sm:$0xf]
        %v1534 = vld [vmem:[%s1517 + $0x4] sm:$0x1]
        %v1535 = vld [vmem:[%s1517 + $0xc] sm:$0x1]
        %v1536 = vld [vmem:[%s1517 + $0x14] sm:$0x1]
        %v1537 = vld [vmem:[%s1517 + $0x1c] sm:$0x1]
        %v1538 = vld [vmem:[%s1517 + $0x24] sm:$0x1]
        %v1539 = vld [vmem:[%s1517 + $0x2c] sm:$0x1]
        %v1540 = vld [vmem:[%s1517 + $0x34] sm:$0x1]
        %v1541 = vld [vmem:[%s1517 + $0x3c] sm:$0x1]
        %v1542 = vld [vmem:[%s1418 + $0x4] sm:$0x1]
        %v1543 = vld [vmem:[%s1418 + $0xc] sm:$0x1]
        %v1544 = vld [vmem:[%s1418 + $0x14] sm:$0x1]
        %v1545 = vld [vmem:[%s1418 + $0x1c] sm:$0x1]
        %v1546 = vld [vmem:[%s1418 + $0x24] sm:$0x1]
        %v1547 = vld [vmem:[%s1418 + $0x2c] sm:$0x1]
        %v1548 = vld [vmem:[%s1418 + $0x34] sm:$0x1]
        %v1549 = vld [vmem:[%s1418 + $0x3c] sm:$0x1]
        %v1550 = vld [vmem:[%s1517] sm:$0xe]
        %v1551 = vld [vmem:[%s1517 + $0x8] sm:$0xe]
        %v1552 = vld [vmem:[%s1517 + $0x10] sm:$0xe]
        %v1553 = vld [vmem:[%s1517 + $0x18] sm:$0xe]
        %v1554 = vld [vmem:[%s1517 + $0x20] sm:$0xe]
        %v1555 = vld [vmem:[%s1517 + $0x28] sm:$0xe]
        %v1556 = vld [vmem:[%s1517 + $0x30] sm:$0xe]
        %v1557 = vld [vmem:[%s1517 + $0x38] sm:$0xe]
        %v1558 = vld [vmem:[%s1418] sm:$0xe]
        %v1559 = vld [vmem:[%s1418 + $0x8] sm:$0xe]
        %v1560 = vld [vmem:[%s1418 + $0x10] sm:$0xe]
        %v1561 = vld [vmem:[%s1418 + $0x18] sm:$0xe]
        %v1562 = vld [vmem:[%s1418 + $0x20] sm:$0xe]
        %v1563 = vld [vmem:[%s1418 + $0x28] sm:$0xe]
        %v1564 = vld [vmem:[%s1418 + $0x30] sm:$0xe]
        %v1565 = vld [vmem:[%s1418 + $0x38] sm:$0xe]
        %s1566 = scalar_lea.vmem %s323, 16
        %v1567 = vld [vmem:[%s1566] sm:$0xf]
        %v1568 = vld [vmem:[%s1566 + $0x8] sm:$0xf]
        %v1569 = vld [vmem:[%s1566 + $0x10] sm:$0xf]
        %v1570 = vld [vmem:[%s1566 + $0x18] sm:$0xf]
        %v1571 = vld [vmem:[%s1566 + $0x20] sm:$0xf]
        %v1572 = vld [vmem:[%s1566 + $0x28] sm:$0xf]
        %v1573 = vld [vmem:[%s1566 + $0x30] sm:$0xf]
        %v1574 = vld [vmem:[%s1566 + $0x38] sm:$0xf]
        %s1575 = scalar_lea.vmem [#allocation2], 16
        %v1576 = vld [vmem:[%s1575] sm:$0xf]
        %v1577 = vld [vmem:[%s1575 + $0x8] sm:$0xf]
        %v1578 = vld [vmem:[%s1575 + $0x10] sm:$0xf]
        %v1579 = vld [vmem:[%s1575 + $0x18] sm:$0xf]
        %v1580 = vld [vmem:[%s1575 + $0x20] sm:$0xf]
        %v1581 = vld [vmem:[%s1575 + $0x28] sm:$0xf]
        %v1582 = vld [vmem:[%s1575 + $0x30] sm:$0xf]
        %v1583 = vld [vmem:[%s1575 + $0x38] sm:$0xf]
        %v1584 = vld [vmem:[%s1566 + $0x4] sm:$0x1]
        %v1585 = vld [vmem:[%s1566 + $0xc] sm:$0x1]
        %v1586 = vld [vmem:[%s1566 + $0x14] sm:$0x1]
        %v1587 = vld [vmem:[%s1566 + $0x1c] sm:$0x1]
        %v1588 = vld [vmem:[%s1566 + $0x24] sm:$0x1]
        %v1589 = vld [vmem:[%s1566 + $0x2c] sm:$0x1]
        %v1590 = vld [vmem:[%s1566 + $0x34] sm:$0x1]
        %v1591 = vld [vmem:[%s1566 + $0x3c] sm:$0x1]
        %v1592 = vld [vmem:[%s1575 + $0x4] sm:$0x1]
        %v1593 = vld [vmem:[%s1575 + $0xc] sm:$0x1]
        %v1594 = vld [vmem:[%s1575 + $0x14] sm:$0x1]
        %v1595 = vld [vmem:[%s1575 + $0x1c] sm:$0x1]
        %v1596 = vld [vmem:[%s1575 + $0x24] sm:$0x1]
        %v1597 = vld [vmem:[%s1575 + $0x2c] sm:$0x1]
        %v1598 = vld [vmem:[%s1575 + $0x34] sm:$0x1]
        %v1599 = vld [vmem:[%s1575 + $0x3c] sm:$0x1]
        %v1600 = vld [vmem:[%s1566] sm:$0xe]
        %v1601 = vld [vmem:[%s1566 + $0x8] sm:$0xe]
        %v1602 = vld [vmem:[%s1566 + $0x10] sm:$0xe]
        %v1603 = vld [vmem:[%s1566 + $0x18] sm:$0xe]
        %v1604 = vld [vmem:[%s1566 + $0x20] sm:$0xe]
        %v1605 = vld [vmem:[%s1566 + $0x28] sm:$0xe]
        %v1606 = vld [vmem:[%s1566 + $0x30] sm:$0xe]
        %v1607 = vld [vmem:[%s1566 + $0x38] sm:$0xe]
        %v1608 = vld [vmem:[%s1575] sm:$0xe]
        %v1609 = vld [vmem:[%s1575 + $0x8] sm:$0xe]
        %v1610 = vld [vmem:[%s1575 + $0x10] sm:$0xe]
        %v1611 = vld [vmem:[%s1575 + $0x18] sm:$0xe]
        %v1612 = vld [vmem:[%s1575 + $0x20] sm:$0xe]
        %v1613 = vld [vmem:[%s1575 + $0x28] sm:$0xe]
        %v1614 = vld [vmem:[%s1575 + $0x30] sm:$0xe]
        %v1615 = vld [vmem:[%s1575 + $0x38] sm:$0xe]
        %v1624 = vunpack.c.l.b16 %v1469
        %v1625 = vunpack.c.l.b16 %v1470
        %v1626 = vunpack.c.l.b16 %v1471
        %v1627 = vunpack.c.l.b16 %v1472
        %v1628 = vunpack.c.l.b16 %v1473
        %v1629 = vunpack.c.l.b16 %v1474
        %v1630 = vunpack.c.l.b16 %v1475
        %v1631 = vunpack.c.l.b16 %v1476
        %v1632 = vpack.c.b16 %v1624, %v1624
        %v1633 = vpack.c.b16 %v1625, %v1625
        %v1634 = vpack.c.b16 %v1626, %v1626
        %v1635 = vpack.c.b16 %v1627, %v1627
        %v1636 = vpack.c.b16 %v1628, %v1628
        %v1637 = vpack.c.b16 %v1629, %v1629
        %v1638 = vpack.c.b16 %v1630, %v1630
        %v1639 = vpack.c.b16 %v1631, %v1631
        %1640 = vrot.lane.b32.xlu0 %v1632, 104
        %v1641 = vpop.permute.xlu0 %1640
        %1642 = vrot.lane.b32.xlu0 %v1633, 104
        %v1643 = vpop.permute.xlu0 %1642
        %1644 = vrot.lane.b32.xlu0 %v1634, 104
        %v1645 = vpop.permute.xlu0 %1644
        %1646 = vrot.lane.b32.xlu0 %v1635, 104
        %v1647 = vpop.permute.xlu0 %1646
        %1648 = vrot.lane.b32.xlu0 %v1636, 104
        %v1649 = vpop.permute.xlu0 %1648
        %1650 = vrot.lane.b32.xlu0 %v1637, 104
        %v1651 = vpop.permute.xlu0 %1650
        %1652 = vrot.lane.b32.xlu0 %v1638, 104
        %v1653 = vpop.permute.xlu0 %1652
        %1654 = vrot.lane.b32.xlu0 %v1639, 104
        %v1655 = vpop.permute.xlu0 %1654
        %v1664 = vunpack.c.l.b16 %v1477
        %v1665 = vunpack.c.l.b16 %v1478
        %v1666 = vunpack.c.l.b16 %v1479
        %v1667 = vunpack.c.l.b16 %v1480
        %v1668 = vunpack.c.l.b16 %v1481
        %v1669 = vunpack.c.l.b16 %v1482
        %v1670 = vunpack.c.l.b16 %v1483
        %v1671 = vunpack.c.l.b16 %v1484
        %v1672 = vpack.c.b16 %v1664, %v1664
        %v1673 = vpack.c.b16 %v1665, %v1665
        %v1674 = vpack.c.b16 %v1666, %v1666
        %v1675 = vpack.c.b16 %v1667, %v1667
        %v1676 = vpack.c.b16 %v1668, %v1668
        %v1677 = vpack.c.b16 %v1669, %v1669
        %v1678 = vpack.c.b16 %v1670, %v1670
        %v1679 = vpack.c.b16 %v1671, %v1671
        %1680 = vrot.lane.b32.xlu0 %v1672, 112
        %v1681 = vpop.permute.xlu0 %1680
        %1682 = vrot.lane.b32.xlu0 %v1673, 112
        %v1683 = vpop.permute.xlu0 %1682
        %1684 = vrot.lane.b32.xlu0 %v1674, 112
        %v1685 = vpop.permute.xlu0 %1684
        %1686 = vrot.lane.b32.xlu0 %v1675, 112
        %v1687 = vpop.permute.xlu0 %1686
        %1688 = vrot.lane.b32.xlu0 %v1676, 112
        %v1689 = vpop.permute.xlu0 %1688
        %1690 = vrot.lane.b32.xlu0 %v1677, 112
        %v1691 = vpop.permute.xlu0 %1690
        %1692 = vrot.lane.b32.xlu0 %v1678, 112
        %v1693 = vpop.permute.xlu0 %1692
        %1694 = vrot.lane.b32.xlu0 %v1679, 112
        %v1695 = vpop.permute.xlu0 %1694
        %v1704 = vunpack.c.l.b16 %v1485
        %v1705 = vunpack.c.l.b16 %v1486
        %v1706 = vunpack.c.l.b16 %v1487
        %v1707 = vunpack.c.l.b16 %v1488
        %v1708 = vunpack.c.l.b16 %v1489
        %v1709 = vunpack.c.l.b16 %v1490
        %v1710 = vunpack.c.l.b16 %v1491
        %v1711 = vunpack.c.l.b16 %v1492
        %v1712 = vpack.c.b16 %v1704, %v1624
        %v1713 = vpack.c.b16 %v1705, %v1625
        %v1714 = vpack.c.b16 %v1706, %v1626
        %v1715 = vpack.c.b16 %v1707, %v1627
        %v1716 = vpack.c.b16 %v1708, %v1628
        %v1717 = vpack.c.b16 %v1709, %v1629
        %v1718 = vpack.c.b16 %v1710, %v1630
        %v1719 = vpack.c.b16 %v1711, %v1631
        %v1721 = vshrl.u32 %v1712, 16
        %v1723 = vshll.u32 %v1712, 16
        %v1725 = vrot.slane %v1723, 1
        %v1726 = vor.u32 %v1721, %v1725
        %v1728 = vshrl.u32 %v1713, 16
        %v1730 = vshll.u32 %v1713, 16
        %v1732 = vrot.slane %v1730, 1
        %v1733 = vor.u32 %v1728, %v1732
        %v1735 = vshrl.u32 %v1714, 16
        %v1737 = vshll.u32 %v1714, 16
        %v1739 = vrot.slane %v1737, 1
        %v1740 = vor.u32 %v1735, %v1739
        %v1742 = vshrl.u32 %v1715, 16
        %v1744 = vshll.u32 %v1715, 16
        %v1746 = vrot.slane %v1744, 1
        %v1747 = vor.u32 %v1742, %v1746
        %v1749 = vshrl.u32 %v1716, 16
        %v1751 = vshll.u32 %v1716, 16
        %v1753 = vrot.slane %v1751, 1
        %v1754 = vor.u32 %v1749, %v1753
        %v1756 = vshrl.u32 %v1717, 16
        %v1758 = vshll.u32 %v1717, 16
        %v1760 = vrot.slane %v1758, 1
        %v1761 = vor.u32 %v1756, %v1760
        %v1763 = vshrl.u32 %v1718, 16
        %v1765 = vshll.u32 %v1718, 16
        %v1767 = vrot.slane %v1765, 1
        %v1768 = vor.u32 %v1763, %v1767
        %v1770 = vshrl.u32 %v1719, 16
        %v1772 = vshll.u32 %v1719, 16
        %v1774 = vrot.slane %v1772, 1
        %v1775 = vor.u32 %v1770, %v1774
        %v1784 = vunpack.c.l.b16 %v1493
        %v1785 = vunpack.c.l.b16 %v1494
        %v1786 = vunpack.c.l.b16 %v1495
        %v1787 = vunpack.c.l.b16 %v1496
        %v1788 = vunpack.c.l.b16 %v1497
        %v1789 = vunpack.c.l.b16 %v1498
        %v1790 = vunpack.c.l.b16 %v1499
        %v1791 = vunpack.c.l.b16 %v1500
        %v1792 = vpack.c.b16 %v1784, %v1664
        %v1793 = vpack.c.b16 %v1785, %v1665
        %v1794 = vpack.c.b16 %v1786, %v1666
        %v1795 = vpack.c.b16 %v1787, %v1667
        %v1796 = vpack.c.b16 %v1788, %v1668
        %v1797 = vpack.c.b16 %v1789, %v1669
        %v1798 = vpack.c.b16 %v1790, %v1670
        %v1799 = vpack.c.b16 %v1791, %v1671
        %v1801 = vshrl.u32 %v1792, 16
        %v1803 = vshll.u32 %v1792, 16
        %v1805 = vrot.slane %v1803, 1
        %v1806 = vor.u32 %v1801, %v1805
        %v1808 = vshrl.u32 %v1793, 16
        %v1810 = vshll.u32 %v1793, 16
        %v1812 = vrot.slane %v1810, 1
        %v1813 = vor.u32 %v1808, %v1812
        %v1815 = vshrl.u32 %v1794, 16
        %v1817 = vshll.u32 %v1794, 16
        %v1819 = vrot.slane %v1817, 1
        %v1820 = vor.u32 %v1815, %v1819
        %v1822 = vshrl.u32 %v1795, 16
        %v1824 = vshll.u32 %v1795, 16
        %v1826 = vrot.slane %v1824, 1
        %v1827 = vor.u32 %v1822, %v1826
        %v1829 = vshrl.u32 %v1796, 16
        %v1831 = vshll.u32 %v1796, 16
        %v1833 = vrot.slane %v1831, 1
        %v1834 = vor.u32 %v1829, %v1833
        %v1836 = vshrl.u32 %v1797, 16
        %v1838 = vshll.u32 %v1797, 16
        %v1840 = vrot.slane %v1838, 1
        %v1841 = vor.u32 %v1836, %v1840
        %v1843 = vshrl.u32 %v1798, 16
        %v1845 = vshll.u32 %v1798, 16
        %v1847 = vrot.slane %v1845, 1
        %v1848 = vor.u32 %v1843, %v1847
        %v1850 = vshrl.u32 %v1799, 16
        %v1852 = vshll.u32 %v1799, 16
        %v1854 = vrot.slane %v1852, 1
        %v1855 = vor.u32 %v1850, %v1854
        %1856 = vrot.lane.b32.xlu0 %v1806, 8
        %v1857 = vpop.permute.xlu0 %1856
        %1858 = vrot.lane.b32.xlu0 %v1813, 8
        %v1859 = vpop.permute.xlu0 %1858
        %1860 = vrot.lane.b32.xlu0 %v1820, 8
        %v1861 = vpop.permute.xlu0 %1860
        %1862 = vrot.lane.b32.xlu0 %v1827, 8
        %v1863 = vpop.permute.xlu0 %1862
        %1864 = vrot.lane.b32.xlu0 %v1834, 8
        %v1865 = vpop.permute.xlu0 %1864
        %1866 = vrot.lane.b32.xlu0 %v1841, 8
        %v1867 = vpop.permute.xlu0 %1866
        %1868 = vrot.lane.b32.xlu0 %v1848, 8
        %v1869 = vpop.permute.xlu0 %1868
        %1870 = vrot.lane.b32.xlu0 %v1855, 8
        %v1871 = vpop.permute.xlu0 %1870
        %1872 = vrot.lane.b32.xlu0 %v1726, 8
        %v1873 = vpop.permute.xlu0 %1872
        %1874 = vrot.lane.b32.xlu0 %v1733, 8
        %v1875 = vpop.permute.xlu0 %1874
        %1876 = vrot.lane.b32.xlu0 %v1740, 8
        %v1877 = vpop.permute.xlu0 %1876
        %1878 = vrot.lane.b32.xlu0 %v1747, 8
        %v1879 = vpop.permute.xlu0 %1878
        %1880 = vrot.lane.b32.xlu0 %v1754, 8
        %v1881 = vpop.permute.xlu0 %1880
        %1882 = vrot.lane.b32.xlu0 %v1761, 8
        %v1883 = vpop.permute.xlu0 %1882
        %1884 = vrot.lane.b32.xlu0 %v1768, 8
        %v1885 = vpop.permute.xlu0 %1884
        %1886 = vrot.lane.b32.xlu0 %v1775, 8
        %v1887 = vpop.permute.xlu0 %1886
        %1888 = vrot.lane.b32.xlu0 %v1806, 16
        %v1889 = vpop.permute.xlu0 %1888
        %1890 = vrot.lane.b32.xlu0 %v1813, 16
        %v1891 = vpop.permute.xlu0 %1890
        %1892 = vrot.lane.b32.xlu0 %v1820, 16
        %v1893 = vpop.permute.xlu0 %1892
        %1894 = vrot.lane.b32.xlu0 %v1827, 16
        %v1895 = vpop.permute.xlu0 %1894
        %1896 = vrot.lane.b32.xlu0 %v1834, 16
        %v1897 = vpop.permute.xlu0 %1896
        %1898 = vrot.lane.b32.xlu0 %v1841, 16
        %v1899 = vpop.permute.xlu0 %1898
        %1900 = vrot.lane.b32.xlu0 %v1848, 16
        %v1901 = vpop.permute.xlu0 %1900
        %1902 = vrot.lane.b32.xlu0 %v1855, 16
        %v1903 = vpop.permute.xlu0 %1902
        %v1912 = vunpack.c.l.b16 %v1501
        %v1913 = vunpack.c.l.b16 %v1502
        %v1914 = vunpack.c.l.b16 %v1503
        %v1915 = vunpack.c.l.b16 %v1504
        %v1916 = vunpack.c.l.b16 %v1505
        %v1917 = vunpack.c.l.b16 %v1506
        %v1918 = vunpack.c.l.b16 %v1507
        %v1919 = vunpack.c.l.b16 %v1508
        %v1920 = vpack.c.b16 %v1704, %v1912
        %v1921 = vpack.c.b16 %v1705, %v1913
        %v1922 = vpack.c.b16 %v1706, %v1914
        %v1923 = vpack.c.b16 %v1707, %v1915
        %v1924 = vpack.c.b16 %v1708, %v1916
        %v1925 = vpack.c.b16 %v1709, %v1917
        %v1926 = vpack.c.b16 %v1710, %v1918
        %v1927 = vpack.c.b16 %v1711, %v1919
        %v1928 = vrot.slane %v1920, 1
        %v1929 = vrot.slane %v1921, 1
        %v1930 = vrot.slane %v1922, 1
        %v1931 = vrot.slane %v1923, 1
        %v1932 = vrot.slane %v1924, 1
        %v1933 = vrot.slane %v1925, 1
        %v1934 = vrot.slane %v1926, 1
        %v1935 = vrot.slane %v1927, 1
        %1936 = vrot.lane.b32.xlu0 %v1928, 32
        %v1937 = vpop.permute.xlu0 %1936
        %1938 = vrot.lane.b32.xlu0 %v1929, 32
        %v1939 = vpop.permute.xlu0 %1938
        %1940 = vrot.lane.b32.xlu0 %v1930, 32
        %v1941 = vpop.permute.xlu0 %1940
        %1942 = vrot.lane.b32.xlu0 %v1931, 32
        %v1943 = vpop.permute.xlu0 %1942
        %1944 = vrot.lane.b32.xlu0 %v1932, 32
        %v1945 = vpop.permute.xlu0 %1944
        %1946 = vrot.lane.b32.xlu0 %v1933, 32
        %v1947 = vpop.permute.xlu0 %1946
        %1948 = vrot.lane.b32.xlu0 %v1934, 32
        %v1949 = vpop.permute.xlu0 %1948
        %1950 = vrot.lane.b32.xlu0 %v1935, 32
        %v1951 = vpop.permute.xlu0 %1950
        %v1960 = vunpack.c.l.b16 %v1509
        %v1961 = vunpack.c.l.b16 %v1510
        %v1962 = vunpack.c.l.b16 %v1511
        %v1963 = vunpack.c.l.b16 %v1512
        %v1964 = vunpack.c.l.b16 %v1513
        %v1965 = vunpack.c.l.b16 %v1514
        %v1966 = vunpack.c.l.b16 %v1515
        %v1967 = vunpack.c.l.b16 %v1516
        %v1968 = vpack.c.b16 %v1784, %v1960
        %v1969 = vpack.c.b16 %v1785, %v1961
        %v1970 = vpack.c.b16 %v1786, %v1962
        %v1971 = vpack.c.b16 %v1787, %v1963
        %v1972 = vpack.c.b16 %v1788, %v1964
        %v1973 = vpack.c.b16 %v1789, %v1965
        %v1974 = vpack.c.b16 %v1790, %v1966
        %v1975 = vpack.c.b16 %v1791, %v1967
        %v1976 = vrot.slane %v1968, 1
        %v1977 = vrot.slane %v1969, 1
        %v1978 = vrot.slane %v1970, 1
        %v1979 = vrot.slane %v1971, 1
        %v1980 = vrot.slane %v1972, 1
        %v1981 = vrot.slane %v1973, 1
        %v1982 = vrot.slane %v1974, 1
        %v1983 = vrot.slane %v1975, 1
        %1984 = vrot.lane.b32.xlu0 %v1976, 40
        %v1985 = vpop.permute.xlu0 %1984
        %1986 = vrot.lane.b32.xlu0 %v1977, 40
        %v1987 = vpop.permute.xlu0 %1986
        %1988 = vrot.lane.b32.xlu0 %v1978, 40
        %v1989 = vpop.permute.xlu0 %1988
        %1990 = vrot.lane.b32.xlu0 %v1979, 40
        %v1991 = vpop.permute.xlu0 %1990
        %1992 = vrot.lane.b32.xlu0 %v1980, 40
        %v1993 = vpop.permute.xlu0 %1992
        %1994 = vrot.lane.b32.xlu0 %v1981, 40
        %v1995 = vpop.permute.xlu0 %1994
        %1996 = vrot.lane.b32.xlu0 %v1982, 40
        %v1997 = vpop.permute.xlu0 %1996
        %1998 = vrot.lane.b32.xlu0 %v1983, 40
        %v1999 = vpop.permute.xlu0 %1998
        %v2008 = vunpack.c.l.b16 %v1518
        %v2009 = vunpack.c.l.b16 %v1519
        %v2010 = vunpack.c.l.b16 %v1520
        %v2011 = vunpack.c.l.b16 %v1521
        %v2012 = vunpack.c.l.b16 %v1522
        %v2013 = vunpack.c.l.b16 %v1523
        %v2014 = vunpack.c.l.b16 %v1524
        %v2015 = vunpack.c.l.b16 %v1525
        %v2016 = vpack.c.b16 %v2008, %v2008
        %v2017 = vpack.c.b16 %v2009, %v2009
        %v2018 = vpack.c.b16 %v2010, %v2010
        %v2019 = vpack.c.b16 %v2011, %v2011
        %v2020 = vpack.c.b16 %v2012, %v2012
        %v2021 = vpack.c.b16 %v2013, %v2013
        %v2022 = vpack.c.b16 %v2014, %v2014
        %v2023 = vpack.c.b16 %v2015, %v2015
        %2024 = vrot.lane.b32.xlu0 %v2016, 56
        %v2025 = vpop.permute.xlu0 %2024
        %2026 = vrot.lane.b32.xlu0 %v2017, 56
        %v2027 = vpop.permute.xlu0 %2026
        %2028 = vrot.lane.b32.xlu0 %v2018, 56
        %v2029 = vpop.permute.xlu0 %2028
        %2030 = vrot.lane.b32.xlu0 %v2019, 56
        %v2031 = vpop.permute.xlu0 %2030
        %2032 = vrot.lane.b32.xlu0 %v2020, 56
        %v2033 = vpop.permute.xlu0 %2032
        %2034 = vrot.lane.b32.xlu0 %v2021, 56
        %v2035 = vpop.permute.xlu0 %2034
        %2036 = vrot.lane.b32.xlu0 %v2022, 56
        %v2037 = vpop.permute.xlu0 %2036
        %2038 = vrot.lane.b32.xlu0 %v2023, 56
        %v2039 = vpop.permute.xlu0 %2038
        %v2048 = vunpack.c.l.b16 %v1526
        %v2049 = vunpack.c.l.b16 %v1527
        %v2050 = vunpack.c.l.b16 %v1528
        %v2051 = vunpack.c.l.b16 %v1529
        %v2052 = vunpack.c.l.b16 %v1530
        %v2053 = vunpack.c.l.b16 %v1531
        %v2054 = vunpack.c.l.b16 %v1532
        %v2055 = vunpack.c.l.b16 %v1533
        %v2056 = vpack.c.b16 %v2048, %v2048
        %v2057 = vpack.c.b16 %v2049, %v2049
        %v2058 = vpack.c.b16 %v2050, %v2050
        %v2059 = vpack.c.b16 %v2051, %v2051
        %v2060 = vpack.c.b16 %v2052, %v2052
        %v2061 = vpack.c.b16 %v2053, %v2053
        %v2062 = vpack.c.b16 %v2054, %v2054
        %v2063 = vpack.c.b16 %v2055, %v2055
        %2064 = vrot.lane.b32.xlu0 %v2056, 64
        %v2065 = vpop.permute.xlu0 %2064
        %2066 = vrot.lane.b32.xlu0 %v2057, 64
        %v2067 = vpop.permute.xlu0 %2066
        %2068 = vrot.lane.b32.xlu0 %v2058, 64
        %v2069 = vpop.permute.xlu0 %2068
        %2070 = vrot.lane.b32.xlu0 %v2059, 64
        %v2071 = vpop.permute.xlu0 %2070
        %2072 = vrot.lane.b32.xlu0 %v2060, 64
        %v2073 = vpop.permute.xlu0 %2072
        %2074 = vrot.lane.b32.xlu0 %v2061, 64
        %v2075 = vpop.permute.xlu0 %2074
        %2076 = vrot.lane.b32.xlu0 %v2062, 64
        %v2077 = vpop.permute.xlu0 %2076
        %2078 = vrot.lane.b32.xlu0 %v2063, 64
        %v2079 = vpop.permute.xlu0 %2078
        %v2088 = vunpack.c.l.b16 %v1534
        %v2089 = vunpack.c.l.b16 %v1535
        %v2090 = vunpack.c.l.b16 %v1536
        %v2091 = vunpack.c.l.b16 %v1537
        %v2092 = vunpack.c.l.b16 %v1538
        %v2093 = vunpack.c.l.b16 %v1539
        %v2094 = vunpack.c.l.b16 %v1540
        %v2095 = vunpack.c.l.b16 %v1541
        %v2096 = vpack.c.b16 %v2088, %v2008
        %v2097 = vpack.c.b16 %v2089, %v2009
        %v2098 = vpack.c.b16 %v2090, %v2010
        %v2099 = vpack.c.b16 %v2091, %v2011
        %v2100 = vpack.c.b16 %v2092, %v2012
        %v2101 = vpack.c.b16 %v2093, %v2013
        %v2102 = vpack.c.b16 %v2094, %v2014
        %v2103 = vpack.c.b16 %v2095, %v2015
        %v2105 = vshrl.u32 %v2096, 16
        %v2107 = vshll.u32 %v2096, 16
        %v2109 = vrot.slane %v2107, 1
        %v2110 = vor.u32 %v2105, %v2109
        %v2112 = vshrl.u32 %v2097, 16
        %v2114 = vshll.u32 %v2097, 16
        %v2116 = vrot.slane %v2114, 1
        %v2117 = vor.u32 %v2112, %v2116
        %v2119 = vshrl.u32 %v2098, 16
        %v2121 = vshll.u32 %v2098, 16
        %v2123 = vrot.slane %v2121, 1
        %v2124 = vor.u32 %v2119, %v2123
        %v2126 = vshrl.u32 %v2099, 16
        %v2128 = vshll.u32 %v2099, 16
        %v2130 = vrot.slane %v2128, 1
        %v2131 = vor.u32 %v2126, %v2130
        %v2133 = vshrl.u32 %v2100, 16
        %v2135 = vshll.u32 %v2100, 16
        %v2137 = vrot.slane %v2135, 1
        %v2138 = vor.u32 %v2133, %v2137
        %v2140 = vshrl.u32 %v2101, 16
        %v2142 = vshll.u32 %v2101, 16
        %v2144 = vrot.slane %v2142, 1
        %v2145 = vor.u32 %v2140, %v2144
        %v2147 = vshrl.u32 %v2102, 16
        %v2149 = vshll.u32 %v2102, 16
        %v2151 = vrot.slane %v2149, 1
        %v2152 = vor.u32 %v2147, %v2151
        %v2154 = vshrl.u32 %v2103, 16
        %v2156 = vshll.u32 %v2103, 16
        %v2158 = vrot.slane %v2156, 1
        %v2159 = vor.u32 %v2154, %v2158
        %2160 = vrot.lane.b32.xlu0 %v2110, 80
        %v2161 = vpop.permute.xlu0 %2160
        %2162 = vrot.lane.b32.xlu0 %v2117, 80
        %v2163 = vpop.permute.xlu0 %2162
        %2164 = vrot.lane.b32.xlu0 %v2124, 80
        %v2165 = vpop.permute.xlu0 %2164
        %2166 = vrot.lane.b32.xlu0 %v2131, 80
        %v2167 = vpop.permute.xlu0 %2166
        %2168 = vrot.lane.b32.xlu0 %v2138, 80
        %v2169 = vpop.permute.xlu0 %2168
        %2170 = vrot.lane.b32.xlu0 %v2145, 80
        %v2171 = vpop.permute.xlu0 %2170
        %2172 = vrot.lane.b32.xlu0 %v2152, 80
        %v2173 = vpop.permute.xlu0 %2172
        %2174 = vrot.lane.b32.xlu0 %v2159, 80
        %v2175 = vpop.permute.xlu0 %2174
        %v2184 = vunpack.c.l.b16 %v1542
        %v2185 = vunpack.c.l.b16 %v1543
        %v2186 = vunpack.c.l.b16 %v1544
        %v2187 = vunpack.c.l.b16 %v1545
        %v2188 = vunpack.c.l.b16 %v1546
        %v2189 = vunpack.c.l.b16 %v1547
        %v2190 = vunpack.c.l.b16 %v1548
        %v2191 = vunpack.c.l.b16 %v1549
        %v2192 = vpack.c.b16 %v2184, %v2048
        %v2193 = vpack.c.b16 %v2185, %v2049
        %v2194 = vpack.c.b16 %v2186, %v2050
        %v2195 = vpack.c.b16 %v2187, %v2051
        %v2196 = vpack.c.b16 %v2188, %v2052
        %v2197 = vpack.c.b16 %v2189, %v2053
        %v2198 = vpack.c.b16 %v2190, %v2054
        %v2199 = vpack.c.b16 %v2191, %v2055
        %v2201 = vshrl.u32 %v2192, 16
        %v2203 = vshll.u32 %v2192, 16
        %v2205 = vrot.slane %v2203, 1
        %v2206 = vor.u32 %v2201, %v2205
        %v2208 = vshrl.u32 %v2193, 16
        %v2210 = vshll.u32 %v2193, 16
        %v2212 = vrot.slane %v2210, 1
        %v2213 = vor.u32 %v2208, %v2212
        %v2215 = vshrl.u32 %v2194, 16
        %v2217 = vshll.u32 %v2194, 16
        %v2219 = vrot.slane %v2217, 1
        %v2220 = vor.u32 %v2215, %v2219
        %v2222 = vshrl.u32 %v2195, 16
        %v2224 = vshll.u32 %v2195, 16
        %v2226 = vrot.slane %v2224, 1
        %v2227 = vor.u32 %v2222, %v2226
        %v2229 = vshrl.u32 %v2196, 16
        %v2231 = vshll.u32 %v2196, 16
        %v2233 = vrot.slane %v2231, 1
        %v2234 = vor.u32 %v2229, %v2233
        %v2236 = vshrl.u32 %v2197, 16
        %v2238 = vshll.u32 %v2197, 16
        %v2240 = vrot.slane %v2238, 1
        %v2241 = vor.u32 %v2236, %v2240
        %v2243 = vshrl.u32 %v2198, 16
        %v2245 = vshll.u32 %v2198, 16
        %v2247 = vrot.slane %v2245, 1
        %v2248 = vor.u32 %v2243, %v2247
        %v2250 = vshrl.u32 %v2199, 16
        %v2252 = vshll.u32 %v2199, 16
        %v2254 = vrot.slane %v2252, 1
        %v2255 = vor.u32 %v2250, %v2254
        %2256 = vrot.lane.b32.xlu0 %v2206, 88
        %v2257 = vpop.permute.xlu0 %2256
        %2258 = vrot.lane.b32.xlu0 %v2213, 88
        %v2259 = vpop.permute.xlu0 %2258
        %2260 = vrot.lane.b32.xlu0 %v2220, 88
        %v2261 = vpop.permute.xlu0 %2260
        %2262 = vrot.lane.b32.xlu0 %v2227, 88
        %v2263 = vpop.permute.xlu0 %2262
        %2264 = vrot.lane.b32.xlu0 %v2234, 88
        %v2265 = vpop.permute.xlu0 %2264
        %2266 = vrot.lane.b32.xlu0 %v2241, 88
        %v2267 = vpop.permute.xlu0 %2266
        %2268 = vrot.lane.b32.xlu0 %v2248, 88
        %v2269 = vpop.permute.xlu0 %2268
        %2270 = vrot.lane.b32.xlu0 %v2255, 88
        %v2271 = vpop.permute.xlu0 %2270
        %2272 = vrot.lane.b32.xlu0 %v2110, 88
        %v2273 = vpop.permute.xlu0 %2272
        %2274 = vrot.lane.b32.xlu0 %v2117, 88
        %v2275 = vpop.permute.xlu0 %2274
        %2276 = vrot.lane.b32.xlu0 %v2124, 88
        %v2277 = vpop.permute.xlu0 %2276
        %2278 = vrot.lane.b32.xlu0 %v2131, 88
        %v2279 = vpop.permute.xlu0 %2278
        %2280 = vrot.lane.b32.xlu0 %v2138, 88
        %v2281 = vpop.permute.xlu0 %2280
        %2282 = vrot.lane.b32.xlu0 %v2145, 88
        %v2283 = vpop.permute.xlu0 %2282
        %2284 = vrot.lane.b32.xlu0 %v2152, 88
        %v2285 = vpop.permute.xlu0 %2284
        %2286 = vrot.lane.b32.xlu0 %v2159, 88
        %v2287 = vpop.permute.xlu0 %2286
        %2288 = vrot.lane.b32.xlu0 %v2206, 96
        %v2289 = vpop.permute.xlu0 %2288
        %2290 = vrot.lane.b32.xlu0 %v2213, 96
        %v2291 = vpop.permute.xlu0 %2290
        %2292 = vrot.lane.b32.xlu0 %v2220, 96
        %v2293 = vpop.permute.xlu0 %2292
        %2294 = vrot.lane.b32.xlu0 %v2227, 96
        %v2295 = vpop.permute.xlu0 %2294
        %2296 = vrot.lane.b32.xlu0 %v2234, 96
        %v2297 = vpop.permute.xlu0 %2296
        %2298 = vrot.lane.b32.xlu0 %v2241, 96
        %v2299 = vpop.permute.xlu0 %2298
        %2300 = vrot.lane.b32.xlu0 %v2248, 96
        %v2301 = vpop.permute.xlu0 %2300
        %2302 = vrot.lane.b32.xlu0 %v2255, 96
        %v2303 = vpop.permute.xlu0 %2302
        %v2312 = vunpack.c.l.b16 %v1550
        %v2313 = vunpack.c.l.b16 %v1551
        %v2314 = vunpack.c.l.b16 %v1552
        %v2315 = vunpack.c.l.b16 %v1553
        %v2316 = vunpack.c.l.b16 %v1554
        %v2317 = vunpack.c.l.b16 %v1555
        %v2318 = vunpack.c.l.b16 %v1556
        %v2319 = vunpack.c.l.b16 %v1557
        %v2320 = vpack.c.b16 %v2088, %v2312
        %v2321 = vpack.c.b16 %v2089, %v2313
        %v2322 = vpack.c.b16 %v2090, %v2314
        %v2323 = vpack.c.b16 %v2091, %v2315
        %v2324 = vpack.c.b16 %v2092, %v2316
        %v2325 = vpack.c.b16 %v2093, %v2317
        %v2326 = vpack.c.b16 %v2094, %v2318
        %v2327 = vpack.c.b16 %v2095, %v2319
        %v2328 = vrot.slane %v2320, 1
        %v2329 = vrot.slane %v2321, 1
        %v2330 = vrot.slane %v2322, 1
        %v2331 = vrot.slane %v2323, 1
        %v2332 = vrot.slane %v2324, 1
        %v2333 = vrot.slane %v2325, 1
        %v2334 = vrot.slane %v2326, 1
        %v2335 = vrot.slane %v2327, 1
        %2336 = vrot.lane.b32.xlu0 %v2328, 112
        %v2337 = vpop.permute.xlu0 %2336
        %2338 = vrot.lane.b32.xlu0 %v2329, 112
        %v2339 = vpop.permute.xlu0 %2338
        %2340 = vrot.lane.b32.xlu0 %v2330, 112
        %v2341 = vpop.permute.xlu0 %2340
        %2342 = vrot.lane.b32.xlu0 %v2331, 112
        %v2343 = vpop.permute.xlu0 %2342
        %2344 = vrot.lane.b32.xlu0 %v2332, 112
        %v2345 = vpop.permute.xlu0 %2344
        %2346 = vrot.lane.b32.xlu0 %v2333, 112
        %v2347 = vpop.permute.xlu0 %2346
        %2348 = vrot.lane.b32.xlu0 %v2334, 112
        %v2349 = vpop.permute.xlu0 %2348
        %2350 = vrot.lane.b32.xlu0 %v2335, 112
        %v2351 = vpop.permute.xlu0 %2350
        %v2360 = vunpack.c.l.b16 %v1558
        %v2361 = vunpack.c.l.b16 %v1559
        %v2362 = vunpack.c.l.b16 %v1560
        %v2363 = vunpack.c.l.b16 %v1561
        %v2364 = vunpack.c.l.b16 %v1562
        %v2365 = vunpack.c.l.b16 %v1563
        %v2366 = vunpack.c.l.b16 %v1564
        %v2367 = vunpack.c.l.b16 %v1565
        %v2368 = vpack.c.b16 %v2184, %v2360
        %v2369 = vpack.c.b16 %v2185, %v2361
        %v2370 = vpack.c.b16 %v2186, %v2362
        %v2371 = vpack.c.b16 %v2187, %v2363
        %v2372 = vpack.c.b16 %v2188, %v2364
        %v2373 = vpack.c.b16 %v2189, %v2365
        %v2374 = vpack.c.b16 %v2190, %v2366
        %v2375 = vpack.c.b16 %v2191, %v2367
        %v2376 = vrot.slane %v2368, 1
        %v2377 = vrot.slane %v2369, 1
        %v2378 = vrot.slane %v2370, 1
        %v2379 = vrot.slane %v2371, 1
        %v2380 = vrot.slane %v2372, 1
        %v2381 = vrot.slane %v2373, 1
        %v2382 = vrot.slane %v2374, 1
        %v2383 = vrot.slane %v2375, 1
        %2384 = vrot.lane.b32.xlu0 %v2376, 120
        %v2385 = vpop.permute.xlu0 %2384
        %2386 = vrot.lane.b32.xlu0 %v2377, 120
        %v2387 = vpop.permute.xlu0 %2386
        %2388 = vrot.lane.b32.xlu0 %v2378, 120
        %v2389 = vpop.permute.xlu0 %2388
        %2390 = vrot.lane.b32.xlu0 %v2379, 120
        %v2391 = vpop.permute.xlu0 %2390
        %2392 = vrot.lane.b32.xlu0 %v2380, 120
        %v2393 = vpop.permute.xlu0 %2392
        %2394 = vrot.lane.b32.xlu0 %v2381, 120
        %v2395 = vpop.permute.xlu0 %2394
        %2396 = vrot.lane.b32.xlu0 %v2382, 120
        %v2397 = vpop.permute.xlu0 %2396
        %2398 = vrot.lane.b32.xlu0 %v2383, 120
        %v2399 = vpop.permute.xlu0 %2398
        %v2402 = vsel %vm1064, %v1641, %v1681
        %v2405 = vsel %vm1064, %v1643, %v1683
        %v2408 = vsel %vm1064, %v1645, %v1685
        %v2411 = vsel %vm1064, %v1647, %v1687
        %v2414 = vsel %vm1064, %v1649, %v1689
        %v2417 = vsel %vm1064, %v1651, %v1691
        %v2420 = vsel %vm1064, %v1653, %v1693
        %v2423 = vsel %vm1064, %v1655, %v1695
        %v2425 = vsel %vm1089, %v2402, %v1726
        %v2427 = vsel %vm1089, %v2405, %v1733
        %v2429 = vsel %vm1089, %v2408, %v1740
        %v2431 = vsel %vm1089, %v2411, %v1747
        %v2433 = vsel %vm1089, %v2414, %v1754
        %v2435 = vsel %vm1089, %v2417, %v1761
        %v2437 = vsel %vm1089, %v2420, %v1768
        %v2439 = vsel %vm1089, %v2423, %v1775
        %v2441 = vsel %vm1106, %v2425, %v1857
        %v2443 = vsel %vm1106, %v2427, %v1859
        %v2445 = vsel %vm1106, %v2429, %v1861
        %v2447 = vsel %vm1106, %v2431, %v1863
        %v2449 = vsel %vm1106, %v2433, %v1865
        %v2451 = vsel %vm1106, %v2435, %v1867
        %v2453 = vsel %vm1106, %v2437, %v1869
        %v2455 = vsel %vm1106, %v2439, %v1871
        %v2457 = vsel %vm1123, %v2441, %v1873
        %v2459 = vsel %vm1123, %v2443, %v1875
        %v2461 = vsel %vm1123, %v2445, %v1877
        %v2463 = vsel %vm1123, %v2447, %v1879
        %v2465 = vsel %vm1123, %v2449, %v1881
        %v2467 = vsel %vm1123, %v2451, %v1883
        %v2469 = vsel %vm1123, %v2453, %v1885
        %v2471 = vsel %vm1123, %v2455, %v1887
        %v2473 = vsel %vm1140, %v2457, %v1889
        %v2475 = vsel %vm1140, %v2459, %v1891
        %v2477 = vsel %vm1140, %v2461, %v1893
        %v2479 = vsel %vm1140, %v2463, %v1895
        %v2481 = vsel %vm1140, %v2465, %v1897
        %v2483 = vsel %vm1140, %v2467, %v1899
        %v2485 = vsel %vm1140, %v2469, %v1901
        %v2487 = vsel %vm1140, %v2471, %v1903
        %v2489 = vsel %vm1157, %v2473, %v1937
        %v2491 = vsel %vm1157, %v2475, %v1939
        %v2493 = vsel %vm1157, %v2477, %v1941
        %v2495 = vsel %vm1157, %v2479, %v1943
        %v2497 = vsel %vm1157, %v2481, %v1945
        %v2499 = vsel %vm1157, %v2483, %v1947
        %v2501 = vsel %vm1157, %v2485, %v1949
        %v2503 = vsel %vm1157, %v2487, %v1951
        %v2505 = vsel %vm1174, %v2489, %v1985
        %v2507 = vsel %vm1174, %v2491, %v1987
        %v2509 = vsel %vm1174, %v2493, %v1989
        %v2511 = vsel %vm1174, %v2495, %v1991
        %v2513 = vsel %vm1174, %v2497, %v1993
        %v2515 = vsel %vm1174, %v2499, %v1995
        %v2517 = vsel %vm1174, %v2501, %v1997
        %v2519 = vsel %vm1174, %v2503, %v1999
        %v2521 = vsel %vm1191, %v2505, %v2025
        %v2523 = vsel %vm1191, %v2507, %v2027
        %v2525 = vsel %vm1191, %v2509, %v2029
        %v2527 = vsel %vm1191, %v2511, %v2031
        %v2529 = vsel %vm1191, %v2513, %v2033
        %v2531 = vsel %vm1191, %v2515, %v2035
        %v2533 = vsel %vm1191, %v2517, %v2037
        %v2535 = vsel %vm1191, %v2519, %v2039
        %v2537 = vsel %vm1264, %v2521, %v2065
        %v2539 = vsel %vm1264, %v2523, %v2067
        %v2541 = vsel %vm1264, %v2525, %v2069
        %v2543 = vsel %vm1264, %v2527, %v2071
        %v2545 = vsel %vm1264, %v2529, %v2073
        %v2547 = vsel %vm1264, %v2531, %v2075
        %v2549 = vsel %vm1264, %v2533, %v2077
        %v2551 = vsel %vm1264, %v2535, %v2079
        %vm2552 = vcmask 654336
        %v2554 = vsel %vm2552, %v2537, %v2161
        %v2556 = vsel %vm2552, %v2539, %v2163
        %v2558 = vsel %vm2552, %v2541, %v2165
        %v2560 = vsel %vm2552, %v2543, %v2167
        %v2562 = vsel %vm2552, %v2545, %v2169
        %v2564 = vsel %vm2552, %v2547, %v2171
        %v2566 = vsel %vm2552, %v2549, %v2173
        %v2568 = vsel %vm2552, %v2551, %v2175
        %vm2569 = vcmask 719872
        %v2571 = vsel %vm2569, %v2554, %v2257
        %v2573 = vsel %vm2569, %v2556, %v2259
        %v2575 = vsel %vm2569, %v2558, %v2261
        %v2577 = vsel %vm2569, %v2560, %v2263
        %v2579 = vsel %vm2569, %v2562, %v2265
        %v2581 = vsel %vm2569, %v2564, %v2267
        %v2583 = vsel %vm2569, %v2566, %v2269
        %v2585 = vsel %vm2569, %v2568, %v2271
        %vm2586 = vcmask 785408
        %v2588 = vsel %vm2586, %v2571, %v2273
        %v2590 = vsel %vm2586, %v2573, %v2275
        %v2592 = vsel %vm2586, %v2575, %v2277
        %v2594 = vsel %vm2586, %v2577, %v2279
        %v2596 = vsel %vm2586, %v2579, %v2281
        %v2598 = vsel %vm2586, %v2581, %v2283
        %v2600 = vsel %vm2586, %v2583, %v2285
        %v2602 = vsel %vm2586, %v2585, %v2287
        %vm2603 = vcmask 850944
        %v2605 = vsel %vm2603, %v2588, %v2289
        %v2607 = vsel %vm2603, %v2590, %v2291
        %v2609 = vsel %vm2603, %v2592, %v2293
        %v2611 = vsel %vm2603, %v2594, %v2295
        %v2613 = vsel %vm2603, %v2596, %v2297
        %v2615 = vsel %vm2603, %v2598, %v2299
        %v2617 = vsel %vm2603, %v2600, %v2301
        %v2619 = vsel %vm2603, %v2602, %v2303
        %vm2620 = vcmask 916480
        %v2622 = vsel %vm2620, %v2605, %v2337
        %v2624 = vsel %vm2620, %v2607, %v2339
        %v2626 = vsel %vm2620, %v2609, %v2341
        %v2628 = vsel %vm2620, %v2611, %v2343
        %v2630 = vsel %vm2620, %v2613, %v2345
        %v2632 = vsel %vm2620, %v2615, %v2347
        %v2634 = vsel %vm2620, %v2617, %v2349
        %v2636 = vsel %vm2620, %v2619, %v2351
        %vm2637 = vcmask 982016
        %v2639 = vsel %vm2637, %v2622, %v2385
        %v2641 = vsel %vm2637, %v2624, %v2387
        %v2643 = vsel %vm2637, %v2626, %v2389
        %v2645 = vsel %vm2637, %v2628, %v2391
        %v2647 = vsel %vm2637, %v2630, %v2393
        %v2649 = vsel %vm2637, %v2632, %v2395
        %v2651 = vsel %vm2637, %v2634, %v2397
        %v2653 = vsel %vm2637, %v2636, %v2399
        %2654 = vrot.lane.b32.xlu0 %v2016, 104
        %v2655 = vpop.permute.xlu0 %2654
        %2656 = vrot.lane.b32.xlu0 %v2017, 104
        %v2657 = vpop.permute.xlu0 %2656
        %2658 = vrot.lane.b32.xlu0 %v2018, 104
        %v2659 = vpop.permute.xlu0 %2658
        %2660 = vrot.lane.b32.xlu0 %v2019, 104
        %v2661 = vpop.permute.xlu0 %2660
        %2662 = vrot.lane.b32.xlu0 %v2020, 104
        %v2663 = vpop.permute.xlu0 %2662
        %2664 = vrot.lane.b32.xlu0 %v2021, 104
        %v2665 = vpop.permute.xlu0 %2664
        %2666 = vrot.lane.b32.xlu0 %v2022, 104
        %v2667 = vpop.permute.xlu0 %2666
        %2668 = vrot.lane.b32.xlu0 %v2023, 104
        %v2669 = vpop.permute.xlu0 %2668
        %2670 = vrot.lane.b32.xlu0 %v2056, 112
        %v2671 = vpop.permute.xlu0 %2670
        %2672 = vrot.lane.b32.xlu0 %v2057, 112
        %v2673 = vpop.permute.xlu0 %2672
        %2674 = vrot.lane.b32.xlu0 %v2058, 112
        %v2675 = vpop.permute.xlu0 %2674
        %2676 = vrot.lane.b32.xlu0 %v2059, 112
        %v2677 = vpop.permute.xlu0 %2676
        %2678 = vrot.lane.b32.xlu0 %v2060, 112
        %v2679 = vpop.permute.xlu0 %2678
        %2680 = vrot.lane.b32.xlu0 %v2061, 112
        %v2681 = vpop.permute.xlu0 %2680
        %2682 = vrot.lane.b32.xlu0 %v2062, 112
        %v2683 = vpop.permute.xlu0 %2682
        %2684 = vrot.lane.b32.xlu0 %v2063, 112
        %v2685 = vpop.permute.xlu0 %2684
        %2686 = vrot.lane.b32.xlu0 %v2206, 8
        %v2687 = vpop.permute.xlu0 %2686
        %2688 = vrot.lane.b32.xlu0 %v2213, 8
        %v2689 = vpop.permute.xlu0 %2688
        %2690 = vrot.lane.b32.xlu0 %v2220, 8
        %v2691 = vpop.permute.xlu0 %2690
        %2692 = vrot.lane.b32.xlu0 %v2227, 8
        %v2693 = vpop.permute.xlu0 %2692
        %2694 = vrot.lane.b32.xlu0 %v2234, 8
        %v2695 = vpop.permute.xlu0 %2694
        %2696 = vrot.lane.b32.xlu0 %v2241, 8
        %v2697 = vpop.permute.xlu0 %2696
        %2698 = vrot.lane.b32.xlu0 %v2248, 8
        %v2699 = vpop.permute.xlu0 %2698
        %2700 = vrot.lane.b32.xlu0 %v2255, 8
        %v2701 = vpop.permute.xlu0 %2700
        %2702 = vrot.lane.b32.xlu0 %v2110, 8
        %v2703 = vpop.permute.xlu0 %2702
        %2704 = vrot.lane.b32.xlu0 %v2117, 8
        %v2705 = vpop.permute.xlu0 %2704
        %2706 = vrot.lane.b32.xlu0 %v2124, 8
        %v2707 = vpop.permute.xlu0 %2706
        %2708 = vrot.lane.b32.xlu0 %v2131, 8
        %v2709 = vpop.permute.xlu0 %2708
        %2710 = vrot.lane.b32.xlu0 %v2138, 8
        %v2711 = vpop.permute.xlu0 %2710
        %2712 = vrot.lane.b32.xlu0 %v2145, 8
        %v2713 = vpop.permute.xlu0 %2712
        %2714 = vrot.lane.b32.xlu0 %v2152, 8
        %v2715 = vpop.permute.xlu0 %2714
        %2716 = vrot.lane.b32.xlu0 %v2159, 8
        %v2717 = vpop.permute.xlu0 %2716
        %2718 = vrot.lane.b32.xlu0 %v2206, 16
        %v2719 = vpop.permute.xlu0 %2718
        %2720 = vrot.lane.b32.xlu0 %v2213, 16
        %v2721 = vpop.permute.xlu0 %2720
        %2722 = vrot.lane.b32.xlu0 %v2220, 16
        %v2723 = vpop.permute.xlu0 %2722
        %2724 = vrot.lane.b32.xlu0 %v2227, 16
        %v2725 = vpop.permute.xlu0 %2724
        %2726 = vrot.lane.b32.xlu0 %v2234, 16
        %v2727 = vpop.permute.xlu0 %2726
        %2728 = vrot.lane.b32.xlu0 %v2241, 16
        %v2729 = vpop.permute.xlu0 %2728
        %2730 = vrot.lane.b32.xlu0 %v2248, 16
        %v2731 = vpop.permute.xlu0 %2730
        %2732 = vrot.lane.b32.xlu0 %v2255, 16
        %v2733 = vpop.permute.xlu0 %2732
        %2734 = vrot.lane.b32.xlu0 %v2328, 32
        %v2735 = vpop.permute.xlu0 %2734
        %2736 = vrot.lane.b32.xlu0 %v2329, 32
        %v2737 = vpop.permute.xlu0 %2736
        %2738 = vrot.lane.b32.xlu0 %v2330, 32
        %v2739 = vpop.permute.xlu0 %2738
        %2740 = vrot.lane.b32.xlu0 %v2331, 32
        %v2741 = vpop.permute.xlu0 %2740
        %2742 = vrot.lane.b32.xlu0 %v2332, 32
        %v2743 = vpop.permute.xlu0 %2742
        %2744 = vrot.lane.b32.xlu0 %v2333, 32
        %v2745 = vpop.permute.xlu0 %2744
        %2746 = vrot.lane.b32.xlu0 %v2334, 32
        %v2747 = vpop.permute.xlu0 %2746
        %2748 = vrot.lane.b32.xlu0 %v2335, 32
        %v2749 = vpop.permute.xlu0 %2748
        %2750 = vrot.lane.b32.xlu0 %v2376, 40
        %v2751 = vpop.permute.xlu0 %2750
        %2752 = vrot.lane.b32.xlu0 %v2377, 40
        %v2753 = vpop.permute.xlu0 %2752
        %2754 = vrot.lane.b32.xlu0 %v2378, 40
        %v2755 = vpop.permute.xlu0 %2754
        %2756 = vrot.lane.b32.xlu0 %v2379, 40
        %v2757 = vpop.permute.xlu0 %2756
        %2758 = vrot.lane.b32.xlu0 %v2380, 40
        %v2759 = vpop.permute.xlu0 %2758
        %2760 = vrot.lane.b32.xlu0 %v2381, 40
        %v2761 = vpop.permute.xlu0 %2760
        %2762 = vrot.lane.b32.xlu0 %v2382, 40
        %v2763 = vpop.permute.xlu0 %2762
        %2764 = vrot.lane.b32.xlu0 %v2383, 40
        %v2765 = vpop.permute.xlu0 %2764
        %v2774 = vunpack.c.l.b16 %v1567
        %v2775 = vunpack.c.l.b16 %v1568
        %v2776 = vunpack.c.l.b16 %v1569
        %v2777 = vunpack.c.l.b16 %v1570
        %v2778 = vunpack.c.l.b16 %v1571
        %v2779 = vunpack.c.l.b16 %v1572
        %v2780 = vunpack.c.l.b16 %v1573
        %v2781 = vunpack.c.l.b16 %v1574
        %v2782 = vpack.c.b16 %v2774, %v2774
        %v2783 = vpack.c.b16 %v2775, %v2775
        %v2784 = vpack.c.b16 %v2776, %v2776
        %v2785 = vpack.c.b16 %v2777, %v2777
        %v2786 = vpack.c.b16 %v2778, %v2778
        %v2787 = vpack.c.b16 %v2779, %v2779
        %v2788 = vpack.c.b16 %v2780, %v2780
        %v2789 = vpack.c.b16 %v2781, %v2781
        %2790 = vrot.lane.b32.xlu0 %v2782, 56
        %v2791 = vpop.permute.xlu0 %2790
        %2792 = vrot.lane.b32.xlu0 %v2783, 56
        %v2793 = vpop.permute.xlu0 %2792
        %2794 = vrot.lane.b32.xlu0 %v2784, 56
        %v2795 = vpop.permute.xlu0 %2794
        %2796 = vrot.lane.b32.xlu0 %v2785, 56
        %v2797 = vpop.permute.xlu0 %2796
        %2798 = vrot.lane.b32.xlu0 %v2786, 56
        %v2799 = vpop.permute.xlu0 %2798
        %2800 = vrot.lane.b32.xlu0 %v2787, 56
        %v2801 = vpop.permute.xlu0 %2800
        %2802 = vrot.lane.b32.xlu0 %v2788, 56
        %v2803 = vpop.permute.xlu0 %2802
        %2804 = vrot.lane.b32.xlu0 %v2789, 56
        %v2805 = vpop.permute.xlu0 %2804
        %v2814 = vunpack.c.l.b16 %v1576
        %v2815 = vunpack.c.l.b16 %v1577
        %v2816 = vunpack.c.l.b16 %v1578
        %v2817 = vunpack.c.l.b16 %v1579
        %v2818 = vunpack.c.l.b16 %v1580
        %v2819 = vunpack.c.l.b16 %v1581
        %v2820 = vunpack.c.l.b16 %v1582
        %v2821 = vunpack.c.l.b16 %v1583
        %v2822 = vpack.c.b16 %v2814, %v2814
        %v2823 = vpack.c.b16 %v2815, %v2815
        %v2824 = vpack.c.b16 %v2816, %v2816
        %v2825 = vpack.c.b16 %v2817, %v2817
        %v2826 = vpack.c.b16 %v2818, %v2818
        %v2827 = vpack.c.b16 %v2819, %v2819
        %v2828 = vpack.c.b16 %v2820, %v2820
        %v2829 = vpack.c.b16 %v2821, %v2821
        %2830 = vrot.lane.b32.xlu0 %v2822, 64
        %v2831 = vpop.permute.xlu0 %2830
        %2832 = vrot.lane.b32.xlu0 %v2823, 64
        %v2833 = vpop.permute.xlu0 %2832
        %2834 = vrot.lane.b32.xlu0 %v2824, 64
        %v2835 = vpop.permute.xlu0 %2834
        %2836 = vrot.lane.b32.xlu0 %v2825, 64
        %v2837 = vpop.permute.xlu0 %2836
        %2838 = vrot.lane.b32.xlu0 %v2826, 64
        %v2839 = vpop.permute.xlu0 %2838
        %2840 = vrot.lane.b32.xlu0 %v2827, 64
        %v2841 = vpop.permute.xlu0 %2840
        %2842 = vrot.lane.b32.xlu0 %v2828, 64
        %v2843 = vpop.permute.xlu0 %2842
        %2844 = vrot.lane.b32.xlu0 %v2829, 64
        %v2845 = vpop.permute.xlu0 %2844
        %v2854 = vunpack.c.l.b16 %v1584
        %v2855 = vunpack.c.l.b16 %v1585
        %v2856 = vunpack.c.l.b16 %v1586
        %v2857 = vunpack.c.l.b16 %v1587
        %v2858 = vunpack.c.l.b16 %v1588
        %v2859 = vunpack.c.l.b16 %v1589
        %v2860 = vunpack.c.l.b16 %v1590
        %v2861 = vunpack.c.l.b16 %v1591
        %v2862 = vpack.c.b16 %v2854, %v2774
        %v2863 = vpack.c.b16 %v2855, %v2775
        %v2864 = vpack.c.b16 %v2856, %v2776
        %v2865 = vpack.c.b16 %v2857, %v2777
        %v2866 = vpack.c.b16 %v2858, %v2778
        %v2867 = vpack.c.b16 %v2859, %v2779
        %v2868 = vpack.c.b16 %v2860, %v2780
        %v2869 = vpack.c.b16 %v2861, %v2781
        %v2871 = vshrl.u32 %v2862, 16
        %v2873 = vshll.u32 %v2862, 16
        %v2875 = vrot.slane %v2873, 1
        %v2876 = vor.u32 %v2871, %v2875
        %v2878 = vshrl.u32 %v2863, 16
        %v2880 = vshll.u32 %v2863, 16
        %v2882 = vrot.slane %v2880, 1
        %v2883 = vor.u32 %v2878, %v2882
        %v2885 = vshrl.u32 %v2864, 16
        %v2887 = vshll.u32 %v2864, 16
        %v2889 = vrot.slane %v2887, 1
        %v2890 = vor.u32 %v2885, %v2889
        %v2892 = vshrl.u32 %v2865, 16
        %v2894 = vshll.u32 %v2865, 16
        %v2896 = vrot.slane %v2894, 1
        %v2897 = vor.u32 %v2892, %v2896
        %v2899 = vshrl.u32 %v2866, 16
        %v2901 = vshll.u32 %v2866, 16
        %v2903 = vrot.slane %v2901, 1
        %v2904 = vor.u32 %v2899, %v2903
        %v2906 = vshrl.u32 %v2867, 16
        %v2908 = vshll.u32 %v2867, 16
        %v2910 = vrot.slane %v2908, 1
        %v2911 = vor.u32 %v2906, %v2910
        %v2913 = vshrl.u32 %v2868, 16
        %v2915 = vshll.u32 %v2868, 16
        %v2917 = vrot.slane %v2915, 1
        %v2918 = vor.u32 %v2913, %v2917
        %v2920 = vshrl.u32 %v2869, 16
        %v2922 = vshll.u32 %v2869, 16
        %v2924 = vrot.slane %v2922, 1
        %v2925 = vor.u32 %v2920, %v2924
        %2926 = vrot.lane.b32.xlu0 %v2876, 80
        %v2927 = vpop.permute.xlu0 %2926
        %2928 = vrot.lane.b32.xlu0 %v2883, 80
        %v2929 = vpop.permute.xlu0 %2928
        %2930 = vrot.lane.b32.xlu0 %v2890, 80
        %v2931 = vpop.permute.xlu0 %2930
        %2932 = vrot.lane.b32.xlu0 %v2897, 80
        %v2933 = vpop.permute.xlu0 %2932
        %2934 = vrot.lane.b32.xlu0 %v2904, 80
        %v2935 = vpop.permute.xlu0 %2934
        %2936 = vrot.lane.b32.xlu0 %v2911, 80
        %v2937 = vpop.permute.xlu0 %2936
        %2938 = vrot.lane.b32.xlu0 %v2918, 80
        %v2939 = vpop.permute.xlu0 %2938
        %2940 = vrot.lane.b32.xlu0 %v2925, 80
        %v2941 = vpop.permute.xlu0 %2940
        %v2950 = vunpack.c.l.b16 %v1592
        %v2951 = vunpack.c.l.b16 %v1593
        %v2952 = vunpack.c.l.b16 %v1594
        %v2953 = vunpack.c.l.b16 %v1595
        %v2954 = vunpack.c.l.b16 %v1596
        %v2955 = vunpack.c.l.b16 %v1597
        %v2956 = vunpack.c.l.b16 %v1598
        %v2957 = vunpack.c.l.b16 %v1599
        %v2958 = vpack.c.b16 %v2950, %v2814
        %v2959 = vpack.c.b16 %v2951, %v2815
        %v2960 = vpack.c.b16 %v2952, %v2816
        %v2961 = vpack.c.b16 %v2953, %v2817
        %v2962 = vpack.c.b16 %v2954, %v2818
        %v2963 = vpack.c.b16 %v2955, %v2819
        %v2964 = vpack.c.b16 %v2956, %v2820
        %v2965 = vpack.c.b16 %v2957, %v2821
        %v2967 = vshrl.u32 %v2958, 16
        %v2969 = vshll.u32 %v2958, 16
        %v2971 = vrot.slane %v2969, 1
        %v2972 = vor.u32 %v2967, %v2971
        %v2974 = vshrl.u32 %v2959, 16
        %v2976 = vshll.u32 %v2959, 16
        %v2978 = vrot.slane %v2976, 1
        %v2979 = vor.u32 %v2974, %v2978
        %v2981 = vshrl.u32 %v2960, 16
        %v2983 = vshll.u32 %v2960, 16
        %v2985 = vrot.slane %v2983, 1
        %v2986 = vor.u32 %v2981, %v2985
        %v2988 = vshrl.u32 %v2961, 16
        %v2990 = vshll.u32 %v2961, 16
        %v2992 = vrot.slane %v2990, 1
        %v2993 = vor.u32 %v2988, %v2992
        %v2995 = vshrl.u32 %v2962, 16
        %v2997 = vshll.u32 %v2962, 16
        %v2999 = vrot.slane %v2997, 1
        %v3000 = vor.u32 %v2995, %v2999
        %v3002 = vshrl.u32 %v2963, 16
        %v3004 = vshll.u32 %v2963, 16
        %v3006 = vrot.slane %v3004, 1
        %v3007 = vor.u32 %v3002, %v3006
        %v3009 = vshrl.u32 %v2964, 16
        %v3011 = vshll.u32 %v2964, 16
        %v3013 = vrot.slane %v3011, 1
        %v3014 = vor.u32 %v3009, %v3013
        %v3016 = vshrl.u32 %v2965, 16
        %v3018 = vshll.u32 %v2965, 16
        %v3020 = vrot.slane %v3018, 1
        %v3021 = vor.u32 %v3016, %v3020
        %3022 = vrot.lane.b32.xlu0 %v2972, 88
        %v3023 = vpop.permute.xlu0 %3022
        %3024 = vrot.lane.b32.xlu0 %v2979, 88
        %v3025 = vpop.permute.xlu0 %3024
        %3026 = vrot.lane.b32.xlu0 %v2986, 88
        %v3027 = vpop.permute.xlu0 %3026
        %3028 = vrot.lane.b32.xlu0 %v2993, 88
        %v3029 = vpop.permute.xlu0 %3028
        %3030 = vrot.lane.b32.xlu0 %v3000, 88
        %v3031 = vpop.permute.xlu0 %3030
        %3032 = vrot.lane.b32.xlu0 %v3007, 88
        %v3033 = vpop.permute.xlu0 %3032
        %3034 = vrot.lane.b32.xlu0 %v3014, 88
        %v3035 = vpop.permute.xlu0 %3034
        %3036 = vrot.lane.b32.xlu0 %v3021, 88
        %v3037 = vpop.permute.xlu0 %3036
        %3038 = vrot.lane.b32.xlu0 %v2876, 88
        %v3039 = vpop.permute.xlu0 %3038
        %3040 = vrot.lane.b32.xlu0 %v2883, 88
        %v3041 = vpop.permute.xlu0 %3040
        %3042 = vrot.lane.b32.xlu0 %v2890, 88
        %v3043 = vpop.permute.xlu0 %3042
        %3044 = vrot.lane.b32.xlu0 %v2897, 88
        %v3045 = vpop.permute.xlu0 %3044
        %3046 = vrot.lane.b32.xlu0 %v2904, 88
        %v3047 = vpop.permute.xlu0 %3046
        %3048 = vrot.lane.b32.xlu0 %v2911, 88
        %v3049 = vpop.permute.xlu0 %3048
        %3050 = vrot.lane.b32.xlu0 %v2918, 88
        %v3051 = vpop.permute.xlu0 %3050
        %3052 = vrot.lane.b32.xlu0 %v2925, 88
        %v3053 = vpop.permute.xlu0 %3052
        %3054 = vrot.lane.b32.xlu0 %v2972, 96
        %v3055 = vpop.permute.xlu0 %3054
        %3056 = vrot.lane.b32.xlu0 %v2979, 96
        %v3057 = vpop.permute.xlu0 %3056
        %3058 = vrot.lane.b32.xlu0 %v2986, 96
        %v3059 = vpop.permute.xlu0 %3058
        %3060 = vrot.lane.b32.xlu0 %v2993, 96
        %v3061 = vpop.permute.xlu0 %3060
        %3062 = vrot.lane.b32.xlu0 %v3000, 96
        %v3063 = vpop.permute.xlu0 %3062
        %3064 = vrot.lane.b32.xlu0 %v3007, 96
        %v3065 = vpop.permute.xlu0 %3064
        %3066 = vrot.lane.b32.xlu0 %v3014, 96
        %v3067 = vpop.permute.xlu0 %3066
        %3068 = vrot.lane.b32.xlu0 %v3021, 96
        %v3069 = vpop.permute.xlu0 %3068
        %v3078 = vunpack.c.l.b16 %v1600
        %v3079 = vunpack.c.l.b16 %v1601
        %v3080 = vunpack.c.l.b16 %v1602
        %v3081 = vunpack.c.l.b16 %v1603
        %v3082 = vunpack.c.l.b16 %v1604
        %v3083 = vunpack.c.l.b16 %v1605
        %v3084 = vunpack.c.l.b16 %v1606
        %v3085 = vunpack.c.l.b16 %v1607
        %v3086 = vpack.c.b16 %v2854, %v3078
        %v3087 = vpack.c.b16 %v2855, %v3079
        %v3088 = vpack.c.b16 %v2856, %v3080
        %v3089 = vpack.c.b16 %v2857, %v3081
        %v3090 = vpack.c.b16 %v2858, %v3082
        %v3091 = vpack.c.b16 %v2859, %v3083
        %v3092 = vpack.c.b16 %v2860, %v3084
        %v3093 = vpack.c.b16 %v2861, %v3085
        %v3094 = vrot.slane %v3086, 1
        %v3095 = vrot.slane %v3087, 1
        %v3096 = vrot.slane %v3088, 1
        %v3097 = vrot.slane %v3089, 1
        %v3098 = vrot.slane %v3090, 1
        %v3099 = vrot.slane %v3091, 1
        %v3100 = vrot.slane %v3092, 1
        %v3101 = vrot.slane %v3093, 1
        %3102 = vrot.lane.b32.xlu0 %v3094, 112
        %v3103 = vpop.permute.xlu0 %3102
        %3104 = vrot.lane.b32.xlu0 %v3095, 112
        %v3105 = vpop.permute.xlu0 %3104
        %3106 = vrot.lane.b32.xlu0 %v3096, 112
        %v3107 = vpop.permute.xlu0 %3106
        %3108 = vrot.lane.b32.xlu0 %v3097, 112
        %v3109 = vpop.permute.xlu0 %3108
        %3110 = vrot.lane.b32.xlu0 %v3098, 112
        %v3111 = vpop.permute.xlu0 %3110
        %3112 = vrot.lane.b32.xlu0 %v3099, 112
        %v3113 = vpop.permute.xlu0 %3112
        %3114 = vrot.lane.b32.xlu0 %v3100, 112
        %v3115 = vpop.permute.xlu0 %3114
        %3116 = vrot.lane.b32.xlu0 %v3101, 112
        %v3117 = vpop.permute.xlu0 %3116
        %v3126 = vunpack.c.l.b16 %v1608
        %v3127 = vunpack.c.l.b16 %v1609
        %v3128 = vunpack.c.l.b16 %v1610
        %v3129 = vunpack.c.l.b16 %v1611
        %v3130 = vunpack.c.l.b16 %v1612
        %v3131 = vunpack.c.l.b16 %v1613
        %v3132 = vunpack.c.l.b16 %v1614
        %v3133 = vunpack.c.l.b16 %v1615
        %v3134 = vpack.c.b16 %v2950, %v3126
        %v3135 = vpack.c.b16 %v2951, %v3127
        %v3136 = vpack.c.b16 %v2952, %v3128
        %v3137 = vpack.c.b16 %v2953, %v3129
        %v3138 = vpack.c.b16 %v2954, %v3130
        %v3139 = vpack.c.b16 %v2955, %v3131
        %v3140 = vpack.c.b16 %v2956, %v3132
        %v3141 = vpack.c.b16 %v2957, %v3133
        %v3142 = vrot.slane %v3134, 1
        %v3143 = vrot.slane %v3135, 1
        %v3144 = vrot.slane %v3136, 1
        %v3145 = vrot.slane %v3137, 1
        %v3146 = vrot.slane %v3138, 1
        %v3147 = vrot.slane %v3139, 1
        %v3148 = vrot.slane %v3140, 1
        %v3149 = vrot.slane %v3141, 1
        %3150 = vrot.lane.b32.xlu0 %v3142, 120
        %v3151 = vpop.permute.xlu0 %3150
        %3152 = vrot.lane.b32.xlu0 %v3143, 120
        %v3153 = vpop.permute.xlu0 %3152
        %3154 = vrot.lane.b32.xlu0 %v3144, 120
        %v3155 = vpop.permute.xlu0 %3154
        %3156 = vrot.lane.b32.xlu0 %v3145, 120
        %v3157 = vpop.permute.xlu0 %3156
        %3158 = vrot.lane.b32.xlu0 %v3146, 120
        %v3159 = vpop.permute.xlu0 %3158
        %3160 = vrot.lane.b32.xlu0 %v3147, 120
        %v3161 = vpop.permute.xlu0 %3160
        %3162 = vrot.lane.b32.xlu0 %v3148, 120
        %v3163 = vpop.permute.xlu0 %3162
        %3164 = vrot.lane.b32.xlu0 %v3149, 120
        %v3165 = vpop.permute.xlu0 %3164
        %v3168 = vsel %vm1064, %v2655, %v2671
        %v3171 = vsel %vm1064, %v2657, %v2673
        %v3174 = vsel %vm1064, %v2659, %v2675
        %v3177 = vsel %vm1064, %v2661, %v2677
        %v3180 = vsel %vm1064, %v2663, %v2679
        %v3183 = vsel %vm1064, %v2665, %v2681
        %v3186 = vsel %vm1064, %v2667, %v2683
        %v3189 = vsel %vm1064, %v2669, %v2685
        %v3191 = vsel %vm1089, %v3168, %v2110
        %v3193 = vsel %vm1089, %v3171, %v2117
        %v3195 = vsel %vm1089, %v3174, %v2124
        %v3197 = vsel %vm1089, %v3177, %v2131
        %v3199 = vsel %vm1089, %v3180, %v2138
        %v3201 = vsel %vm1089, %v3183, %v2145
        %v3203 = vsel %vm1089, %v3186, %v2152
        %v3205 = vsel %vm1089, %v3189, %v2159
        %v3207 = vsel %vm1106, %v3191, %v2687
        %v3209 = vsel %vm1106, %v3193, %v2689
        %v3211 = vsel %vm1106, %v3195, %v2691
        %v3213 = vsel %vm1106, %v3197, %v2693
        %v3215 = vsel %vm1106, %v3199, %v2695
        %v3217 = vsel %vm1106, %v3201, %v2697
        %v3219 = vsel %vm1106, %v3203, %v2699
        %v3221 = vsel %vm1106, %v3205, %v2701
        %v3223 = vsel %vm1123, %v3207, %v2703
        %v3225 = vsel %vm1123, %v3209, %v2705
        %v3227 = vsel %vm1123, %v3211, %v2707
        %v3229 = vsel %vm1123, %v3213, %v2709
        %v3231 = vsel %vm1123, %v3215, %v2711
        %v3233 = vsel %vm1123, %v3217, %v2713
        %v3235 = vsel %vm1123, %v3219, %v2715
        %v3237 = vsel %vm1123, %v3221, %v2717
        %v3239 = vsel %vm1140, %v3223, %v2719
        %v3241 = vsel %vm1140, %v3225, %v2721
        %v3243 = vsel %vm1140, %v3227, %v2723
        %v3245 = vsel %vm1140, %v3229, %v2725
        %v3247 = vsel %vm1140, %v3231, %v2727
        %v3249 = vsel %vm1140, %v3233, %v2729
        %v3251 = vsel %vm1140, %v3235, %v2731
        %v3253 = vsel %vm1140, %v3237, %v2733
        %v3255 = vsel %vm1157, %v3239, %v2735
        %v3257 = vsel %vm1157, %v3241, %v2737
        %v3259 = vsel %vm1157, %v3243, %v2739
        %v3261 = vsel %vm1157, %v3245, %v2741
        %v3263 = vsel %vm1157, %v3247, %v2743
        %v3265 = vsel %vm1157, %v3249, %v2745
        %v3267 = vsel %vm1157, %v3251, %v2747
        %v3269 = vsel %vm1157, %v3253, %v2749
        %v3271 = vsel %vm1174, %v3255, %v2751
        %v3273 = vsel %vm1174, %v3257, %v2753
        %v3275 = vsel %vm1174, %v3259, %v2755
        %v3277 = vsel %vm1174, %v3261, %v2757
        %v3279 = vsel %vm1174, %v3263, %v2759
        %v3281 = vsel %vm1174, %v3265, %v2761
        %v3283 = vsel %vm1174, %v3267, %v2763
        %v3285 = vsel %vm1174, %v3269, %v2765
        %v3287 = vsel %vm1191, %v3271, %v2791
        %v3289 = vsel %vm1191, %v3273, %v2793
        %v3291 = vsel %vm1191, %v3275, %v2795
        %v3293 = vsel %vm1191, %v3277, %v2797
        %v3295 = vsel %vm1191, %v3279, %v2799
        %v3297 = vsel %vm1191, %v3281, %v2801
        %v3299 = vsel %vm1191, %v3283, %v2803
        %v3301 = vsel %vm1191, %v3285, %v2805
        %v3303 = vsel %vm1264, %v3287, %v2831
        %v3305 = vsel %vm1264, %v3289, %v2833
        %v3307 = vsel %vm1264, %v3291, %v2835
        %v3309 = vsel %vm1264, %v3293, %v2837
        %v3311 = vsel %vm1264, %v3295, %v2839
        %v3313 = vsel %vm1264, %v3297, %v2841
        %v3315 = vsel %vm1264, %v3299, %v2843
        %v3317 = vsel %vm1264, %v3301, %v2845
        %v3319 = vsel %vm2552, %v3303, %v2927
        %v3321 = vsel %vm2552, %v3305, %v2929
        %v3323 = vsel %vm2552, %v3307, %v2931
        %v3325 = vsel %vm2552, %v3309, %v2933
        %v3327 = vsel %vm2552, %v3311, %v2935
        %v3329 = vsel %vm2552, %v3313, %v2937
        %v3331 = vsel %vm2552, %v3315, %v2939
        %v3333 = vsel %vm2552, %v3317, %v2941
        %v3335 = vsel %vm2569, %v3319, %v3023
        %v3337 = vsel %vm2569, %v3321, %v3025
        %v3339 = vsel %vm2569, %v3323, %v3027
        %v3341 = vsel %vm2569, %v3325, %v3029
        %v3343 = vsel %vm2569, %v3327, %v3031
        %v3345 = vsel %vm2569, %v3329, %v3033
        %v3347 = vsel %vm2569, %v3331, %v3035
        %v3349 = vsel %vm2569, %v3333, %v3037
        %v3351 = vsel %vm2586, %v3335, %v3039
        %v3353 = vsel %vm2586, %v3337, %v3041
        %v3355 = vsel %vm2586, %v3339, %v3043
        %v3357 = vsel %vm2586, %v3341, %v3045
        %v3359 = vsel %vm2586, %v3343, %v3047
        %v3361 = vsel %vm2586, %v3345, %v3049
        %v3363 = vsel %vm2586, %v3347, %v3051
        %v3365 = vsel %vm2586, %v3349, %v3053
        %v3367 = vsel %vm2603, %v3351, %v3055
        %v3369 = vsel %vm2603, %v3353, %v3057
        %v3371 = vsel %vm2603, %v3355, %v3059
        %v3373 = vsel %vm2603, %v3357, %v3061
        %v3375 = vsel %vm2603, %v3359, %v3063
        %v3377 = vsel %vm2603, %v3361, %v3065
        %v3379 = vsel %vm2603, %v3363, %v3067
        %v3381 = vsel %vm2603, %v3365, %v3069
        %v3383 = vsel %vm2620, %v3367, %v3103
        %v3385 = vsel %vm2620, %v3369, %v3105
        %v3387 = vsel %vm2620, %v3371, %v3107
        %v3389 = vsel %vm2620, %v3373, %v3109
        %v3391 = vsel %vm2620, %v3375, %v3111
        %v3393 = vsel %vm2620, %v3377, %v3113
        %v3395 = vsel %vm2620, %v3379, %v3115
        %v3397 = vsel %vm2620, %v3381, %v3117
        %v3399 = vsel %vm2637, %v3383, %v3151
        %v3401 = vsel %vm2637, %v3385, %v3153
        %v3403 = vsel %vm2637, %v3387, %v3155
        %v3405 = vsel %vm2637, %v3389, %v3157
        %v3407 = vsel %vm2637, %v3391, %v3159
        %v3409 = vsel %vm2637, %v3393, %v3161
        %v3411 = vsel %vm2637, %v3395, %v3163
        %v3413 = vsel %vm2637, %v3397, %v3165
        %v3430 = vunpack.c.l.b16 %v2639
        %v3431 = vunpack.c.l.b16 %v3399
        %v3432 = vunpack.c.l.b16 %v2641
        %v3433 = vunpack.c.l.b16 %v3401
        %v3434 = vunpack.c.l.b16 %v2643
        %v3435 = vunpack.c.l.b16 %v3403
        %v3436 = vunpack.c.l.b16 %v2645
        %v3437 = vunpack.c.l.b16 %v3405
        %v3438 = vunpack.c.l.b16 %v2647
        %v3439 = vunpack.c.l.b16 %v3407
        %v3440 = vunpack.c.l.b16 %v2649
        %v3441 = vunpack.c.l.b16 %v3409
        %v3442 = vunpack.c.l.b16 %v2651
        %v3443 = vunpack.c.l.b16 %v3411
        %v3444 = vunpack.c.l.b16 %v2653
        %v3445 = vunpack.c.l.b16 %v3413
        %v3446 = vld [vmem:[%s3] sm:$0xf]
        %v3447 = vld [vmem:[%s3 + $0x4] sm:$0xf]
        %v3448 = vld [vmem:[%s3 + $0x8] sm:$0xf]
        %v3449 = vld [vmem:[%s3 + $0xc] sm:$0xf]
        %v3450 = vld [vmem:[%s3 + $0x10] sm:$0xf]
        %v3451 = vld [vmem:[%s3 + $0x14] sm:$0xf]
        %v3452 = vld [vmem:[%s3 + $0x18] sm:$0xf]
        %v3453 = vld [vmem:[%s3 + $0x1c] sm:$0xf]
        %v3454 = vld [vmem:[%s3 + $0x20] sm:$0xf]
        %v3455 = vld [vmem:[%s3 + $0x24] sm:$0xf]
        %v3456 = vld [vmem:[%s3 + $0x28] sm:$0xf]
        %v3457 = vld [vmem:[%s3 + $0x2c] sm:$0xf]
        %v3458 = vld [vmem:[%s3 + $0x30] sm:$0xf]
        %v3459 = vld [vmem:[%s3 + $0x34] sm:$0xf]
        %v3460 = vld [vmem:[%s3 + $0x38] sm:$0xf]
        %v3461 = vld [vmem:[%s3 + $0x3c] sm:$0xf]
        %v3462 = vld [vmem:[%s3 + $0x40] sm:$0xf]
        %v3463 = vld [vmem:[%s3 + $0x44] sm:$0xf]
        %v3464 = vld [vmem:[%s3 + $0x48] sm:$0xf]
        %v3465 = vld [vmem:[%s3 + $0x4c] sm:$0xf]
        %v3466 = vld [vmem:[%s3 + $0x50] sm:$0xf]
        %v3467 = vld [vmem:[%s3 + $0x54] sm:$0xf]
        %v3468 = vld [vmem:[%s3 + $0x58] sm:$0xf]
        %v3469 = vld [vmem:[%s3 + $0x5c] sm:$0xf]
        %v3470 = vld [vmem:[%s3 + $0x60] sm:$0xf]
        %v3471 = vld [vmem:[%s3 + $0x64] sm:$0xf]
        %v3472 = vld [vmem:[%s3 + $0x68] sm:$0xf]
        %v3473 = vld [vmem:[%s3 + $0x6c] sm:$0xf]
        %v3474 = vld [vmem:[%s3 + $0x70] sm:$0xf]
        %v3475 = vld [vmem:[%s3 + $0x74] sm:$0xf]
        %v3476 = vld [vmem:[%s3 + $0x78] sm:$0xf]
        %v3477 = vld [vmem:[%s3 + $0x7c] sm:$0xf]
        %v3478 = vpack.c.b16 %v3432, %v3430
        %v3479 = vpack.c.b16 %v3433, %v3431
        %v3480 = vpack.c.b16 %v3436, %v3434
        %v3481 = vpack.c.b16 %v3437, %v3435
        %v3482 = vpack.c.b16 %v3440, %v3438
        %v3483 = vpack.c.b16 %v3441, %v3439
        %v3484 = vpack.c.b16 %v3444, %v3442
        %v3485 = vpack.c.b16 %v3445, %v3443
        %v3526 = vunpack.c.l.b16 %v3446
        %v3527 = vunpack.c.l.b16 %v3447
        %v3528 = vunpack.c.l.b16 %v3448
        %v3529 = vunpack.c.l.b16 %v3449
        %v3530 = vunpack.c.l.b16 %v3450
        %v3531 = vunpack.c.l.b16 %v3451
        %v3532 = vunpack.c.l.b16 %v3452
        %v3533 = vunpack.c.l.b16 %v3453
        %v3534 = vunpack.c.l.b16 %v3454
        %v3535 = vunpack.c.l.b16 %v3455
        %v3536 = vunpack.c.l.b16 %v3456
        %v3537 = vunpack.c.l.b16 %v3457
        %v3538 = vunpack.c.l.b16 %v3458
        %v3539 = vunpack.c.l.b16 %v3459
        %v3540 = vunpack.c.l.b16 %v3460
        %v3541 = vunpack.c.l.b16 %v3461
        %v3542 = vunpack.c.l.b16 %v3462
        %v3543 = vunpack.c.l.b16 %v3463
        %v3544 = vunpack.c.l.b16 %v3464
        %v3545 = vunpack.c.l.b16 %v3465
        %v3546 = vunpack.c.l.b16 %v3466
        %v3547 = vunpack.c.l.b16 %v3467
        %v3548 = vunpack.c.l.b16 %v3468
        %v3549 = vunpack.c.l.b16 %v3469
        %v3550 = vunpack.c.l.b16 %v3470
        %v3551 = vunpack.c.l.b16 %v3471
        %v3552 = vunpack.c.l.b16 %v3472
        %v3553 = vunpack.c.l.b16 %v3473
        %v3554 = vunpack.c.l.b16 %v3474
        %v3555 = vunpack.c.l.b16 %v3475
        %v3556 = vunpack.c.l.b16 %v3476
        %v3557 = vunpack.c.l.b16 %v3477
        %v3558 = vpack.c.b16 %v3527, %v3526
        %v3559 = vpack.c.b16 %v3529, %v3528
        %v3560 = vpack.c.b16 %v3531, %v3530
        %v3561 = vpack.c.b16 %v3533, %v3532
        %v3562 = vpack.c.b16 %v3535, %v3534
        %v3563 = vpack.c.b16 %v3537, %v3536
        %v3564 = vpack.c.b16 %v3539, %v3538
        %v3565 = vpack.c.b16 %v3541, %v3540
        %v3566 = vpack.c.b16 %v3543, %v3542
        %v3567 = vpack.c.b16 %v3545, %v3544
        %v3568 = vpack.c.b16 %v3547, %v3546
        %v3569 = vpack.c.b16 %v3549, %v3548
        %v3570 = vpack.c.b16 %v3551, %v3550
        %v3571 = vpack.c.b16 %v3553, %v3552
        %v3572 = vpack.c.b16 %v3555, %v3554
        %v3573 = vpack.c.b16 %v3557, %v3556
        %3590 = vmatpush.bf16.msra.mxu0 %v3565
        %3591 = vmatpush.bf16.msra.mxu0 %v3564
        %3592 = vmatpush.bf16.msra.mxu0 %v3563
        %3593 = vmatpush.bf16.msra.mxu0 %v3562
        %3594 = vmatpush.bf16.msra.mxu0 %v3561
        %3595 = vmatpush.bf16.msra.mxu0 %v3560
        %3596 = vmatpush.bf16.msra.mxu0 %v3559
        %3597 = vmatpush.bf16.msra.mxu0 %v3558
        %3598 = vmatmul.bf16.gmra.mxu0 %v3478
        %v3599 = vpop.f32.mrf.mxu0
        %v3600 = vadd.f32 0.0, %v3599
        %v3601 = vpop.f32.mrf.mxu0
        %v3602 = vadd.f32 0.0, %v3601
        %3603 = vmatmul.bf16.gmra.mxu0 %v3480
        %v3604 = vpop.f32.mrf.mxu0
        %v3605 = vadd.f32 0.0, %v3604
        %v3606 = vpop.f32.mrf.mxu0
        %v3607 = vadd.f32 0.0, %v3606
        %3608 = vmatmul.bf16.gmra.mxu0 %v3482
        %v3609 = vpop.f32.mrf.mxu0
        %v3610 = vadd.f32 0.0, %v3609
        %v3611 = vpop.f32.mrf.mxu0
        %v3612 = vadd.f32 0.0, %v3611
        %3613 = vmatmul.bf16.gmra.mxu0 %v3484
        %v3614 = vpop.f32.mrf.mxu0
        %v3615 = vadd.f32 0.0, %v3614
        %v3616 = vpop.f32.mrf.mxu0
        %v3617 = vadd.f32 0.0, %v3616
        %3618 = vdwg.mxu0
        %3619 = vmatpush.bf16.msra.mxu0 %v3573
        %3620 = vmatpush.bf16.msra.mxu0 %v3572
        %3621 = vmatpush.bf16.msra.mxu0 %v3571
        %3622 = vmatpush.bf16.msra.mxu0 %v3570
        %3623 = vmatpush.bf16.msra.mxu0 %v3569
        %3624 = vmatpush.bf16.msra.mxu0 %v3568
        %3625 = vmatpush.bf16.msra.mxu0 %v3567
        %3626 = vmatpush.bf16.msra.mxu0 %v3566
        %3627 = vmatmul.bf16.gmra.mxu0 %v3479
        %v3628 = vpop.f32.mrf.mxu0
        %v3629 = vadd.f32 %v3600, %v3628
        %v3630 = vpop.f32.mrf.mxu0
        %v3631 = vadd.f32 %v3602, %v3630
        %3632 = vmatmul.bf16.gmra.mxu0 %v3481
        %v3633 = vpop.f32.mrf.mxu0
        %v3634 = vadd.f32 %v3605, %v3633
        %v3635 = vpop.f32.mrf.mxu0
        %v3636 = vadd.f32 %v3607, %v3635
        %3637 = vmatmul.bf16.gmra.mxu0 %v3483
        %v3638 = vpop.f32.mrf.mxu0
        %v3639 = vadd.f32 %v3610, %v3638
        %v3640 = vpop.f32.mrf.mxu0
        %v3641 = vadd.f32 %v3612, %v3640
        %3642 = vmatmul.bf16.gmra.mxu0 %v3485
        %v3643 = vpop.f32.mrf.mxu0
        %v3644 = vadd.f32 %v3615, %v3643
        %v3645 = vpop.f32.mrf.mxu0
        %v3646 = vadd.f32 %v3617, %v3645
        %3647 = vdwg.mxu0
        %v3648 = vld [vmem:[%s6 + $0x1] sm:$0x1]
        %v3649 = vperm.slane %v3648, 0
        %v3650 = vmul.f32 %v3629, %v3649
        %v3651 = vmul.f32 %v3631, %v3649
        %v3652 = vmul.f32 %v3634, %v3649
        %v3653 = vmul.f32 %v3636, %v3649
        %v3654 = vmul.f32 %v3639, %v3649
        %v3655 = vmul.f32 %v3641, %v3649
        %v3656 = vmul.f32 %v3644, %v3649
        %v3657 = vmul.f32 %v3646, %v3649
        %v3658 = vld [vmem:[%s7 + $0x1] sm:$0x1]
        %v3659 = vperm.slane %v3658, 0
        %v3660 = vadd.f32 %v3650, %v3659
        %v3661 = vadd.f32 %v3651, %v3659
        %v3662 = vadd.f32 %v3652, %v3659
        %v3663 = vadd.f32 %v3653, %v3659
        %v3664 = vadd.f32 %v3654, %v3659
        %v3665 = vadd.f32 %v3655, %v3659
        %v3666 = vadd.f32 %v3656, %v3659
        %v3667 = vadd.f32 %v3657, %v3659
        %vm3668 = vcmp.ge.f32.partialorder %v3660, 0.0
        %vm3669 = vcmp.ge.f32.partialorder %v3661, 0.0
        %vm3670 = vcmp.ge.f32.partialorder %v3662, 0.0
        %vm3671 = vcmp.ge.f32.partialorder %v3663, 0.0
        %vm3672 = vcmp.ge.f32.partialorder %v3664, 0.0
        %vm3673 = vcmp.ge.f32.partialorder %v3665, 0.0
        %vm3674 = vcmp.ge.f32.partialorder %v3666, 0.0
        %vm3675 = vcmp.ge.f32.partialorder %v3667, 0.0
        %v3676 = vmul.f32 %v3660, 0.2
        %v3677 = vmul.f32 %v3661, 0.2
        %v3678 = vmul.f32 %v3662, 0.2
        %v3679 = vmul.f32 %v3663, 0.2
        %v3680 = vmul.f32 %v3664, 0.2
        %v3681 = vmul.f32 %v3665, 0.2
        %v3682 = vmul.f32 %v3666, 0.2
        %v3683 = vmul.f32 %v3667, 0.2
        %v3684 = vsel %vm3668, %v3660, %v3676
        %v3685 = vsel %vm3669, %v3661, %v3677
        %v3686 = vsel %vm3670, %v3662, %v3678
        %v3687 = vsel %vm3671, %v3663, %v3679
        %v3688 = vsel %vm3672, %v3664, %v3680
        %v3689 = vsel %vm3673, %v3665, %v3681
        %v3690 = vsel %vm3674, %v3666, %v3682
        %v3691 = vsel %vm3675, %v3667, %v3683
        %v3692 = vpack.c.bf16 %v3684, %v3684
        %v3693 = vpack.c.bf16 %v3685, %v3685
        %v3694 = vpack.c.bf16 %v3686, %v3686
        %v3695 = vpack.c.bf16 %v3687, %v3687
        %v3696 = vpack.c.bf16 %v3688, %v3688
        %v3697 = vpack.c.bf16 %v3689, %v3689
        %v3698 = vpack.c.bf16 %v3690, %v3690
        %v3699 = vpack.c.bf16 %v3691, %v3691
        %v3701 = vshrl.u32 %v3692, 16
        %v3703 = vrot.slane %v3701, 7
        %v3704 = vshll.u32 %v3692, 16
        %v3706 = vor.u32 %v3703, %v3704
        %v3707 = vrot.slane %v3703, 4
        %v3709 = vshrl.u32 %v3693, 16
        %v3711 = vrot.slane %v3709, 7
        %v3712 = vshll.u32 %v3693, 16
        %v3714 = vor.u32 %v3711, %v3712
        %v3715 = vrot.slane %v3711, 4
        %v3717 = vshrl.u32 %v3694, 16
        %v3719 = vrot.slane %v3717, 7
        %v3720 = vshll.u32 %v3694, 16
        %v3722 = vor.u32 %v3719, %v3720
        %v3723 = vrot.slane %v3719, 4
        %v3725 = vshrl.u32 %v3695, 16
        %v3727 = vrot.slane %v3725, 7
        %v3728 = vshll.u32 %v3695, 16
        %v3730 = vor.u32 %v3727, %v3728
        %v3731 = vrot.slane %v3727, 4
        %v3733 = vshrl.u32 %v3696, 16
        %v3735 = vrot.slane %v3733, 7
        %v3736 = vshll.u32 %v3696, 16
        %v3738 = vor.u32 %v3735, %v3736
        %v3739 = vrot.slane %v3735, 4
        %v3741 = vshrl.u32 %v3697, 16
        %v3743 = vrot.slane %v3741, 7
        %v3744 = vshll.u32 %v3697, 16
        %v3746 = vor.u32 %v3743, %v3744
        %v3747 = vrot.slane %v3743, 4
        %v3749 = vshrl.u32 %v3698, 16
        %v3751 = vrot.slane %v3749, 7
        %v3752 = vshll.u32 %v3698, 16
        %v3754 = vor.u32 %v3751, %v3752
        %v3755 = vrot.slane %v3751, 4
        %v3757 = vshrl.u32 %v3699, 16
        %v3759 = vrot.slane %v3757, 7
        %v3760 = vshll.u32 %v3699, 16
        %v3762 = vor.u32 %v3759, %v3760
        %v3763 = vrot.slane %v3759, 4
        %s3780 = scalar_lea.vmem [#allocation3], 8
        %v3781 = vld [vmem:[%s3780] sm:$0xf]
        %v3782 = vsel %vm1420, %v3706, %v3781
        %3783 = vst [vmem:[%s3780] sm:$0xf] %v3782
        %v3784 = vld [vmem:[%s3780 + $0x4] sm:$0x1]
        %v3785 = vsel %vm334, %v3707, %v3784
        %3786 = vst [vmem:[%s3780 + $0x4] sm:$0x1] %v3785
        %v3787 = vld [vmem:[%s3780 + $0x8] sm:$0xf]
        %v3788 = vsel %vm1420, %v3714, %v3787
        %3789 = vst [vmem:[%s3780 + $0x8] sm:$0xf] %v3788
        %v3790 = vld [vmem:[%s3780 + $0xc] sm:$0x1]
        %v3791 = vsel %vm334, %v3715, %v3790
        %3792 = vst [vmem:[%s3780 + $0xc] sm:$0x1] %v3791
        %v3793 = vld [vmem:[%s3780 + $0x10] sm:$0xf]
        %v3794 = vsel %vm1420, %v3722, %v3793
        %3795 = vst [vmem:[%s3780 + $0x10] sm:$0xf] %v3794
        %v3796 = vld [vmem:[%s3780 + $0x14] sm:$0x1]
        %v3797 = vsel %vm334, %v3723, %v3796
        %3798 = vst [vmem:[%s3780 + $0x14] sm:$0x1] %v3797
        %v3799 = vld [vmem:[%s3780 + $0x18] sm:$0xf]
        %v3800 = vsel %vm1420, %v3730, %v3799
        %3801 = vst [vmem:[%s3780 + $0x18] sm:$0xf] %v3800
        %v3802 = vld [vmem:[%s3780 + $0x1c] sm:$0x1]
        %v3803 = vsel %vm334, %v3731, %v3802
        %3804 = vst [vmem:[%s3780 + $0x1c] sm:$0x1] %v3803
        %v3805 = vld [vmem:[%s3780 + $0x20] sm:$0xf]
        %v3806 = vsel %vm1420, %v3738, %v3805
        %3807 = vst [vmem:[%s3780 + $0x20] sm:$0xf] %v3806
        %v3808 = vld [vmem:[%s3780 + $0x24] sm:$0x1]
        %v3809 = vsel %vm334, %v3739, %v3808
        %3810 = vst [vmem:[%s3780 + $0x24] sm:$0x1] %v3809
        %v3811 = vld [vmem:[%s3780 + $0x28] sm:$0xf]
        %v3812 = vsel %vm1420, %v3746, %v3811
        %3813 = vst [vmem:[%s3780 + $0x28] sm:$0xf] %v3812
        %v3814 = vld [vmem:[%s3780 + $0x2c] sm:$0x1]
        %v3815 = vsel %vm334, %v3747, %v3814
        %3816 = vst [vmem:[%s3780 + $0x2c] sm:$0x1] %v3815
        %v3817 = vld [vmem:[%s3780 + $0x30] sm:$0xf]
        %v3818 = vsel %vm1420, %v3754, %v3817
        %3819 = vst [vmem:[%s3780 + $0x30] sm:$0xf] %v3818
        %v3820 = vld [vmem:[%s3780 + $0x34] sm:$0x1]
        %v3821 = vsel %vm334, %v3755, %v3820
        %3822 = vst [vmem:[%s3780 + $0x34] sm:$0x1] %v3821
        %v3823 = vld [vmem:[%s3780 + $0x38] sm:$0xf]
        %v3824 = vsel %vm1420, %v3762, %v3823
        %3825 = vst [vmem:[%s3780 + $0x38] sm:$0xf] %v3824
        %v3826 = vld [vmem:[%s3780 + $0x3c] sm:$0x1]
        %v3827 = vsel %vm334, %v3763, %v3826
        %3828 = vst [vmem:[%s3780 + $0x3c] sm:$0x1] %v3827
        %3829 = vrot.lane.b32.xlu0 %v2192, 32
        %v3830 = vpop.permute.xlu0 %3829
        %3831 = vrot.lane.b32.xlu0 %v2193, 32
        %v3832 = vpop.permute.xlu0 %3831
        %3833 = vrot.lane.b32.xlu0 %v2194, 32
        %v3834 = vpop.permute.xlu0 %3833
        %3835 = vrot.lane.b32.xlu0 %v2195, 32
        %v3836 = vpop.permute.xlu0 %3835
        %3837 = vrot.lane.b32.xlu0 %v2196, 32
        %v3838 = vpop.permute.xlu0 %3837
        %3839 = vrot.lane.b32.xlu0 %v2197, 32
        %v3840 = vpop.permute.xlu0 %3839
        %3841 = vrot.lane.b32.xlu0 %v2198, 32
        %v3842 = vpop.permute.xlu0 %3841
        %3843 = vrot.lane.b32.xlu0 %v2199, 32
        %v3844 = vpop.permute.xlu0 %3843
        %v3846 = vsel %vm1123, %v2096, %v3830
        %v3848 = vsel %vm1123, %v2097, %v3832
        %v3850 = vsel %vm1123, %v2098, %v3834
        %v3852 = vsel %vm1123, %v2099, %v3836
        %v3854 = vsel %vm1123, %v2100, %v3838
        %v3856 = vsel %vm1123, %v2101, %v3840
        %v3858 = vsel %vm1123, %v2102, %v3842
        %v3860 = vsel %vm1123, %v2103, %v3844
        %v3869 = vunpack.c.l.b16 %v3846
        %v3870 = vunpack.c.h.b16 %v3846
        %v3871 = vunpack.c.l.b16 %v3848
        %v3872 = vunpack.c.h.b16 %v3848
        %v3873 = vunpack.c.l.b16 %v3850
        %v3874 = vunpack.c.h.b16 %v3850
        %v3875 = vunpack.c.l.b16 %v3852
        %v3876 = vunpack.c.h.b16 %v3852
        %v3877 = vunpack.c.l.b16 %v3854
        %v3878 = vunpack.c.h.b16 %v3854
        %v3879 = vunpack.c.l.b16 %v3856
        %v3880 = vunpack.c.h.b16 %v3856
        %v3881 = vunpack.c.l.b16 %v3858
        %v3882 = vunpack.c.h.b16 %v3858
        %v3883 = vunpack.c.l.b16 %v3860
        %v3884 = vunpack.c.h.b16 %v3860
        %v3885 = vpack.c.b16 %v3869, %v3869
        %v3886 = vpack.c.b16 %v3870, %v3870
        %v3887 = vpack.c.b16 %v3871, %v3871
        %v3888 = vpack.c.b16 %v3872, %v3872
        %v3889 = vpack.c.b16 %v3873, %v3873
        %v3890 = vpack.c.b16 %v3874, %v3874
        %v3891 = vpack.c.b16 %v3875, %v3875
        %v3892 = vpack.c.b16 %v3876, %v3876
        %v3893 = vpack.c.b16 %v3877, %v3877
        %v3894 = vpack.c.b16 %v3878, %v3878
        %v3895 = vpack.c.b16 %v3879, %v3879
        %v3896 = vpack.c.b16 %v3880, %v3880
        %v3897 = vpack.c.b16 %v3881, %v3881
        %v3898 = vpack.c.b16 %v3882, %v3882
        %v3899 = vpack.c.b16 %v3883, %v3883
        %v3900 = vpack.c.b16 %v3884, %v3884
        %vm3901 = vsmask.f32 3328
        %vm3902 = vsmask.f32 7440
        %vm3903 = vmor %vm3901, %vm3902
        %v3905 = vshrl.u32 %v3885, 16
        %v3907 = vrot.slane %v3905, 4
        %v3908 = vshll.u32 %v3885, 16
        %v3910 = vrot.slane %v3908, 5
        %v3911 = vor.u32 %v3907, %v3910
        %v3912 = vrot.slane %v3911, 4
        %v3914 = vshll.u32 %v3886, 16
        %v3916 = vrot.slane %v3914, 5
        %v3917 = vsel %vm3903, %v3912, %v3916
        %v3919 = vshrl.u32 %v3887, 16
        %v3921 = vrot.slane %v3919, 4
        %v3922 = vshll.u32 %v3887, 16
        %v3924 = vrot.slane %v3922, 5
        %v3925 = vor.u32 %v3921, %v3924
        %v3926 = vrot.slane %v3925, 4
        %v3928 = vshll.u32 %v3888, 16
        %v3930 = vrot.slane %v3928, 5
        %v3931 = vsel %vm3903, %v3926, %v3930
        %v3933 = vshrl.u32 %v3889, 16
        %v3935 = vrot.slane %v3933, 4
        %v3936 = vshll.u32 %v3889, 16
        %v3938 = vrot.slane %v3936, 5
        %v3939 = vor.u32 %v3935, %v3938
        %v3940 = vrot.slane %v3939, 4
        %v3942 = vshll.u32 %v3890, 16
        %v3944 = vrot.slane %v3942, 5
        %v3945 = vsel %vm3903, %v3940, %v3944
        %v3947 = vshrl.u32 %v3891, 16
        %v3949 = vrot.slane %v3947, 4
        %v3950 = vshll.u32 %v3891, 16
        %v3952 = vrot.slane %v3950, 5
        %v3953 = vor.u32 %v3949, %v3952
        %v3954 = vrot.slane %v3953, 4
        %v3956 = vshll.u32 %v3892, 16
        %v3958 = vrot.slane %v3956, 5
        %v3959 = vsel %vm3903, %v3954, %v3958
        %v3961 = vshrl.u32 %v3893, 16
        %v3963 = vrot.slane %v3961, 4
        %v3964 = vshll.u32 %v3893, 16
        %v3966 = vrot.slane %v3964, 5
        %v3967 = vor.u32 %v3963, %v3966
        %v3968 = vrot.slane %v3967, 4
        %v3970 = vshll.u32 %v3894, 16
        %v3972 = vrot.slane %v3970, 5
        %v3973 = vsel %vm3903, %v3968, %v3972
        %v3975 = vshrl.u32 %v3895, 16
        %v3977 = vrot.slane %v3975, 4
        %v3978 = vshll.u32 %v3895, 16
        %v3980 = vrot.slane %v3978, 5
        %v3981 = vor.u32 %v3977, %v3980
        %v3982 = vrot.slane %v3981, 4
        %v3984 = vshll.u32 %v3896, 16
        %v3986 = vrot.slane %v3984, 5
        %v3987 = vsel %vm3903, %v3982, %v3986
        %v3989 = vshrl.u32 %v3897, 16
        %v3991 = vrot.slane %v3989, 4
        %v3992 = vshll.u32 %v3897, 16
        %v3994 = vrot.slane %v3992, 5
        %v3995 = vor.u32 %v3991, %v3994
        %v3996 = vrot.slane %v3995, 4
        %v3998 = vshll.u32 %v3898, 16
        %v4000 = vrot.slane %v3998, 5
        %v4001 = vsel %vm3903, %v3996, %v4000
        %v4003 = vshrl.u32 %v3899, 16
        %v4005 = vrot.slane %v4003, 4
        %v4006 = vshll.u32 %v3899, 16
        %v4008 = vrot.slane %v4006, 5
        %v4009 = vor.u32 %v4005, %v4008
        %v4010 = vrot.slane %v4009, 4
        %v4012 = vshll.u32 %v3900, 16
        %v4014 = vrot.slane %v4012, 5
        %v4015 = vsel %vm3903, %v4010, %v4014
        %v4016 = vld [vmem:[%s5] sm:$0xf]
        %v4017 = vld [vmem:[%s5 + $0x4] sm:$0xf]
        %v4018 = vld [vmem:[%s5 + $0x8] sm:$0xf]
        %v4019 = vld [vmem:[%s5 + $0xc] sm:$0xf]
        %v4020 = vld [vmem:[%s5 + $0x10] sm:$0xf]
        %v4021 = vld [vmem:[%s5 + $0x14] sm:$0xf]
        %v4022 = vld [vmem:[%s5 + $0x18] sm:$0xf]
        %v4023 = vld [vmem:[%s5 + $0x1c] sm:$0xf]
        %v4024 = vld [vmem:[#allocation3] sm:$0xf]
        %v4025 = vld [vmem:[#allocation3 + $0x8] sm:$0xf]
        %v4026 = vld [vmem:[#allocation3 + $0x10] sm:$0xf]
        %v4027 = vld [vmem:[#allocation3 + $0x18] sm:$0xf]
        %v4028 = vld [vmem:[#allocation3 + $0x20] sm:$0xf]
        %v4029 = vld [vmem:[#allocation3 + $0x28] sm:$0xf]
        %v4030 = vld [vmem:[#allocation3 + $0x30] sm:$0xf]
        %v4031 = vld [vmem:[#allocation3 + $0x38] sm:$0xf]
        %v4032 = vld [vmem:[#allocation3 + $0x4] sm:$0x1]
        %v4033 = vld [vmem:[#allocation3 + $0xc] sm:$0x1]
        %v4034 = vld [vmem:[#allocation3 + $0x14] sm:$0x1]
        %v4035 = vld [vmem:[#allocation3 + $0x1c] sm:$0x1]
        %v4036 = vld [vmem:[#allocation3 + $0x24] sm:$0x1]
        %v4037 = vld [vmem:[#allocation3 + $0x2c] sm:$0x1]
        %v4038 = vld [vmem:[#allocation3 + $0x34] sm:$0x1]
        %v4039 = vld [vmem:[#allocation3 + $0x3c] sm:$0x1]
        %v4040 = vld [vmem:[#allocation3] sm:$0xe]
        %v4041 = vld [vmem:[#allocation3 + $0x8] sm:$0xe]
        %v4042 = vld [vmem:[#allocation3 + $0x10] sm:$0xe]
        %v4043 = vld [vmem:[#allocation3 + $0x18] sm:$0xe]
        %v4044 = vld [vmem:[#allocation3 + $0x20] sm:$0xe]
        %v4045 = vld [vmem:[#allocation3 + $0x28] sm:$0xe]
        %v4046 = vld [vmem:[#allocation3 + $0x30] sm:$0xe]
        %v4047 = vld [vmem:[#allocation3 + $0x38] sm:$0xe]
        %v4048 = vld [vmem:[%s3780] sm:$0xf]
        %v4049 = vld [vmem:[%s3780 + $0x8] sm:$0xf]
        %v4050 = vld [vmem:[%s3780 + $0x10] sm:$0xf]
        %v4051 = vld [vmem:[%s3780 + $0x18] sm:$0xf]
        %v4052 = vld [vmem:[%s3780 + $0x20] sm:$0xf]
        %v4053 = vld [vmem:[%s3780 + $0x28] sm:$0xf]
        %v4054 = vld [vmem:[%s3780 + $0x30] sm:$0xf]
        %v4055 = vld [vmem:[%s3780 + $0x38] sm:$0xf]
        %v4056 = vld [vmem:[%s3780 + $0x4] sm:$0x1]
        %v4057 = vld [vmem:[%s3780 + $0xc] sm:$0x1]
        %v4058 = vld [vmem:[%s3780 + $0x14] sm:$0x1]
        %v4059 = vld [vmem:[%s3780 + $0x1c] sm:$0x1]
        %v4060 = vld [vmem:[%s3780 + $0x24] sm:$0x1]
        %v4061 = vld [vmem:[%s3780 + $0x2c] sm:$0x1]
        %v4062 = vld [vmem:[%s3780 + $0x34] sm:$0x1]
        %v4063 = vld [vmem:[%s3780 + $0x3c] sm:$0x1]
        %v4064 = vld [vmem:[%s3780] sm:$0xe]
        %v4065 = vld [vmem:[%s3780 + $0x8] sm:$0xe]
        %v4066 = vld [vmem:[%s3780 + $0x10] sm:$0xe]
        %v4067 = vld [vmem:[%s3780 + $0x18] sm:$0xe]
        %v4068 = vld [vmem:[%s3780 + $0x20] sm:$0xe]
        %v4069 = vld [vmem:[%s3780 + $0x28] sm:$0xe]
        %v4070 = vld [vmem:[%s3780 + $0x30] sm:$0xe]
        %v4071 = vld [vmem:[%s3780 + $0x38] sm:$0xe]
        %s4072 = scalar_lea.vmem [#allocation3], 16
        %v4073 = vld [vmem:[%s4072] sm:$0xf]
        %v4074 = vld [vmem:[%s4072 + $0x8] sm:$0xf]
        %v4075 = vld [vmem:[%s4072 + $0x10] sm:$0xf]
        %v4076 = vld [vmem:[%s4072 + $0x18] sm:$0xf]
        %v4077 = vld [vmem:[%s4072 + $0x20] sm:$0xf]
        %v4078 = vld [vmem:[%s4072 + $0x28] sm:$0xf]
        %v4079 = vld [vmem:[%s4072 + $0x30] sm:$0xf]
        %v4080 = vld [vmem:[%s4072 + $0x38] sm:$0xf]
        %v4081 = vld [vmem:[%s4072 + $0x4] sm:$0x1]
        %v4082 = vld [vmem:[%s4072 + $0xc] sm:$0x1]
        %v4083 = vld [vmem:[%s4072 + $0x14] sm:$0x1]
        %v4084 = vld [vmem:[%s4072 + $0x1c] sm:$0x1]
        %v4085 = vld [vmem:[%s4072 + $0x24] sm:$0x1]
        %v4086 = vld [vmem:[%s4072 + $0x2c] sm:$0x1]
        %v4087 = vld [vmem:[%s4072 + $0x34] sm:$0x1]
        %v4088 = vld [vmem:[%s4072 + $0x3c] sm:$0x1]
        %v4089 = vld [vmem:[%s4072] sm:$0xe]
        %v4090 = vld [vmem:[%s4072 + $0x8] sm:$0xe]
        %v4091 = vld [vmem:[%s4072 + $0x10] sm:$0xe]
        %v4092 = vld [vmem:[%s4072 + $0x18] sm:$0xe]
        %v4093 = vld [vmem:[%s4072 + $0x20] sm:$0xe]
        %v4094 = vld [vmem:[%s4072 + $0x28] sm:$0xe]
        %v4095 = vld [vmem:[%s4072 + $0x30] sm:$0xe]
        %v4096 = vld [vmem:[%s4072 + $0x38] sm:$0xe]
        %v4105 = vunpack.c.l.b16 %v4024
        %v4106 = vunpack.c.l.b16 %v4025
        %v4107 = vunpack.c.l.b16 %v4026
        %v4108 = vunpack.c.l.b16 %v4027
        %v4109 = vunpack.c.l.b16 %v4028
        %v4110 = vunpack.c.l.b16 %v4029
        %v4111 = vunpack.c.l.b16 %v4030
        %v4112 = vunpack.c.l.b16 %v4031
        %v4113 = vpack.c.b16 %v4105, %v4105
        %v4114 = vpack.c.b16 %v4106, %v4106
        %v4115 = vpack.c.b16 %v4107, %v4107
        %v4116 = vpack.c.b16 %v4108, %v4108
        %v4117 = vpack.c.b16 %v4109, %v4109
        %v4118 = vpack.c.b16 %v4110, %v4110
        %v4119 = vpack.c.b16 %v4111, %v4111
        %v4120 = vpack.c.b16 %v4112, %v4112
        %4121 = vrot.lane.b32.xlu0 %v4113, 104
        %v4122 = vpop.permute.xlu0 %4121
        %4123 = vrot.lane.b32.xlu0 %v4114, 104
        %v4124 = vpop.permute.xlu0 %4123
        %4125 = vrot.lane.b32.xlu0 %v4115, 104
        %v4126 = vpop.permute.xlu0 %4125
        %4127 = vrot.lane.b32.xlu0 %v4116, 104
        %v4128 = vpop.permute.xlu0 %4127
        %4129 = vrot.lane.b32.xlu0 %v4117, 104
        %v4130 = vpop.permute.xlu0 %4129
        %4131 = vrot.lane.b32.xlu0 %v4118, 104
        %v4132 = vpop.permute.xlu0 %4131
        %4133 = vrot.lane.b32.xlu0 %v4119, 104
        %v4134 = vpop.permute.xlu0 %4133
        %4135 = vrot.lane.b32.xlu0 %v4120, 104
        %v4136 = vpop.permute.xlu0 %4135
        %v4145 = vunpack.c.l.b16 %v4032
        %v4146 = vunpack.c.l.b16 %v4033
        %v4147 = vunpack.c.l.b16 %v4034
        %v4148 = vunpack.c.l.b16 %v4035
        %v4149 = vunpack.c.l.b16 %v4036
        %v4150 = vunpack.c.l.b16 %v4037
        %v4151 = vunpack.c.l.b16 %v4038
        %v4152 = vunpack.c.l.b16 %v4039
        %v4153 = vpack.c.b16 %v4145, %v4105
        %v4154 = vpack.c.b16 %v4146, %v4106
        %v4155 = vpack.c.b16 %v4147, %v4107
        %v4156 = vpack.c.b16 %v4148, %v4108
        %v4157 = vpack.c.b16 %v4149, %v4109
        %v4158 = vpack.c.b16 %v4150, %v4110
        %v4159 = vpack.c.b16 %v4151, %v4111
        %v4160 = vpack.c.b16 %v4152, %v4112
        %v4162 = vshrl.u32 %v4153, 16
        %v4164 = vshll.u32 %v4153, 16
        %v4166 = vrot.slane %v4164, 1
        %v4167 = vor.u32 %v4162, %v4166
        %v4169 = vshrl.u32 %v4154, 16
        %v4171 = vshll.u32 %v4154, 16
        %v4173 = vrot.slane %v4171, 1
        %v4174 = vor.u32 %v4169, %v4173
        %v4176 = vshrl.u32 %v4155, 16
        %v4178 = vshll.u32 %v4155, 16
        %v4180 = vrot.slane %v4178, 1
        %v4181 = vor.u32 %v4176, %v4180
        %v4183 = vshrl.u32 %v4156, 16
        %v4185 = vshll.u32 %v4156, 16
        %v4187 = vrot.slane %v4185, 1
        %v4188 = vor.u32 %v4183, %v4187
        %v4190 = vshrl.u32 %v4157, 16
        %v4192 = vshll.u32 %v4157, 16
        %v4194 = vrot.slane %v4192, 1
        %v4195 = vor.u32 %v4190, %v4194
        %v4197 = vshrl.u32 %v4158, 16
        %v4199 = vshll.u32 %v4158, 16
        %v4201 = vrot.slane %v4199, 1
        %v4202 = vor.u32 %v4197, %v4201
        %v4204 = vshrl.u32 %v4159, 16
        %v4206 = vshll.u32 %v4159, 16
        %v4208 = vrot.slane %v4206, 1
        %v4209 = vor.u32 %v4204, %v4208
        %v4211 = vshrl.u32 %v4160, 16
        %v4213 = vshll.u32 %v4160, 16
        %v4215 = vrot.slane %v4213, 1
        %v4216 = vor.u32 %v4211, %v4215
        %4217 = vrot.lane.b32.xlu0 %v4167, 120
        %v4218 = vpop.permute.xlu0 %4217
        %4219 = vrot.lane.b32.xlu0 %v4174, 120
        %v4220 = vpop.permute.xlu0 %4219
        %4221 = vrot.lane.b32.xlu0 %v4181, 120
        %v4222 = vpop.permute.xlu0 %4221
        %4223 = vrot.lane.b32.xlu0 %v4188, 120
        %v4224 = vpop.permute.xlu0 %4223
        %4225 = vrot.lane.b32.xlu0 %v4195, 120
        %v4226 = vpop.permute.xlu0 %4225
        %4227 = vrot.lane.b32.xlu0 %v4202, 120
        %v4228 = vpop.permute.xlu0 %4227
        %4229 = vrot.lane.b32.xlu0 %v4209, 120
        %v4230 = vpop.permute.xlu0 %4229
        %4231 = vrot.lane.b32.xlu0 %v4216, 120
        %v4232 = vpop.permute.xlu0 %4231
        %v4241 = vunpack.c.l.b16 %v4040
        %v4242 = vunpack.c.l.b16 %v4041
        %v4243 = vunpack.c.l.b16 %v4042
        %v4244 = vunpack.c.l.b16 %v4043
        %v4245 = vunpack.c.l.b16 %v4044
        %v4246 = vunpack.c.l.b16 %v4045
        %v4247 = vunpack.c.l.b16 %v4046
        %v4248 = vunpack.c.l.b16 %v4047
        %v4249 = vpack.c.b16 %v4145, %v4241
        %v4250 = vpack.c.b16 %v4146, %v4242
        %v4251 = vpack.c.b16 %v4147, %v4243
        %v4252 = vpack.c.b16 %v4148, %v4244
        %v4253 = vpack.c.b16 %v4149, %v4245
        %v4254 = vpack.c.b16 %v4150, %v4246
        %v4255 = vpack.c.b16 %v4151, %v4247
        %v4256 = vpack.c.b16 %v4152, %v4248
        %v4257 = vrot.slane %v4249, 1
        %v4258 = vrot.slane %v4250, 1
        %v4259 = vrot.slane %v4251, 1
        %v4260 = vrot.slane %v4252, 1
        %v4261 = vrot.slane %v4253, 1
        %v4262 = vrot.slane %v4254, 1
        %v4263 = vrot.slane %v4255, 1
        %v4264 = vrot.slane %v4256, 1
        %4265 = vrot.lane.b32.xlu0 %v4257, 8
        %v4266 = vpop.permute.xlu0 %4265
        %4267 = vrot.lane.b32.xlu0 %v4258, 8
        %v4268 = vpop.permute.xlu0 %4267
        %4269 = vrot.lane.b32.xlu0 %v4259, 8
        %v4270 = vpop.permute.xlu0 %4269
        %4271 = vrot.lane.b32.xlu0 %v4260, 8
        %v4272 = vpop.permute.xlu0 %4271
        %4273 = vrot.lane.b32.xlu0 %v4261, 8
        %v4274 = vpop.permute.xlu0 %4273
        %4275 = vrot.lane.b32.xlu0 %v4262, 8
        %v4276 = vpop.permute.xlu0 %4275
        %4277 = vrot.lane.b32.xlu0 %v4263, 8
        %v4278 = vpop.permute.xlu0 %4277
        %4279 = vrot.lane.b32.xlu0 %v4264, 8
        %v4280 = vpop.permute.xlu0 %4279
        %v4289 = vunpack.c.l.b16 %v4048
        %v4290 = vunpack.c.l.b16 %v4049
        %v4291 = vunpack.c.l.b16 %v4050
        %v4292 = vunpack.c.l.b16 %v4051
        %v4293 = vunpack.c.l.b16 %v4052
        %v4294 = vunpack.c.l.b16 %v4053
        %v4295 = vunpack.c.l.b16 %v4054
        %v4296 = vunpack.c.l.b16 %v4055
        %v4297 = vpack.c.b16 %v4289, %v4289
        %v4298 = vpack.c.b16 %v4290, %v4290
        %v4299 = vpack.c.b16 %v4291, %v4291
        %v4300 = vpack.c.b16 %v4292, %v4292
        %v4301 = vpack.c.b16 %v4293, %v4293
        %v4302 = vpack.c.b16 %v4294, %v4294
        %v4303 = vpack.c.b16 %v4295, %v4295
        %v4304 = vpack.c.b16 %v4296, %v4296
        %4305 = vrot.lane.b32.xlu0 %v4297, 24
        %v4306 = vpop.permute.xlu0 %4305
        %4307 = vrot.lane.b32.xlu0 %v4298, 24
        %v4308 = vpop.permute.xlu0 %4307
        %4309 = vrot.lane.b32.xlu0 %v4299, 24
        %v4310 = vpop.permute.xlu0 %4309
        %4311 = vrot.lane.b32.xlu0 %v4300, 24
        %v4312 = vpop.permute.xlu0 %4311
        %4313 = vrot.lane.b32.xlu0 %v4301, 24
        %v4314 = vpop.permute.xlu0 %4313
        %4315 = vrot.lane.b32.xlu0 %v4302, 24
        %v4316 = vpop.permute.xlu0 %4315
        %4317 = vrot.lane.b32.xlu0 %v4303, 24
        %v4318 = vpop.permute.xlu0 %4317
        %4319 = vrot.lane.b32.xlu0 %v4304, 24
        %v4320 = vpop.permute.xlu0 %4319
        %v4329 = vunpack.c.l.b16 %v4056
        %v4330 = vunpack.c.l.b16 %v4057
        %v4331 = vunpack.c.l.b16 %v4058
        %v4332 = vunpack.c.l.b16 %v4059
        %v4333 = vunpack.c.l.b16 %v4060
        %v4334 = vunpack.c.l.b16 %v4061
        %v4335 = vunpack.c.l.b16 %v4062
        %v4336 = vunpack.c.l.b16 %v4063
        %v4337 = vpack.c.b16 %v4329, %v4289
        %v4338 = vpack.c.b16 %v4330, %v4290
        %v4339 = vpack.c.b16 %v4331, %v4291
        %v4340 = vpack.c.b16 %v4332, %v4292
        %v4341 = vpack.c.b16 %v4333, %v4293
        %v4342 = vpack.c.b16 %v4334, %v4294
        %v4343 = vpack.c.b16 %v4335, %v4295
        %v4344 = vpack.c.b16 %v4336, %v4296
        %v4346 = vshrl.u32 %v4337, 16
        %v4348 = vshll.u32 %v4337, 16
        %v4350 = vrot.slane %v4348, 1
        %v4351 = vor.u32 %v4346, %v4350
        %v4353 = vshrl.u32 %v4338, 16
        %v4355 = vshll.u32 %v4338, 16
        %v4357 = vrot.slane %v4355, 1
        %v4358 = vor.u32 %v4353, %v4357
        %v4360 = vshrl.u32 %v4339, 16
        %v4362 = vshll.u32 %v4339, 16
        %v4364 = vrot.slane %v4362, 1
        %v4365 = vor.u32 %v4360, %v4364
        %v4367 = vshrl.u32 %v4340, 16
        %v4369 = vshll.u32 %v4340, 16
        %v4371 = vrot.slane %v4369, 1
        %v4372 = vor.u32 %v4367, %v4371
        %v4374 = vshrl.u32 %v4341, 16
        %v4376 = vshll.u32 %v4341, 16
        %v4378 = vrot.slane %v4376, 1
        %v4379 = vor.u32 %v4374, %v4378
        %v4381 = vshrl.u32 %v4342, 16
        %v4383 = vshll.u32 %v4342, 16
        %v4385 = vrot.slane %v4383, 1
        %v4386 = vor.u32 %v4381, %v4385
        %v4388 = vshrl.u32 %v4343, 16
        %v4390 = vshll.u32 %v4343, 16
        %v4392 = vrot.slane %v4390, 1
        %v4393 = vor.u32 %v4388, %v4392
        %v4395 = vshrl.u32 %v4344, 16
        %v4397 = vshll.u32 %v4344, 16
        %v4399 = vrot.slane %v4397, 1
        %v4400 = vor.u32 %v4395, %v4399
        %4401 = vrot.lane.b32.xlu0 %v4351, 40
        %v4402 = vpop.permute.xlu0 %4401
        %4403 = vrot.lane.b32.xlu0 %v4358, 40
        %v4404 = vpop.permute.xlu0 %4403
        %4405 = vrot.lane.b32.xlu0 %v4365, 40
        %v4406 = vpop.permute.xlu0 %4405
        %4407 = vrot.lane.b32.xlu0 %v4372, 40
        %v4408 = vpop.permute.xlu0 %4407
        %4409 = vrot.lane.b32.xlu0 %v4379, 40
        %v4410 = vpop.permute.xlu0 %4409
        %4411 = vrot.lane.b32.xlu0 %v4386, 40
        %v4412 = vpop.permute.xlu0 %4411
        %4413 = vrot.lane.b32.xlu0 %v4393, 40
        %v4414 = vpop.permute.xlu0 %4413
        %4415 = vrot.lane.b32.xlu0 %v4400, 40
        %v4416 = vpop.permute.xlu0 %4415
        %v4425 = vunpack.c.l.b16 %v4064
        %v4426 = vunpack.c.l.b16 %v4065
        %v4427 = vunpack.c.l.b16 %v4066
        %v4428 = vunpack.c.l.b16 %v4067
        %v4429 = vunpack.c.l.b16 %v4068
        %v4430 = vunpack.c.l.b16 %v4069
        %v4431 = vunpack.c.l.b16 %v4070
        %v4432 = vunpack.c.l.b16 %v4071
        %v4433 = vpack.c.b16 %v4329, %v4425
        %v4434 = vpack.c.b16 %v4330, %v4426
        %v4435 = vpack.c.b16 %v4331, %v4427
        %v4436 = vpack.c.b16 %v4332, %v4428
        %v4437 = vpack.c.b16 %v4333, %v4429
        %v4438 = vpack.c.b16 %v4334, %v4430
        %v4439 = vpack.c.b16 %v4335, %v4431
        %v4440 = vpack.c.b16 %v4336, %v4432
        %v4441 = vrot.slane %v4433, 1
        %v4442 = vrot.slane %v4434, 1
        %v4443 = vrot.slane %v4435, 1
        %v4444 = vrot.slane %v4436, 1
        %v4445 = vrot.slane %v4437, 1
        %v4446 = vrot.slane %v4438, 1
        %v4447 = vrot.slane %v4439, 1
        %v4448 = vrot.slane %v4440, 1
        %4449 = vrot.lane.b32.xlu0 %v4441, 56
        %v4450 = vpop.permute.xlu0 %4449
        %4451 = vrot.lane.b32.xlu0 %v4442, 56
        %v4452 = vpop.permute.xlu0 %4451
        %4453 = vrot.lane.b32.xlu0 %v4443, 56
        %v4454 = vpop.permute.xlu0 %4453
        %4455 = vrot.lane.b32.xlu0 %v4444, 56
        %v4456 = vpop.permute.xlu0 %4455
        %4457 = vrot.lane.b32.xlu0 %v4445, 56
        %v4458 = vpop.permute.xlu0 %4457
        %4459 = vrot.lane.b32.xlu0 %v4446, 56
        %v4460 = vpop.permute.xlu0 %4459
        %4461 = vrot.lane.b32.xlu0 %v4447, 56
        %v4462 = vpop.permute.xlu0 %4461
        %4463 = vrot.lane.b32.xlu0 %v4448, 56
        %v4464 = vpop.permute.xlu0 %4463
        %4465 = vrot.lane.b32.xlu0 %v4297, 40
        %v4466 = vpop.permute.xlu0 %4465
        %4467 = vrot.lane.b32.xlu0 %v4298, 40
        %v4468 = vpop.permute.xlu0 %4467
        %4469 = vrot.lane.b32.xlu0 %v4299, 40
        %v4470 = vpop.permute.xlu0 %4469
        %4471 = vrot.lane.b32.xlu0 %v4300, 40
        %v4472 = vpop.permute.xlu0 %4471
        %4473 = vrot.lane.b32.xlu0 %v4301, 40
        %v4474 = vpop.permute.xlu0 %4473
        %4475 = vrot.lane.b32.xlu0 %v4302, 40
        %v4476 = vpop.permute.xlu0 %4475
        %4477 = vrot.lane.b32.xlu0 %v4303, 40
        %v4478 = vpop.permute.xlu0 %4477
        %4479 = vrot.lane.b32.xlu0 %v4304, 40
        %v4480 = vpop.permute.xlu0 %4479
        %4481 = vrot.lane.b32.xlu0 %v4351, 56
        %v4482 = vpop.permute.xlu0 %4481
        %4483 = vrot.lane.b32.xlu0 %v4358, 56
        %v4484 = vpop.permute.xlu0 %4483
        %4485 = vrot.lane.b32.xlu0 %v4365, 56
        %v4486 = vpop.permute.xlu0 %4485
        %4487 = vrot.lane.b32.xlu0 %v4372, 56
        %v4488 = vpop.permute.xlu0 %4487
        %4489 = vrot.lane.b32.xlu0 %v4379, 56
        %v4490 = vpop.permute.xlu0 %4489
        %4491 = vrot.lane.b32.xlu0 %v4386, 56
        %v4492 = vpop.permute.xlu0 %4491
        %4493 = vrot.lane.b32.xlu0 %v4393, 56
        %v4494 = vpop.permute.xlu0 %4493
        %4495 = vrot.lane.b32.xlu0 %v4400, 56
        %v4496 = vpop.permute.xlu0 %4495
        %4497 = vrot.lane.b32.xlu0 %v4441, 72
        %v4498 = vpop.permute.xlu0 %4497
        %4499 = vrot.lane.b32.xlu0 %v4442, 72
        %v4500 = vpop.permute.xlu0 %4499
        %4501 = vrot.lane.b32.xlu0 %v4443, 72
        %v4502 = vpop.permute.xlu0 %4501
        %4503 = vrot.lane.b32.xlu0 %v4444, 72
        %v4504 = vpop.permute.xlu0 %4503
        %4505 = vrot.lane.b32.xlu0 %v4445, 72
        %v4506 = vpop.permute.xlu0 %4505
        %4507 = vrot.lane.b32.xlu0 %v4446, 72
        %v4508 = vpop.permute.xlu0 %4507
        %4509 = vrot.lane.b32.xlu0 %v4447, 72
        %v4510 = vpop.permute.xlu0 %4509
        %4511 = vrot.lane.b32.xlu0 %v4448, 72
        %v4512 = vpop.permute.xlu0 %4511
        %v4521 = vunpack.c.l.b16 %v4073
        %v4522 = vunpack.c.l.b16 %v4074
        %v4523 = vunpack.c.l.b16 %v4075
        %v4524 = vunpack.c.l.b16 %v4076
        %v4525 = vunpack.c.l.b16 %v4077
        %v4526 = vunpack.c.l.b16 %v4078
        %v4527 = vunpack.c.l.b16 %v4079
        %v4528 = vunpack.c.l.b16 %v4080
        %v4529 = vpack.c.b16 %v4521, %v4521
        %v4530 = vpack.c.b16 %v4522, %v4522
        %v4531 = vpack.c.b16 %v4523, %v4523
        %v4532 = vpack.c.b16 %v4524, %v4524
        %v4533 = vpack.c.b16 %v4525, %v4525
        %v4534 = vpack.c.b16 %v4526, %v4526
        %v4535 = vpack.c.b16 %v4527, %v4527
        %v4536 = vpack.c.b16 %v4528, %v4528
        %4537 = vrot.lane.b32.xlu0 %v4529, 88
        %v4538 = vpop.permute.xlu0 %4537
        %4539 = vrot.lane.b32.xlu0 %v4530, 88
        %v4540 = vpop.permute.xlu0 %4539
        %4541 = vrot.lane.b32.xlu0 %v4531, 88
        %v4542 = vpop.permute.xlu0 %4541
        %4543 = vrot.lane.b32.xlu0 %v4532, 88
        %v4544 = vpop.permute.xlu0 %4543
        %4545 = vrot.lane.b32.xlu0 %v4533, 88
        %v4546 = vpop.permute.xlu0 %4545
        %4547 = vrot.lane.b32.xlu0 %v4534, 88
        %v4548 = vpop.permute.xlu0 %4547
        %4549 = vrot.lane.b32.xlu0 %v4535, 88
        %v4550 = vpop.permute.xlu0 %4549
        %4551 = vrot.lane.b32.xlu0 %v4536, 88
        %v4552 = vpop.permute.xlu0 %4551
        %v4561 = vunpack.c.l.b16 %v4081
        %v4562 = vunpack.c.l.b16 %v4082
        %v4563 = vunpack.c.l.b16 %v4083
        %v4564 = vunpack.c.l.b16 %v4084
        %v4565 = vunpack.c.l.b16 %v4085
        %v4566 = vunpack.c.l.b16 %v4086
        %v4567 = vunpack.c.l.b16 %v4087
        %v4568 = vunpack.c.l.b16 %v4088
        %v4569 = vpack.c.b16 %v4561, %v4521
        %v4570 = vpack.c.b16 %v4562, %v4522
        %v4571 = vpack.c.b16 %v4563, %v4523
        %v4572 = vpack.c.b16 %v4564, %v4524
        %v4573 = vpack.c.b16 %v4565, %v4525
        %v4574 = vpack.c.b16 %v4566, %v4526
        %v4575 = vpack.c.b16 %v4567, %v4527
        %v4576 = vpack.c.b16 %v4568, %v4528
        %v4578 = vshrl.u32 %v4569, 16
        %v4580 = vshll.u32 %v4569, 16
        %v4582 = vrot.slane %v4580, 1
        %v4583 = vor.u32 %v4578, %v4582
        %v4585 = vshrl.u32 %v4570, 16
        %v4587 = vshll.u32 %v4570, 16
        %v4589 = vrot.slane %v4587, 1
        %v4590 = vor.u32 %v4585, %v4589
        %v4592 = vshrl.u32 %v4571, 16
        %v4594 = vshll.u32 %v4571, 16
        %v4596 = vrot.slane %v4594, 1
        %v4597 = vor.u32 %v4592, %v4596
        %v4599 = vshrl.u32 %v4572, 16
        %v4601 = vshll.u32 %v4572, 16
        %v4603 = vrot.slane %v4601, 1
        %v4604 = vor.u32 %v4599, %v4603
        %v4606 = vshrl.u32 %v4573, 16
        %v4608 = vshll.u32 %v4573, 16
        %v4610 = vrot.slane %v4608, 1
        %v4611 = vor.u32 %v4606, %v4610
        %v4613 = vshrl.u32 %v4574, 16
        %v4615 = vshll.u32 %v4574, 16
        %v4617 = vrot.slane %v4615, 1
        %v4618 = vor.u32 %v4613, %v4617
        %v4620 = vshrl.u32 %v4575, 16
        %v4622 = vshll.u32 %v4575, 16
        %v4624 = vrot.slane %v4622, 1
        %v4625 = vor.u32 %v4620, %v4624
        %v4627 = vshrl.u32 %v4576, 16
        %v4629 = vshll.u32 %v4576, 16
        %v4631 = vrot.slane %v4629, 1
        %v4632 = vor.u32 %v4627, %v4631
        %4633 = vrot.lane.b32.xlu0 %v4583, 104
        %v4634 = vpop.permute.xlu0 %4633
        %4635 = vrot.lane.b32.xlu0 %v4590, 104
        %v4636 = vpop.permute.xlu0 %4635
        %4637 = vrot.lane.b32.xlu0 %v4597, 104
        %v4638 = vpop.permute.xlu0 %4637
        %4639 = vrot.lane.b32.xlu0 %v4604, 104
        %v4640 = vpop.permute.xlu0 %4639
        %4641 = vrot.lane.b32.xlu0 %v4611, 104
        %v4642 = vpop.permute.xlu0 %4641
        %4643 = vrot.lane.b32.xlu0 %v4618, 104
        %v4644 = vpop.permute.xlu0 %4643
        %4645 = vrot.lane.b32.xlu0 %v4625, 104
        %v4646 = vpop.permute.xlu0 %4645
        %4647 = vrot.lane.b32.xlu0 %v4632, 104
        %v4648 = vpop.permute.xlu0 %4647
        %v4657 = vunpack.c.l.b16 %v4089
        %v4658 = vunpack.c.l.b16 %v4090
        %v4659 = vunpack.c.l.b16 %v4091
        %v4660 = vunpack.c.l.b16 %v4092
        %v4661 = vunpack.c.l.b16 %v4093
        %v4662 = vunpack.c.l.b16 %v4094
        %v4663 = vunpack.c.l.b16 %v4095
        %v4664 = vunpack.c.l.b16 %v4096
        %v4665 = vpack.c.b16 %v4561, %v4657
        %v4666 = vpack.c.b16 %v4562, %v4658
        %v4667 = vpack.c.b16 %v4563, %v4659
        %v4668 = vpack.c.b16 %v4564, %v4660
        %v4669 = vpack.c.b16 %v4565, %v4661
        %v4670 = vpack.c.b16 %v4566, %v4662
        %v4671 = vpack.c.b16 %v4567, %v4663
        %v4672 = vpack.c.b16 %v4568, %v4664
        %v4673 = vrot.slane %v4665, 1
        %v4674 = vrot.slane %v4666, 1
        %v4675 = vrot.slane %v4667, 1
        %v4676 = vrot.slane %v4668, 1
        %v4677 = vrot.slane %v4669, 1
        %v4678 = vrot.slane %v4670, 1
        %v4679 = vrot.slane %v4671, 1
        %v4680 = vrot.slane %v4672, 1
        %4681 = vrot.lane.b32.xlu0 %v4673, 120
        %v4682 = vpop.permute.xlu0 %4681
        %4683 = vrot.lane.b32.xlu0 %v4674, 120
        %v4684 = vpop.permute.xlu0 %4683
        %4685 = vrot.lane.b32.xlu0 %v4675, 120
        %v4686 = vpop.permute.xlu0 %4685
        %4687 = vrot.lane.b32.xlu0 %v4676, 120
        %v4688 = vpop.permute.xlu0 %4687
        %4689 = vrot.lane.b32.xlu0 %v4677, 120
        %v4690 = vpop.permute.xlu0 %4689
        %4691 = vrot.lane.b32.xlu0 %v4678, 120
        %v4692 = vpop.permute.xlu0 %4691
        %4693 = vrot.lane.b32.xlu0 %v4679, 120
        %v4694 = vpop.permute.xlu0 %4693
        %4695 = vrot.lane.b32.xlu0 %v4680, 120
        %v4696 = vpop.permute.xlu0 %4695
        %v4699 = vsel %vm1064, %v4122, %v4218
        %v4702 = vsel %vm1064, %v4124, %v4220
        %v4705 = vsel %vm1064, %v4126, %v4222
        %v4708 = vsel %vm1064, %v4128, %v4224
        %v4711 = vsel %vm1064, %v4130, %v4226
        %v4714 = vsel %vm1064, %v4132, %v4228
        %v4717 = vsel %vm1064, %v4134, %v4230
        %v4720 = vsel %vm1064, %v4136, %v4232
        %v4721 = vsel %vm1089, %v4699, %v4218
        %v4722 = vsel %vm1089, %v4702, %v4220
        %v4723 = vsel %vm1089, %v4705, %v4222
        %v4724 = vsel %vm1089, %v4708, %v4224
        %v4725 = vsel %vm1089, %v4711, %v4226
        %v4726 = vsel %vm1089, %v4714, %v4228
        %v4727 = vsel %vm1089, %v4717, %v4230
        %v4728 = vsel %vm1089, %v4720, %v4232
        %v4730 = vsel %vm1106, %v4721, %v4266
        %v4732 = vsel %vm1106, %v4722, %v4268
        %v4734 = vsel %vm1106, %v4723, %v4270
        %v4736 = vsel %vm1106, %v4724, %v4272
        %v4738 = vsel %vm1106, %v4725, %v4274
        %v4740 = vsel %vm1106, %v4726, %v4276
        %v4742 = vsel %vm1106, %v4727, %v4278
        %v4744 = vsel %vm1106, %v4728, %v4280
        %v4746 = vsel %vm1123, %v4730, %v4306
        %v4748 = vsel %vm1123, %v4732, %v4308
        %v4750 = vsel %vm1123, %v4734, %v4310
        %v4752 = vsel %vm1123, %v4736, %v4312
        %v4754 = vsel %vm1123, %v4738, %v4314
        %v4756 = vsel %vm1123, %v4740, %v4316
        %v4758 = vsel %vm1123, %v4742, %v4318
        %v4760 = vsel %vm1123, %v4744, %v4320
        %v4762 = vsel %vm1140, %v4746, %v4402
        %v4764 = vsel %vm1140, %v4748, %v4404
        %v4766 = vsel %vm1140, %v4750, %v4406
        %v4768 = vsel %vm1140, %v4752, %v4408
        %v4770 = vsel %vm1140, %v4754, %v4410
        %v4772 = vsel %vm1140, %v4756, %v4412
        %v4774 = vsel %vm1140, %v4758, %v4414
        %v4776 = vsel %vm1140, %v4760, %v4416
        %v4777 = vsel %vm1157, %v4762, %v4402
        %v4778 = vsel %vm1157, %v4764, %v4404
        %v4779 = vsel %vm1157, %v4766, %v4406
        %v4780 = vsel %vm1157, %v4768, %v4408
        %v4781 = vsel %vm1157, %v4770, %v4410
        %v4782 = vsel %vm1157, %v4772, %v4412
        %v4783 = vsel %vm1157, %v4774, %v4414
        %v4784 = vsel %vm1157, %v4776, %v4416
        %v4786 = vsel %vm1174, %v4777, %v4450
        %v4788 = vsel %vm1174, %v4778, %v4452
        %v4790 = vsel %vm1174, %v4779, %v4454
        %v4792 = vsel %vm1174, %v4780, %v4456
        %v4794 = vsel %vm1174, %v4781, %v4458
        %v4796 = vsel %vm1174, %v4782, %v4460
        %v4798 = vsel %vm1174, %v4783, %v4462
        %v4800 = vsel %vm1174, %v4784, %v4464
        %v4802 = vsel %vm1191, %v4786, %v4466
        %v4804 = vsel %vm1191, %v4788, %v4468
        %v4806 = vsel %vm1191, %v4790, %v4470
        %v4808 = vsel %vm1191, %v4792, %v4472
        %v4810 = vsel %vm1191, %v4794, %v4474
        %v4812 = vsel %vm1191, %v4796, %v4476
        %v4814 = vsel %vm1191, %v4798, %v4478
        %v4816 = vsel %vm1191, %v4800, %v4480
        %v4818 = vsel %vm1264, %v4802, %v4482
        %v4820 = vsel %vm1264, %v4804, %v4484
        %v4822 = vsel %vm1264, %v4806, %v4486
        %v4824 = vsel %vm1264, %v4808, %v4488
        %v4826 = vsel %vm1264, %v4810, %v4490
        %v4828 = vsel %vm1264, %v4812, %v4492
        %v4830 = vsel %vm1264, %v4814, %v4494
        %v4832 = vsel %vm1264, %v4816, %v4496
        %v4833 = vsel %vm2552, %v4818, %v4482
        %v4834 = vsel %vm2552, %v4820, %v4484
        %v4835 = vsel %vm2552, %v4822, %v4486
        %v4836 = vsel %vm2552, %v4824, %v4488
        %v4837 = vsel %vm2552, %v4826, %v4490
        %v4838 = vsel %vm2552, %v4828, %v4492
        %v4839 = vsel %vm2552, %v4830, %v4494
        %v4840 = vsel %vm2552, %v4832, %v4496
        %v4842 = vsel %vm2569, %v4833, %v4498
        %v4844 = vsel %vm2569, %v4834, %v4500
        %v4846 = vsel %vm2569, %v4835, %v4502
        %v4848 = vsel %vm2569, %v4836, %v4504
        %v4850 = vsel %vm2569, %v4837, %v4506
        %v4852 = vsel %vm2569, %v4838, %v4508
        %v4854 = vsel %vm2569, %v4839, %v4510
        %v4856 = vsel %vm2569, %v4840, %v4512
        %v4858 = vsel %vm2586, %v4842, %v4538
        %v4860 = vsel %vm2586, %v4844, %v4540
        %v4862 = vsel %vm2586, %v4846, %v4542
        %v4864 = vsel %vm2586, %v4848, %v4544
        %v4866 = vsel %vm2586, %v4850, %v4546
        %v4868 = vsel %vm2586, %v4852, %v4548
        %v4870 = vsel %vm2586, %v4854, %v4550
        %v4872 = vsel %vm2586, %v4856, %v4552
        %v4874 = vsel %vm2603, %v4858, %v4634
        %v4876 = vsel %vm2603, %v4860, %v4636
        %v4878 = vsel %vm2603, %v4862, %v4638
        %v4880 = vsel %vm2603, %v4864, %v4640
        %v4882 = vsel %vm2603, %v4866, %v4642
        %v4884 = vsel %vm2603, %v4868, %v4644
        %v4886 = vsel %vm2603, %v4870, %v4646
        %v4888 = vsel %vm2603, %v4872, %v4648
        %v4889 = vsel %vm2620, %v4874, %v4634
        %v4890 = vsel %vm2620, %v4876, %v4636
        %v4891 = vsel %vm2620, %v4878, %v4638
        %v4892 = vsel %vm2620, %v4880, %v4640
        %v4893 = vsel %vm2620, %v4882, %v4642
        %v4894 = vsel %vm2620, %v4884, %v4644
        %v4895 = vsel %vm2620, %v4886, %v4646
        %v4896 = vsel %vm2620, %v4888, %v4648
        %v4898 = vsel %vm2637, %v4889, %v4682
        %v4900 = vsel %vm2637, %v4890, %v4684
        %v4902 = vsel %vm2637, %v4891, %v4686
        %v4904 = vsel %vm2637, %v4892, %v4688
        %v4906 = vsel %vm2637, %v4893, %v4690
        %v4908 = vsel %vm2637, %v4894, %v4692
        %v4910 = vsel %vm2637, %v4895, %v4694
        %v4912 = vsel %vm2637, %v4896, %v4696
        %v4913 = vld [vmem:[%s4] sm:$0xf]
        %v4914 = vld [vmem:[%s4 + $0x4] sm:$0xf]
        %v4915 = vld [vmem:[%s4 + $0x8] sm:$0xf]
        %v4916 = vld [vmem:[%s4 + $0xc] sm:$0xf]
        %v4917 = vld [vmem:[%s4 + $0x10] sm:$0xf]
        %v4918 = vld [vmem:[%s4 + $0x14] sm:$0xf]
        %v4919 = vld [vmem:[%s4 + $0x18] sm:$0xf]
        %v4920 = vld [vmem:[%s4 + $0x1c] sm:$0xf]
        %v4921 = vld [vmem:[%s4 + $0x20] sm:$0xf]
        %v4922 = vld [vmem:[%s4 + $0x24] sm:$0xf]
        %v4923 = vld [vmem:[%s4 + $0x28] sm:$0xf]
        %v4924 = vld [vmem:[%s4 + $0x2c] sm:$0xf]
        %v4925 = vld [vmem:[%s4 + $0x30] sm:$0xf]
        %v4926 = vld [vmem:[%s4 + $0x34] sm:$0xf]
        %v4927 = vld [vmem:[%s4 + $0x38] sm:$0xf]
        %v4928 = vld [vmem:[%s4 + $0x3c] sm:$0xf]
        %v4937 = vunpack.c.l.b16 %v4898
        %v4938 = vunpack.c.l.b16 %v4900
        %v4939 = vunpack.c.l.b16 %v4902
        %v4940 = vunpack.c.l.b16 %v4904
        %v4941 = vunpack.c.l.b16 %v4906
        %v4942 = vunpack.c.l.b16 %v4908
        %v4943 = vunpack.c.l.b16 %v4910
        %v4944 = vunpack.c.l.b16 %v4912
        %v4945 = vpack.c.b16 %v4938, %v4937
        %v4946 = vpack.c.b16 %v4940, %v4939
        %v4947 = vpack.c.b16 %v4942, %v4941
        %v4948 = vpack.c.b16 %v4944, %v4943
        %v4969 = vunpack.c.l.b16 %v4913
        %v4970 = vunpack.c.l.b16 %v4914
        %v4971 = vunpack.c.l.b16 %v4915
        %v4972 = vunpack.c.l.b16 %v4916
        %v4973 = vunpack.c.l.b16 %v4917
        %v4974 = vunpack.c.l.b16 %v4918
        %v4975 = vunpack.c.l.b16 %v4919
        %v4976 = vunpack.c.l.b16 %v4920
        %v4977 = vunpack.c.l.b16 %v4921
        %v4978 = vunpack.c.l.b16 %v4922
        %v4979 = vunpack.c.l.b16 %v4923
        %v4980 = vunpack.c.l.b16 %v4924
        %v4981 = vunpack.c.l.b16 %v4925
        %v4982 = vunpack.c.l.b16 %v4926
        %v4983 = vunpack.c.l.b16 %v4927
        %v4984 = vunpack.c.l.b16 %v4928
        %v4985 = vpack.c.b16 %v4970, %v4969
        %v4986 = vpack.c.b16 %v4972, %v4971
        %v4987 = vpack.c.b16 %v4974, %v4973
        %v4988 = vpack.c.b16 %v4976, %v4975
        %v4989 = vpack.c.b16 %v4978, %v4977
        %v4990 = vpack.c.b16 %v4980, %v4979
        %v4991 = vpack.c.b16 %v4982, %v4981
        %v4992 = vpack.c.b16 %v4984, %v4983
        %5001 = vmatpush.bf16.msra.mxu0 %v4992
        %5002 = vmatpush.bf16.msra.mxu0 %v4991
        %5003 = vmatpush.bf16.msra.mxu0 %v4990
        %5004 = vmatpush.bf16.msra.mxu0 %v4989
        %5005 = vmatpush.bf16.msra.mxu0 %v4988
        %5006 = vmatpush.bf16.msra.mxu0 %v4987
        %5007 = vmatpush.bf16.msra.mxu0 %v4986
        %5008 = vmatpush.bf16.msra.mxu0 %v4985
        %5009 = vmatmul.bf16.gmra.mxu0 %v4945
        %v5010 = vpop.f32.mrf.mxu0
        %v5011 = vadd.f32 0.0, %v5010
        %v5012 = vpop.f32.mrf.mxu0
        %v5013 = vadd.f32 0.0, %v5012
        %5014 = vmatmul.bf16.gmra.mxu0 %v4946
        %v5015 = vpop.f32.mrf.mxu0
        %v5016 = vadd.f32 0.0, %v5015
        %v5017 = vpop.f32.mrf.mxu0
        %v5018 = vadd.f32 0.0, %v5017
        %5019 = vmatmul.bf16.gmra.mxu0 %v4947
        %v5020 = vpop.f32.mrf.mxu0
        %v5021 = vadd.f32 0.0, %v5020
        %v5022 = vpop.f32.mrf.mxu0
        %v5023 = vadd.f32 0.0, %v5022
        %5024 = vmatmul.bf16.gmra.mxu0 %v4948
        %v5025 = vpop.f32.mrf.mxu0
        %v5026 = vadd.f32 0.0, %v5025
        %v5027 = vpop.f32.mrf.mxu0
        %v5028 = vadd.f32 0.0, %v5027
        %5029 = vdwg.mxu0
        %v5030 = vld [vmem:[%s6 + $0x2] sm:$0x1]
        %v5031 = vperm.slane %v5030, 0
        %v5032 = vmul.f32 %v5011, %v5031
        %v5033 = vmul.f32 %v5013, %v5031
        %v5034 = vmul.f32 %v5016, %v5031
        %v5035 = vmul.f32 %v5018, %v5031
        %v5036 = vmul.f32 %v5021, %v5031
        %v5037 = vmul.f32 %v5023, %v5031
        %v5038 = vmul.f32 %v5026, %v5031
        %v5039 = vmul.f32 %v5028, %v5031
        %v5040 = vld [vmem:[%s7 + $0x2] sm:$0x1]
        %v5041 = vperm.slane %v5040, 0
        %v5042 = vadd.f32 %v5032, %v5041
        %v5043 = vadd.f32 %v5033, %v5041
        %v5044 = vadd.f32 %v5034, %v5041
        %v5045 = vadd.f32 %v5035, %v5041
        %v5046 = vadd.f32 %v5036, %v5041
        %v5047 = vadd.f32 %v5037, %v5041
        %v5048 = vadd.f32 %v5038, %v5041
        %v5049 = vadd.f32 %v5039, %v5041
        %vm5050 = vcmp.ge.f32.partialorder %v5042, 0.0
        %vm5051 = vcmp.ge.f32.partialorder %v5043, 0.0
        %vm5052 = vcmp.ge.f32.partialorder %v5044, 0.0
        %vm5053 = vcmp.ge.f32.partialorder %v5045, 0.0
        %vm5054 = vcmp.ge.f32.partialorder %v5046, 0.0
        %vm5055 = vcmp.ge.f32.partialorder %v5047, 0.0
        %vm5056 = vcmp.ge.f32.partialorder %v5048, 0.0
        %vm5057 = vcmp.ge.f32.partialorder %v5049, 0.0
        %v5058 = vmul.f32 %v5042, 0.2
        %v5059 = vmul.f32 %v5043, 0.2
        %v5060 = vmul.f32 %v5044, 0.2
        %v5061 = vmul.f32 %v5045, 0.2
        %v5062 = vmul.f32 %v5046, 0.2
        %v5063 = vmul.f32 %v5047, 0.2
        %v5064 = vmul.f32 %v5048, 0.2
        %v5065 = vmul.f32 %v5049, 0.2
        %v5066 = vsel %vm5050, %v5042, %v5058
        %v5067 = vsel %vm5051, %v5043, %v5059
        %v5068 = vsel %vm5052, %v5044, %v5060
        %v5069 = vsel %vm5053, %v5045, %v5061
        %v5070 = vsel %vm5054, %v5046, %v5062
        %v5071 = vsel %vm5055, %v5047, %v5063
        %v5072 = vsel %vm5056, %v5048, %v5064
        %v5073 = vsel %vm5057, %v5049, %v5065
        %v5074 = vunpack.c.l.b16 %v3917
        %v5075 = vunpack.c.l.b16 %v3931
        %v5076 = vunpack.c.l.b16 %v3945
        %v5077 = vunpack.c.l.b16 %v3959
        %v5078 = vunpack.c.l.b16 %v3973
        %v5079 = vunpack.c.l.b16 %v3987
        %v5080 = vunpack.c.l.b16 %v4001
        %v5081 = vunpack.c.l.b16 %v4015
        %v5082 = vpack.c.b16 %v5075, %v5074
        %v5083 = vpack.c.b16 %v5077, %v5076
        %v5084 = vpack.c.b16 %v5079, %v5078
        %v5085 = vpack.c.b16 %v5081, %v5080
        %v5094 = vunpack.c.l.b16 %v4016
        %v5095 = vunpack.c.l.b16 %v4017
        %v5096 = vunpack.c.l.b16 %v4018
        %v5097 = vunpack.c.l.b16 %v4019
        %v5098 = vunpack.c.l.b16 %v4020
        %v5099 = vunpack.c.l.b16 %v4021
        %v5100 = vunpack.c.l.b16 %v4022
        %v5101 = vunpack.c.l.b16 %v4023
        %v5102 = vpack.c.b16 %v5095, %v5094
        %v5103 = vpack.c.b16 %v5097, %v5096
        %v5104 = vpack.c.b16 %v5099, %v5098
        %v5105 = vpack.c.b16 %v5101, %v5100
        %v5111 = vsel %vm1191, %v5082, 0
        %v5114 = vsel %vm1191, %v5083, 0
        %v5117 = vsel %vm1191, %v5084, 0
        %v5120 = vsel %vm1191, %v5085, 0
        %5122 = vmatpush.bf16.msra.mxu0 0
        %5123 = vmatpush.bf16.msra.mxu0 0
        %5124 = vmatpush.bf16.msra.mxu0 0
        %5125 = vmatpush.bf16.msra.mxu0 0
        %5126 = vmatpush.bf16.msra.mxu0 %v5105
        %5127 = vmatpush.bf16.msra.mxu0 %v5104
        %5128 = vmatpush.bf16.msra.mxu0 %v5103
        %5129 = vmatpush.bf16.msra.mxu0 %v5102
        %5130 = vmatmul.bf16.gmra.mxu0 %v5111
        %v5131 = vpop.f32.mrf.mxu0
        %v5132 = vadd.f32 %v5066, %v5131
        %v5133 = vpop.f32.mrf.mxu0
        %v5134 = vadd.f32 %v5067, %v5133
        %5135 = vmatmul.bf16.gmra.mxu0 %v5114
        %v5136 = vpop.f32.mrf.mxu0
        %v5137 = vadd.f32 %v5068, %v5136
        %v5138 = vpop.f32.mrf.mxu0
        %v5139 = vadd.f32 %v5069, %v5138
        %5140 = vmatmul.bf16.gmra.mxu0 %v5117
        %v5141 = vpop.f32.mrf.mxu0
        %v5142 = vadd.f32 %v5070, %v5141
        %v5143 = vpop.f32.mrf.mxu0
        %v5144 = vadd.f32 %v5071, %v5143
        %5145 = vmatmul.bf16.gmra.mxu0 %v5120
        %v5146 = vpop.f32.mrf.mxu0
        %v5147 = vadd.f32 %v5072, %v5146
        %v5148 = vpop.f32.mrf.mxu0
        %v5149 = vadd.f32 %v5073, %v5148
        %5150 = vdwg.mxu0
        %v5151 = vmax.f32 %v5132, 0.0
        %v5152 = vmax.f32 %v5134, 0.0
        %v5153 = vmax.f32 %v5137, 0.0
        %v5154 = vmax.f32 %v5139, 0.0
        %v5155 = vmax.f32 %v5142, 0.0
        %v5156 = vmax.f32 %v5144, 0.0
        %v5157 = vmax.f32 %v5147, 0.0
        %v5158 = vmax.f32 %v5149, 0.0
        %5159 = vst.msk [vmem:[%s313] sm:$0xff] %vm1123, %v5151
        %5160 = vst.msk [vmem:[%s313 + $0x8] sm:$0xff] %vm1123, %v5152
        %5161 = vst.msk [vmem:[%s313 + $0x10] sm:$0xff] %vm1123, %v5153
        %5162 = vst.msk [vmem:[%s313 + $0x18] sm:$0xff] %vm1123, %v5154
        %5163 = vst.msk [vmem:[%s313 + $0x20] sm:$0xff] %vm1123, %v5155
        %5164 = vst.msk [vmem:[%s313 + $0x28] sm:$0xff] %vm1123, %v5156
        %5165 = vst.msk [vmem:[%s313 + $0x30] sm:$0xff] %vm1123, %v5157
        %5166 = vst.msk [vmem:[%s313 + $0x38] sm:$0xff] %vm1123, %v5158
        %s5167 = sand.u32 %s208, 1
        %s5168 = scalar_lea.sflag [#allocation5], %s5167
        %s5169 = sand.u32 %s208, 1
        %s5170 = smul.addr %s5169, 64
        %s5171 = scalar_lea.vmem [#allocation4], %s5170
        // Predicated region
        $region53: #{tpu_custom_call.1} parent=51 // pred_check
          %p5172 = pneg %p218
        $region54: #{tpu_custom_call.1} parent=51 // pred_check_branch
          %5174 = sbr.rel (%p5172) target = $region56
        $region55: #{tpu_custom_call.1} parent=51 // pred_region
          %5176 = vsyncadd %s5168, 0
          %s5177 = smul.addr %s22, 8
          %s5178 = smul.addr %s5177, 8
          %s5179 = scalar_lea.hbm %s8, %s5178
          %s5180 = sshll.u32 %s5171, 4
          %s5181 = int_to_ptr.vmem [resolvable:$true] %s5180
          %s5182 = sshll.u32 %s5179, 4
          %s5183 = int_to_ptr.hbm [resolvable:$true] %s5182
          %5188 = dma.vmem_to_hbm [thread:$0]  %s5181, 1024, %s5183, %s5168, 128, 128, 8
        $region56: #{tpu_custom_call.1} parent=51 // pred_fallthru
          _
      $region52: #{tpu_custom_call.1} parent=5 // pred_fallthru
        _
      %p5189 = scmp.le.s32.totalorder 2, %s17
      // Predicated region
      $region57: #{tpu_custom_call.1} parent=5 // pred_check
        %p5190 = pneg %p5189
      $region58: #{tpu_custom_call.1} parent=5 // pred_check_branch
        %5192 = sbr.rel (%p5190) target = $region60
      $region59: #{tpu_custom_call.1} parent=5 // pred_region
        %s5193 = ssub.s32 %s17, 2
        // Predicated region
        $region61: #{tpu_custom_call.1} parent=59 // pred_check
          %p5194 = pneg %p224
        $region62: #{tpu_custom_call.1} parent=59 // pred_check_branch
          %5196 = sbr.rel (%p5194) target = $region64
        $region63: #{tpu_custom_call.1} parent=59 // pred_region
          %s5197 = sand.u32 %s209, 1
          %s5198 = scalar_lea.sflag [#allocation5], %s5197
          %s5199 = sand.u32 %s209, 1
          %s5200 = smul.addr %s5199, 64
          %s5201 = scalar_lea.vmem [#allocation4], %s5200
          %5203 = dma.done %s5198, 1024
        $region64: #{tpu_custom_call.1} parent=59 // pred_fallthru
          _
      $region60: #{tpu_custom_call.1} parent=5 // pred_fallthru
        _
    $region6: #{tpu_custom_call.1} parent=1 // loop_footer
      %s21 = sadd.s32 1, %s17
    $region7: #{tpu_custom_call.1} parent=1 // loop_footer_branch
      %16 = sbr.rel target = $region3
    $region8: #{tpu_custom_call.1} parent=1 // loop_exit
      _
    %5204 = vsyncpa [#allocation5], 1
    %s5205 = scalar_lea.sflag [#allocation5], 1
    %5206 = vsyncpa %s5205, 1

</llo_original>
